<compile_context>
chip_gen: v7x
topology: tpu7x:2x2x1
jax: 0.10.0
libtpu: 0.0.40
codegen_flags: <defaults>
</compile_context>

<pallas_src>
import math
from functools import partial

import jax
import jax.numpy as jnp
from jax.experimental import pallas as pl
from jax.experimental.pallas import tpu as pltpu


# -----------------------------------------------------------------------------
# Fused kernel: all LSTM layers (bidirectional, interleaved) + head
# -----------------------------------------------------------------------------
def bilstm_fused_kernel(*refs, num_layers, hidden, seq_len, batch):
    H, T, Bt = hidden, seq_len, batch

    x_ref = refs[0]                                    # (T*Bt, D_in) f32
    lstm_refs = refs[1:1 + 3 * num_layers]             # per layer: w_ih, w_hh, b
    (fc1_w_ref, fc1_b_ref, fc2_w_ref, fc2_b_ref,
     out_ref, seq_scr, gx_fw_scr, gx_bw_scr) = refs[1 + 3 * num_layers:]

    # Precomputed (hoisted) lane mask selecting the "g" (tanh) gate region of
    # the [i | f | g | o] 4H-wide gate vector.
    lane = jax.lax.broadcasted_iota(jnp.int32, (Bt, 4 * H), 1)
    g_mask = (lane >= 2 * H) & (lane < 3 * H)

    def lstm_cell(gates, c_prev):
        # Whole-vreg sigmoid/tanh + single select, then H-wide slices.
        sig = jax.nn.sigmoid(gates)
        th = jnp.tanh(gates)
        act = jnp.where(g_mask, th, sig)
        i_g = act[:, 0 * H:1 * H]
        f_g = act[:, 1 * H:2 * H]
        g_g = act[:, 2 * H:3 * H]
        o_g = act[:, 3 * H:4 * H]
        c_new = f_g * c_prev + i_g * g_g
        h_new = o_g * jnp.tanh(c_new)
        return h_new, c_new

    h_last_fw = None
    h_first_bw = None

    for layer in range(num_layers):
        w_ih_ref, w_hh_ref, b_ref = lstm_refs[3 * layer:3 * layer + 3]
        last = layer == num_layers - 1

        # Layer input: raw x for layer 0, lane-concatenated (fw|bw) sequence
        # (written by the previous layer into VMEM scratch) afterwards.
        xin = x_ref[...] if layer == 0 else seq_scr[...]

        # ---- pre-pass: hoisted input projection, one big MXU matmul per
        # direction, bias folded in (gates stay f32).
        gx_fw_scr[...] = jnp.dot(xin, w_ih_ref[0],
                                 preferred_element_type=jnp.float32) + b_ref[0]
        gx_bw_scr[...] = jnp.dot(xin, w_ih_ref[1],
                                 preferred_element_type=jnp.float32) + b_ref[1]

        w_hh_fw = w_hh_ref[0]                          # hoisted out of the loop
        w_hh_bw = w_hh_ref[1]
        zeros = jnp.zeros((Bt, H), jnp.float32)

        def step(s, carry, *, last=last, w_hh_fw=w_hh_fw, w_hh_bw=w_hh_bw):
            h_fw, c_fw, h_bw, c_bw, h_bw_first = carry
            t_fw = s
            t_bw = T - 1 - s                           # reversal by index only
            r_fw = pl.multiple_of(t_fw * Bt, Bt)
            r_bw = pl.multiple_of(t_bw * Bt, Bt)

            # Only the small h @ W_hh matmuls remain on the serial chain; the
            # two directions are independent chains and overlap each other.
            gates_fw = gx_fw_scr[pl.ds(r_fw, Bt), :] + jnp.dot(
                h_fw, w_hh_fw, preferred_element_type=jnp.float32)
            gates_bw = gx_bw_scr[pl.ds(r_bw, Bt), :] + jnp.dot(
                h_bw, w_hh_bw, preferred_element_type=jnp.float32)

            h_fw, c_fw = lstm_cell(gates_fw, c_fw)
            h_bw, c_bw = lstm_cell(gates_bw, c_bw)

            if last:
                # lstm_out[:, -1, H:2H] is the bw state after its first
                # processed step (original t = T-1), i.e. s == 0.
                h_bw_first = jnp.where(s == 0, h_bw, h_bw_first)
            else:
                # Lane-concatenated inter-layer sequence: fw -> lanes [0,H),
                # bw -> lanes [H,2H).
                seq_scr[pl.ds(r_fw, Bt), pl.ds(0, H)] = h_fw
                seq_scr[pl.ds(r_bw, Bt), pl.ds(H, H)] = h_bw
            return h_fw, c_fw, h_bw, c_bw, h_bw_first

        carry = (zeros, zeros, zeros, zeros, zeros)
        carry = jax.lax.fori_loop(0, T, step, carry,
                                  unroll=(True if T <= 16 else 4))
        h_last_fw = carry[0]
        h_first_bw = carry[4]

    # ---- fused head: fc1 (split into fw/bw halves to avoid a concat) ->
    # ReLU -> fc2, no extra pallas_call launch, no HBM roundtrip of features.
    z = (jnp.dot(h_last_fw, fc1_w_ref[0], preferred_element_type=jnp.float32)
         + jnp.dot(h_first_bw, fc1_w_ref[1], preferred_element_type=jnp.float32)
         + fc1_b_ref[...])
    z = jnp.maximum(z, 0.0)
    out_ref[...] = (jnp.dot(z, fc2_w_ref[...],
                            preferred_element_type=jnp.float32)
                    + fc2_b_ref[...]).astype(out_ref.dtype)


# -----------------------------------------------------------------------------
# Wrapper
# -----------------------------------------------------------------------------
def _round_up(n, m):
    return ((n + m - 1) // m) * m


@jax.jit
def bilstm_predictor(x, params):
    """x: (B, T, input_size) f32 -> (B, output_size) f32."""
    B, T, D = x.shape
    B_pad = _round_up(B, 8)                      # f32 sublane tile

    xt = jnp.transpose(x, (1, 0, 2))             # (T, B, D) time-major
    xt = jnp.pad(xt, ((0, 0), (0, B_pad - B), (0, 0)))
    x2d = xt.reshape(T * B_pad, D)               # flattened for one MXU matmul

    num_layers = len(params["lstm"])
    H = params["lstm"][0]["w_hh"].shape[1]
    O = params["fc2_w"].shape[1]

    lstm_args = []
    for lp in params["lstm"]:
        lstm_args += [lp["w_ih"], lp["w_hh"], lp["b"]]

    vmem = pl.BlockSpec(memory_space=pltpu.MemorySpace.VMEM)
    n_inputs = 1 + 3 * num_layers + 4

    out = pl.pallas_call(
        partial(bilstm_fused_kernel, num_layers=num_layers, hidden=H,
                seq_len=T, batch=B_pad),
        out_shape=jax.ShapeDtypeStruct((B_pad, O), jnp.float32),
        in_specs=[vmem] * n_inputs,
        out_specs=vmem,
        scratch_shapes=[
            pltpu.VMEM((T * B_pad, 2 * H), jnp.float32),   # inter-layer seq
            pltpu.VMEM((T * B_pad, 4 * H), jnp.float32),   # gx forward
            pltpu.VMEM((T * B_pad, 4 * H), jnp.float32),   # gx backward
        ],
    )(x2d, *lstm_args, params["fc1_w"], params["fc1_b"],
      params["fc2_w"], params["fc2_b"])
    return out[:B]


# -----------------------------------------------------------------------------
# Deterministic parameters (mirror nn.LSTM / nn.Linear shapes + init ranges)
# -----------------------------------------------------------------------------
def make_params(key, input_size, hidden_size, num_layers, output_size):
    H = hidden_size
    bound = 1.0 / math.sqrt(H)

    def unif(k, shape, b):
        return jax.random.uniform(k, shape, jnp.float32, -b, b)

    keys = iter(jax.random.split(key, num_layers * 2 * 4 + 4))

    lstm_layers = []
    for layer in range(num_layers):
        d_in = input_size if layer == 0 else 2 * H
        w_ih_d, w_hh_d, b_d = [], [], []
        for _ in range(2):                       # fw, bw directions
            w_ih = unif(next(keys), (d_in, 4 * H), bound)   # gate order i,f,g,o
            w_hh = unif(next(keys), (H, 4 * H), bound)
            b_ih = unif(next(keys), (4 * H,), bound)
            b_hh = unif(next(keys), (4 * H,), bound)
            w_ih_d.append(w_ih)
            w_hh_d.append(w_hh)
            b_d.append((b_ih + b_hh).reshape(1, 4 * H))
        lstm_layers.append({
            "w_ih": jnp.stack(w_ih_d),           # (2, d_in, 4H)
            "w_hh": jnp.stack(w_hh_d),           # (2, H, 4H)
            "b": jnp.stack(b_d),                 # (2, 1, 4H)
        })

    b1 = 1.0 / math.sqrt(2 * H)
    b2 = 1.0 / math.sqrt(64)
    fc1_w = unif(next(keys), (2 * H, 64), b1).reshape(2, H, 64)  # fw/bw halves
    fc1_b = unif(next(keys), (1, 64), b1)
    fc2_w = unif(next(keys), (64, output_size), b2)
    fc2_b = unif(next(keys), (1, output_size), b2)

    return {"lstm": lstm_layers,
            "fc1_w": fc1_w, "fc1_b": fc1_b,
            "fc2_w": fc2_w, "fc2_b": fc2_b}


# -----------------------------------------------------------------------------
# Pure-JAX reference (for a sanity check against the kernel)
# -----------------------------------------------------------------------------
def reference_forward(x, params):
    B, T, _ = x.shape
    H = params["lstm"][0]["w_hh"].shape[1]

    def cell(x_t, h, c, w_ih, w_hh, b):
        gates = x_t @ w_ih + h @ w_hh + b
        i = jax.nn.sigmoid(gates[:, :H])
        f = jax.nn.sigmoid(gates[:, H:2 * H])
        g = jnp.tanh(gates[:, 2 * H:3 * H])
        o = jax.nn.sigmoid(gates[:, 3 * H:])
        c = f * c + i * g
        return o * jnp.tanh(c), c

    seq = x
    for lp in params["lstm"]:
        h = jnp.zeros((B, H)); c = jnp.zeros((B, H)); fw = []
        for t in range(T):
            h, c = cell(seq[:, t], h, c, lp["w_ih"][0], lp["w_hh"][0], lp["b"][0])
            fw.append(h)
        h = jnp.zeros((B, H)); c = jnp.zeros((B, H)); bw = []
        for t in reversed(range(T)):
            h, c = cell(seq[:, t], h, c, lp["w_ih"][1], lp["w_hh"][1], lp["b"][1])
            bw.append(h)
        bw = bw[::-1]
        seq = jnp.stack([jnp.concatenate([a, b_], -1) for a, b_ in zip(fw, bw)], 1)
        # TODO(synk): inter-layer dropout (p=0.2) applies only in train() mode;
        # eval/inference semantics implemented here (same omission as kernel).
    last = seq[:, -1, :]
    H2 = params["fc1_w"].shape[0] * params["fc1_w"].shape[1]
    fc1_w = params["fc1_w"].reshape(H2, 64)
    z = jnp.maximum(last @ fc1_w + params["fc1_b"], 0.0)
    return z @ params["fc2_w"] + params["fc2_b"]


# -----------------------------------------------------------------------------
# Main
# -----------------------------------------------------------------------------
if __name__ == "__main__":
    # batch=2, seq_len=8, input_size=16, hidden=32, num_layers=2, output=4
    B, T, INPUT, HIDDEN, LAYERS, OUT = 2, 8, 16, 32, 2, 4

    key = jax.random.PRNGKey(0)
    k_x, k_p = jax.random.split(key)
    x = jax.random.normal(k_x, (B, T, INPUT), jnp.float32)
    params = make_params(k_p, INPUT, HIDDEN, LAYERS, OUT)

    out = bilstm_predictor(x, params)
    out = jax.block_until_ready(out)
    assert out.shape == (B, OUT), out.shape

    ref = jax.block_until_ready(reference_forward(x, params))
    assert jnp.allclose(out, ref, rtol=5e-3, atol=5e-3), (out, ref)

    print("KERNEL_OK")
</pallas_src>

<mosaic_0001>
module attributes {stable_mosaic.version = 11 : i64} {
  func.func @bilstm_fused_kernel(%arg0: memref<64x16xf32, #tpu.memory_space<vmem>>, %arg1: memref<2x16x128xf32, #tpu.memory_space<vmem>>, %arg2: memref<2x32x128xf32, #tpu.memory_space<vmem>>, %arg3: memref<2x1x128xf32, #tpu.memory_space<vmem>>, %arg4: memref<2x64x128xf32, #tpu.memory_space<vmem>>, %arg5: memref<2x32x128xf32, #tpu.memory_space<vmem>>, %arg6: memref<2x1x128xf32, #tpu.memory_space<vmem>>, %arg7: memref<2x32x64xf32, #tpu.memory_space<vmem>>, %arg8: memref<1x64xf32, #tpu.memory_space<vmem>>, %arg9: memref<64x4xf32, #tpu.memory_space<vmem>>, %arg10: memref<1x4xf32, #tpu.memory_space<vmem>>, %arg11: memref<8x4xf32, #tpu.memory_space<vmem>>, %arg12: memref<64x64xf32, #tpu.memory_space<vmem>>, %arg13: memref<64x128xf32, #tpu.memory_space<vmem>>, %arg14: memref<64x128xf32, #tpu.memory_space<vmem>>) attributes {dimension_semantics = [], scalar_prefetch = 0 : i64, scratch_operands = 3 : i64, tpu.core_type = #tpu.core_type<tc>} {
    %0 = tpu.iota {dimensions = array<i32: 1>} : vector<8x128xi32>
    %c64_i32 = arith.constant 64 : i32
    %1 = vector.broadcast %c64_i32 : i32 to vector<8x128xi32>
    %2 = arith.cmpi sge, %0, %1 : vector<8x128xi32>
    %c96_i32 = arith.constant 96 : i32
    %3 = vector.broadcast %c96_i32 : i32 to vector<8x128xi32>
    %4 = arith.cmpi slt, %0, %3 : vector<8x128xi32>
    %5 = arith.andi %2, %4 : vector<8x128xi1>
    %c0 = arith.constant 0 : index
    %c0_0 = arith.constant 0 : index
    %6 = vector.load %arg0[%c0, %c0_0] : memref<64x16xf32, #tpu.memory_space<vmem>>, vector<64x16xf32>
    %c0_1 = arith.constant 0 : index
    %c0_2 = arith.constant 0 : index
    %c0_3 = arith.constant 0 : index
    %7 = vector.load %arg1[%c0_1, %c0_2, %c0_3] : memref<2x16x128xf32, #tpu.memory_space<vmem>>, vector<1x16x128xf32>
    %8 = vector.shape_cast %7 : vector<1x16x128xf32> to vector<16x128xf32>
    %cst = arith.constant dense<0.000000e+00> : vector<64x128xf32>
    %9 = tpu.matmul %6, %8, %cst {dimension_numbers = #tpu.dot_dimension_numbers<[1], [0], [0], [1], [0, 0, 1, 1], [], []>} : vector<64x16xf32>, vector<16x128xf32>, vector<64x128xf32> -> vector<64x128xf32>
    %c0_4 = arith.constant 0 : index
    %c0_5 = arith.constant 0 : index
    %c0_6 = arith.constant 0 : index
    %10 = vector.load %arg3[%c0_4, %c0_5, %c0_6] : memref<2x1x128xf32, #tpu.memory_space<vmem>>, vector<1x1x128xf32>
    %11 = vector.shape_cast %10 : vector<1x1x128xf32> to vector<1x128xf32>
    %12 = vector.broadcast %11 : vector<1x128xf32> to vector<64x128xf32>
    %13 = arith.addf %9, %12 : vector<64x128xf32>
    %c0_7 = arith.constant 0 : index
    %c0_8 = arith.constant 0 : index
    %14 = vector.load %arg13[%c0_7, %c0_8] : memref<64x128xf32, #tpu.memory_space<vmem>>, vector<64x128xf32>
    tpu.vector_store %arg13[%c0_7, %c0_8], %13 {strides = array<i32>} : memref<64x128xf32, #tpu.memory_space<vmem>>, vector<64x128xf32>,
    %c1 = arith.constant 1 : index
    %c0_9 = arith.constant 0 : index
    %c0_10 = arith.constant 0 : index
    %15 = vector.load %arg1[%c1, %c0_9, %c0_10] : memref<2x16x128xf32, #tpu.memory_space<vmem>>, vector<1x16x128xf32>
    %16 = vector.shape_cast %15 : vector<1x16x128xf32> to vector<16x128xf32>
    %cst_11 = arith.constant dense<0.000000e+00> : vector<64x128xf32>
    %17 = tpu.matmul %6, %16, %cst_11 {dimension_numbers = #tpu.dot_dimension_numbers<[1], [0], [0], [1], [0, 0, 1, 1], [], []>} : vector<64x16xf32>, vector<16x128xf32>, vector<64x128xf32> -> vector<64x128xf32>
    %c1_12 = arith.constant 1 : index
    %c0_13 = arith.constant 0 : index
    %c0_14 = arith.constant 0 : index
    %18 = vector.load %arg3[%c1_12, %c0_13, %c0_14] : memref<2x1x128xf32, #tpu.memory_space<vmem>>, vector<1x1x128xf32>
    %19 = vector.shape_cast %18 : vector<1x1x128xf32> to vector<1x128xf32>
    %20 = vector.broadcast %19 : vector<1x128xf32> to vector<64x128xf32>
    %21 = arith.addf %17, %20 : vector<64x128xf32>
    %c0_15 = arith.constant 0 : index
    %c0_16 = arith.constant 0 : index
    %22 = vector.load %arg14[%c0_15, %c0_16] : memref<64x128xf32, #tpu.memory_space<vmem>>, vector<64x128xf32>
    tpu.vector_store %arg14[%c0_15, %c0_16], %21 {strides = array<i32>} : memref<64x128xf32, #tpu.memory_space<vmem>>, vector<64x128xf32>,
    %c0_17 = arith.constant 0 : index
    %c0_18 = arith.constant 0 : index
    %c0_19 = arith.constant 0 : index
    %23 = vector.load %arg2[%c0_17, %c0_18, %c0_19] : memref<2x32x128xf32, #tpu.memory_space<vmem>>, vector<1x32x128xf32>
    %24 = vector.shape_cast %23 : vector<1x32x128xf32> to vector<32x128xf32>
    %c1_20 = arith.constant 1 : index
    %c0_21 = arith.constant 0 : index
    %c0_22 = arith.constant 0 : index
    %25 = vector.load %arg2[%c1_20, %c0_21, %c0_22] : memref<2x32x128xf32, #tpu.memory_space<vmem>>, vector<1x32x128xf32>
    %26 = vector.shape_cast %25 : vector<1x32x128xf32> to vector<32x128xf32>
    %cst_23 = arith.constant 0.000000e+00 : f32
    %27 = vector.broadcast %cst_23 : f32 to vector<8x32xf32>
    %c0_i32 = arith.constant 0 : i32
    %c7_i32 = arith.constant 7 : i32
    %28 = arith.subi %c7_i32, %c0_i32 : i32
    %c8_i32 = arith.constant 8 : i32
    %29 = arith.muli %c0_i32, %c8_i32 : i32
    %30 = tpu.assume_multiple %29, 8 : i32
    %c8_i32_24 = arith.constant 8 : i32
    %31 = arith.muli %28, %c8_i32_24 : i32
    %32 = tpu.assume_multiple %31, 8 : i32
    %33 = arith.index_cast %30 : i32 to index
    %c0_25 = arith.constant 0 : index
    %34 = vector.load %arg13[%33, %c0_25] : memref<64x128xf32, #tpu.memory_space<vmem>>, vector<8x128xf32>
    %cst_26 = arith.constant dense<0.000000e+00> : vector<8x128xf32>
    %35 = tpu.matmul %27, %24, %cst_26 {dimension_numbers = #tpu.dot_dimension_numbers<[1], [0], [0], [1], [0, 0, 1, 1], [], []>} : vector<8x32xf32>, vector<32x128xf32>, vector<8x128xf32> -> vector<8x128xf32>
    %36 = arith.addf %34, %35 : vector<8x128xf32>
    %37 = arith.index_cast %32 : i32 to index
    %c0_27 = arith.constant 0 : index
    %38 = vector.load %arg14[%37, %c0_27] : memref<64x128xf32, #tpu.memory_space<vmem>>, vector<8x128xf32>
    %cst_28 = arith.constant dense<0.000000e+00> : vector<8x128xf32>
    %39 = tpu.matmul %27, %26, %cst_28 {dimension_numbers = #tpu.dot_dimension_numbers<[1], [0], [0], [1], [0, 0, 1, 1], [], []>} : vector<8x32xf32>, vector<32x128xf32>, vector<8x128xf32> -> vector<8x128xf32>
    %40 = arith.addf %38, %39 : vector<8x128xf32>
    %41 = arith.negf %36 : vector<8x128xf32>
    %42 = math.exp %41 : vector<8x128xf32>
    %cst_29 = arith.constant 1.000000e+00 : f32
    %43 = vector.broadcast %cst_29 : f32 to vector<8x128xf32>
    %44 = arith.addf %43, %42 : vector<8x128xf32>
    %45 = arith.divf %43, %44 : vector<8x128xf32>
    %46 = math.tanh %36 : vector<8x128xf32>
    %47 = arith.select %5, %46, %45 : vector<8x128xi1>, vector<8x128xf32>
    %48 = vector.extract_strided_slice %47 {offsets = [0, 0], sizes = [8, 32], strides = [1, 1]} : vector<8x128xf32> to vector<8x32xf32>
    %49 = vector.extract_strided_slice %47 {offsets = [0, 32], sizes = [8, 32], strides = [1, 1]} : vector<8x128xf32> to vector<8x32xf32>
    %50 = vector.extract_strided_slice %47 {offsets = [0, 64], sizes = [8, 32], strides = [1, 1]} : vector<8x128xf32> to vector<8x32xf32>
    %51 = vector.extract_strided_slice %47 {offsets = [0, 96], sizes = [8, 32], strides = [1, 1]} : vector<8x128xf32> to vector<8x32xf32>
    %52 = arith.mulf %49, %27 : vector<8x32xf32>
    %53 = arith.mulf %48, %50 : vector<8x32xf32>
    %54 = arith.addf %52, %53 : vector<8x32xf32>
    %55 = math.tanh %54 : vector<8x32xf32>
    %56 = arith.mulf %51, %55 : vector<8x32xf32>
    %57 = arith.negf %40 : vector<8x128xf32>
    %58 = math.exp %57 : vector<8x128xf32>
    %cst_30 = arith.constant 1.000000e+00 : f32
    %59 = vector.broadcast %cst_30 : f32 to vector<8x128xf32>
    %60 = arith.addf %59, %58 : vector<8x128xf32>
    %61 = arith.divf %59, %60 : vector<8x128xf32>
    %62 = math.tanh %40 : vector<8x128xf32>
    %63 = arith.select %5, %62, %61 : vector<8x128xi1>, vector<8x128xf32>
    %64 = vector.extract_strided_slice %63 {offsets = [0, 0], sizes = [8, 32], strides = [1, 1]} : vector<8x128xf32> to vector<8x32xf32>
    %65 = vector.extract_strided_slice %63 {offsets = [0, 32], sizes = [8, 32], strides = [1, 1]} : vector<8x128xf32> to vector<8x32xf32>
    %66 = vector.extract_strided_slice %63 {offsets = [0, 64], sizes = [8, 32], strides = [1, 1]} : vector<8x128xf32> to vector<8x32xf32>
    %67 = vector.extract_strided_slice %63 {offsets = [0, 96], sizes = [8, 32], strides = [1, 1]} : vector<8x128xf32> to vector<8x32xf32>
    %68 = arith.mulf %65, %27 : vector<8x32xf32>
    %69 = arith.mulf %64, %66 : vector<8x32xf32>
    %70 = arith.addf %68, %69 : vector<8x32xf32>
    %71 = math.tanh %70 : vector<8x32xf32>
    %72 = arith.mulf %67, %71 : vector<8x32xf32>
    %73 = arith.index_cast %30 : i32 to index
    %c0_31 = arith.constant 0 : index
    %74 = vector.load %arg12[%73, %c0_31] : memref<64x64xf32, #tpu.memory_space<vmem>>, vector<8x32xf32>
    tpu.vector_store %arg12[%73, %c0_31], %56 {strides = array<i32>} : memref<64x64xf32, #tpu.memory_space<vmem>>, vector<8x32xf32>,
    %75 = arith.index_cast %32 : i32 to index
    %c32 = arith.constant 32 : index
    %76 = vector.load %arg12[%75, %c32] : memref<64x64xf32, #tpu.memory_space<vmem>>, vector<8x32xf32>
    tpu.vector_store %arg12[%75, %c32], %72 {strides = array<i32>} : memref<64x64xf32, #tpu.memory_space<vmem>>, vector<8x32xf32>,
    %c1_i32 = arith.constant 1 : i32
    %c7_i32_32 = arith.constant 7 : i32
    %77 = arith.subi %c7_i32_32, %c1_i32 : i32
    %c8_i32_33 = arith.constant 8 : i32
    %78 = arith.muli %c1_i32, %c8_i32_33 : i32
    %79 = tpu.assume_multiple %78, 8 : i32
    %c8_i32_34 = arith.constant 8 : i32
    %80 = arith.muli %77, %c8_i32_34 : i32
    %81 = tpu.assume_multiple %80, 8 : i32
    %82 = arith.index_cast %79 : i32 to index
    %c0_35 = arith.constant 0 : index
    %83 = vector.load %arg13[%82, %c0_35] : memref<64x128xf32, #tpu.memory_space<vmem>>, vector<8x128xf32>
    %cst_36 = arith.constant dense<0.000000e+00> : vector<8x128xf32>
    %84 = tpu.matmul %56, %24, %cst_36 {dimension_numbers = #tpu.dot_dimension_numbers<[1], [0], [0], [1], [0, 0, 1, 1], [], []>} : vector<8x32xf32>, vector<32x128xf32>, vector<8x128xf32> -> vector<8x128xf32>
    %85 = arith.addf %83, %84 : vector<8x128xf32>
    %86 = arith.index_cast %81 : i32 to index
    %c0_37 = arith.constant 0 : index
    %87 = vector.load %arg14[%86, %c0_37] : memref<64x128xf32, #tpu.memory_space<vmem>>, vector<8x128xf32>
    %cst_38 = arith.constant dense<0.000000e+00> : vector<8x128xf32>
    %88 = tpu.matmul %72, %26, %cst_38 {dimension_numbers = #tpu.dot_dimension_numbers<[1], [0], [0], [1], [0, 0, 1, 1], [], []>} : vector<8x32xf32>, vector<32x128xf32>, vector<8x128xf32> -> vector<8x128xf32>
    %89 = arith.addf %87, %88 : vector<8x128xf32>
    %90 = arith.negf %85 : vector<8x128xf32>
    %91 = math.exp %90 : vector<8x128xf32>
    %cst_39 = arith.constant 1.000000e+00 : f32
    %92 = vector.broadcast %cst_39 : f32 to vector<8x128xf32>
    %93 = arith.addf %92, %91 : vector<8x128xf32>
    %94 = arith.divf %92, %93 : vector<8x128xf32>
    %95 = math.tanh %85 : vector<8x128xf32>
    %96 = arith.select %5, %95, %94 : vector<8x128xi1>, vector<8x128xf32>
    %97 = vector.extract_strided_slice %96 {offsets = [0, 0], sizes = [8, 32], strides = [1, 1]} : vector<8x128xf32> to vector<8x32xf32>
    %98 = vector.extract_strided_slice %96 {offsets = [0, 32], sizes = [8, 32], strides = [1, 1]} : vector<8x128xf32> to vector<8x32xf32>
    %99 = vector.extract_strided_slice %96 {offsets = [0, 64], sizes = [8, 32], strides = [1, 1]} : vector<8x128xf32> to vector<8x32xf32>
    %100 = vector.extract_strided_slice %96 {offsets = [0, 96], sizes = [8, 32], strides = [1, 1]} : vector<8x128xf32> to vector<8x32xf32>
    %101 = arith.mulf %98, %54 : vector<8x32xf32>
    %102 = arith.mulf %97, %99 : vector<8x32xf32>
    %103 = arith.addf %101, %102 : vector<8x32xf32>
    %104 = math.tanh %103 : vector<8x32xf32>
    %105 = arith.mulf %100, %104 : vector<8x32xf32>
    %106 = arith.negf %89 : vector<8x128xf32>
    %107 = math.exp %106 : vector<8x128xf32>
    %cst_40 = arith.constant 1.000000e+00 : f32
    %108 = vector.broadcast %cst_40 : f32 to vector<8x128xf32>
    %109 = arith.addf %108, %107 : vector<8x128xf32>
    %110 = arith.divf %108, %109 : vector<8x128xf32>
    %111 = math.tanh %89 : vector<8x128xf32>
    %112 = arith.select %5, %111, %110 : vector<8x128xi1>, vector<8x128xf32>
    %113 = vector.extract_strided_slice %112 {offsets = [0, 0], sizes = [8, 32], strides = [1, 1]} : vector<8x128xf32> to vector<8x32xf32>
    %114 = vector.extract_strided_slice %112 {offsets = [0, 32], sizes = [8, 32], strides = [1, 1]} : vector<8x128xf32> to vector<8x32xf32>
    %115 = vector.extract_strided_slice %112 {offsets = [0, 64], sizes = [8, 32], strides = [1, 1]} : vector<8x128xf32> to vector<8x32xf32>
    %116 = vector.extract_strided_slice %112 {offsets = [0, 96], sizes = [8, 32], strides = [1, 1]} : vector<8x128xf32> to vector<8x32xf32>
    %117 = arith.mulf %114, %70 : vector<8x32xf32>
    %118 = arith.mulf %113, %115 : vector<8x32xf32>
    %119 = arith.addf %117, %118 : vector<8x32xf32>
    %120 = math.tanh %119 : vector<8x32xf32>
    %121 = arith.mulf %116, %120 : vector<8x32xf32>
    %122 = arith.index_cast %79 : i32 to index
    %c0_41 = arith.constant 0 : index
    %123 = vector.load %arg12[%122, %c0_41] : memref<64x64xf32, #tpu.memory_space<vmem>>, vector<8x32xf32>
    tpu.vector_store %arg12[%122, %c0_41], %105 {strides = array<i32>} : memref<64x64xf32, #tpu.memory_space<vmem>>, vector<8x32xf32>,
    %124 = arith.index_cast %81 : i32 to index
    %c32_42 = arith.constant 32 : index
    %125 = vector.load %arg12[%124, %c32_42] : memref<64x64xf32, #tpu.memory_space<vmem>>, vector<8x32xf32>
    tpu.vector_store %arg12[%124, %c32_42], %121 {strides = array<i32>} : memref<64x64xf32, #tpu.memory_space<vmem>>, vector<8x32xf32>,
    %c2_i32 = arith.constant 2 : i32
    %c7_i32_43 = arith.constant 7 : i32
    %126 = arith.subi %c7_i32_43, %c2_i32 : i32
    %c8_i32_44 = arith.constant 8 : i32
    %127 = arith.muli %c2_i32, %c8_i32_44 : i32
    %128 = tpu.assume_multiple %127, 8 : i32
    %c8_i32_45 = arith.constant 8 : i32
    %129 = arith.muli %126, %c8_i32_45 : i32
    %130 = tpu.assume_multiple %129, 8 : i32
    %131 = arith.index_cast %128 : i32 to index
    %c0_46 = arith.constant 0 : index
    %132 = vector.load %arg13[%131, %c0_46] : memref<64x128xf32, #tpu.memory_space<vmem>>, vector<8x128xf32>
    %cst_47 = arith.constant dense<0.000000e+00> : vector<8x128xf32>
    %133 = tpu.matmul %105, %24, %cst_47 {dimension_numbers = #tpu.dot_dimension_numbers<[1], [0], [0], [1], [0, 0, 1, 1], [], []>} : vector<8x32xf32>, vector<32x128xf32>, vector<8x128xf32> -> vector<8x128xf32>
    %134 = arith.addf %132, %133 : vector<8x128xf32>
    %135 = arith.index_cast %130 : i32 to index
    %c0_48 = arith.constant 0 : index
    %136 = vector.load %arg14[%135, %c0_48] : memref<64x128xf32, #tpu.memory_space<vmem>>, vector<8x128xf32>
    %cst_49 = arith.constant dense<0.000000e+00> : vector<8x128xf32>
    %137 = tpu.matmul %121, %26, %cst_49 {dimension_numbers = #tpu.dot_dimension_numbers<[1], [0], [0], [1], [0, 0, 1, 1], [], []>} : vector<8x32xf32>, vector<32x128xf32>, vector<8x128xf32> -> vector<8x128xf32>
    %138 = arith.addf %136, %137 : vector<8x128xf32>
    %139 = arith.negf %134 : vector<8x128xf32>
    %140 = math.exp %139 : vector<8x128xf32>
    %cst_50 = arith.constant 1.000000e+00 : f32
    %141 = vector.broadcast %cst_50 : f32 to vector<8x128xf32>
    %142 = arith.addf %141, %140 : vector<8x128xf32>
    %143 = arith.divf %141, %142 : vector<8x128xf32>
    %144 = math.tanh %134 : vector<8x128xf32>
    %145 = arith.select %5, %144, %143 : vector<8x128xi1>, vector<8x128xf32>
    %146 = vector.extract_strided_slice %145 {offsets = [0, 0], sizes = [8, 32], strides = [1, 1]} : vector<8x128xf32> to vector<8x32xf32>
    %147 = vector.extract_strided_slice %145 {offsets = [0, 32], sizes = [8, 32], strides = [1, 1]} : vector<8x128xf32> to vector<8x32xf32>
    %148 = vector.extract_strided_slice %145 {offsets = [0, 64], sizes = [8, 32], strides = [1, 1]} : vector<8x128xf32> to vector<8x32xf32>
    %149 = vector.extract_strided_slice %145 {offsets = [0, 96], sizes = [8, 32], strides = [1, 1]} : vector<8x128xf32> to vector<8x32xf32>
    %150 = arith.mulf %147, %103 : vector<8x32xf32>
    %151 = arith.mulf %146, %148 : vector<8x32xf32>
    %152 = arith.addf %150, %151 : vector<8x32xf32>
    %153 = math.tanh %152 : vector<8x32xf32>
    %154 = arith.mulf %149, %153 : vector<8x32xf32>
    %155 = arith.negf %138 : vector<8x128xf32>
    %156 = math.exp %155 : vector<8x128xf32>
    %cst_51 = arith.constant 1.000000e+00 : f32
    %157 = vector.broadcast %cst_51 : f32 to vector<8x128xf32>
    %158 = arith.addf %157, %156 : vector<8x128xf32>
    %159 = arith.divf %157, %158 : vector<8x128xf32>
    %160 = math.tanh %138 : vector<8x128xf32>
    %161 = arith.select %5, %160, %159 : vector<8x128xi1>, vector<8x128xf32>
    %162 = vector.extract_strided_slice %161 {offsets = [0, 0], sizes = [8, 32], strides = [1, 1]} : vector<8x128xf32> to vector<8x32xf32>
    %163 = vector.extract_strided_slice %161 {offsets = [0, 32], sizes = [8, 32], strides = [1, 1]} : vector<8x128xf32> to vector<8x32xf32>
    %164 = vector.extract_strided_slice %161 {offsets = [0, 64], sizes = [8, 32], strides = [1, 1]} : vector<8x128xf32> to vector<8x32xf32>
    %165 = vector.extract_strided_slice %161 {offsets = [0, 96], sizes = [8, 32], strides = [1, 1]} : vector<8x128xf32> to vector<8x32xf32>
    %166 = arith.mulf %163, %119 : vector<8x32xf32>
    %167 = arith.mulf %162, %164 : vector<8x32xf32>
    %168 = arith.addf %166, %167 : vector<8x32xf32>
    %169 = math.tanh %168 : vector<8x32xf32>
    %170 = arith.mulf %165, %169 : vector<8x32xf32>
    %171 = arith.index_cast %128 : i32 to index
    %c0_52 = arith.constant 0 : index
    %172 = vector.load %arg12[%171, %c0_52] : memref<64x64xf32, #tpu.memory_space<vmem>>, vector<8x32xf32>
    tpu.vector_store %arg12[%171, %c0_52], %154 {strides = array<i32>} : memref<64x64xf32, #tpu.memory_space<vmem>>, vector<8x32xf32>,
    %173 = arith.index_cast %130 : i32 to index
    %c32_53 = arith.constant 32 : index
    %174 = vector.load %arg12[%173, %c32_53] : memref<64x64xf32, #tpu.memory_space<vmem>>, vector<8x32xf32>
    tpu.vector_store %arg12[%173, %c32_53], %170 {strides = array<i32>} : memref<64x64xf32, #tpu.memory_space<vmem>>, vector<8x32xf32>,
    %c3_i32 = arith.constant 3 : i32
    %c7_i32_54 = arith.constant 7 : i32
    %175 = arith.subi %c7_i32_54, %c3_i32 : i32
    %c8_i32_55 = arith.constant 8 : i32
    %176 = arith.muli %c3_i32, %c8_i32_55 : i32
    %177 = tpu.assume_multiple %176, 8 : i32
    %c8_i32_56 = arith.constant 8 : i32
    %178 = arith.muli %175, %c8_i32_56 : i32
    %179 = tpu.assume_multiple %178, 8 : i32
    %180 = arith.index_cast %177 : i32 to index
    %c0_57 = arith.constant 0 : index
    %181 = vector.load %arg13[%180, %c0_57] : memref<64x128xf32, #tpu.memory_space<vmem>>, vector<8x128xf32>
    %cst_58 = arith.constant dense<0.000000e+00> : vector<8x128xf32>
    %182 = tpu.matmul %154, %24, %cst_58 {dimension_numbers = #tpu.dot_dimension_numbers<[1], [0], [0], [1], [0, 0, 1, 1], [], []>} : vector<8x32xf32>, vector<32x128xf32>, vector<8x128xf32> -> vector<8x128xf32>
    %183 = arith.addf %181, %182 : vector<8x128xf32>
    %184 = arith.index_cast %179 : i32 to index
    %c0_59 = arith.constant 0 : index
    %185 = vector.load %arg14[%184, %c0_59] : memref<64x128xf32, #tpu.memory_space<vmem>>, vector<8x128xf32>
    %cst_60 = arith.constant dense<0.000000e+00> : vector<8x128xf32>
    %186 = tpu.matmul %170, %26, %cst_60 {dimension_numbers = #tpu.dot_dimension_numbers<[1], [0], [0], [1], [0, 0, 1, 1], [], []>} : vector<8x32xf32>, vector<32x128xf32>, vector<8x128xf32> -> vector<8x128xf32>
    %187 = arith.addf %185, %186 : vector<8x128xf32>
    %188 = arith.negf %183 : vector<8x128xf32>
    %189 = math.exp %188 : vector<8x128xf32>
    %cst_61 = arith.constant 1.000000e+00 : f32
    %190 = vector.broadcast %cst_61 : f32 to vector<8x128xf32>
    %191 = arith.addf %190, %189 : vector<8x128xf32>
    %192 = arith.divf %190, %191 : vector<8x128xf32>
    %193 = math.tanh %183 : vector<8x128xf32>
    %194 = arith.select %5, %193, %192 : vector<8x128xi1>, vector<8x128xf32>
    %195 = vector.extract_strided_slice %194 {offsets = [0, 0], sizes = [8, 32], strides = [1, 1]} : vector<8x128xf32> to vector<8x32xf32>
    %196 = vector.extract_strided_slice %194 {offsets = [0, 32], sizes = [8, 32], strides = [1, 1]} : vector<8x128xf32> to vector<8x32xf32>
    %197 = vector.extract_strided_slice %194 {offsets = [0, 64], sizes = [8, 32], strides = [1, 1]} : vector<8x128xf32> to vector<8x32xf32>
    %198 = vector.extract_strided_slice %194 {offsets = [0, 96], sizes = [8, 32], strides = [1, 1]} : vector<8x128xf32> to vector<8x32xf32>
    %199 = arith.mulf %196, %152 : vector<8x32xf32>
    %200 = arith.mulf %195, %197 : vector<8x32xf32>
    %201 = arith.addf %199, %200 : vector<8x32xf32>
    %202 = math.tanh %201 : vector<8x32xf32>
    %203 = arith.mulf %198, %202 : vector<8x32xf32>
    %204 = arith.negf %187 : vector<8x128xf32>
    %205 = math.exp %204 : vector<8x128xf32>
    %cst_62 = arith.constant 1.000000e+00 : f32
    %206 = vector.broadcast %cst_62 : f32 to vector<8x128xf32>
    %207 = arith.addf %206, %205 : vector<8x128xf32>
    %208 = arith.divf %206, %207 : vector<8x128xf32>
    %209 = math.tanh %187 : vector<8x128xf32>
    %210 = arith.select %5, %209, %208 : vector<8x128xi1>, vector<8x128xf32>
    %211 = vector.extract_strided_slice %210 {offsets = [0, 0], sizes = [8, 32], strides = [1, 1]} : vector<8x128xf32> to vector<8x32xf32>
    %212 = vector.extract_strided_slice %210 {offsets = [0, 32], sizes = [8, 32], strides = [1, 1]} : vector<8x128xf32> to vector<8x32xf32>
    %213 = vector.extract_strided_slice %210 {offsets = [0, 64], sizes = [8, 32], strides = [1, 1]} : vector<8x128xf32> to vector<8x32xf32>
    %214 = vector.extract_strided_slice %210 {offsets = [0, 96], sizes = [8, 32], strides = [1, 1]} : vector<8x128xf32> to vector<8x32xf32>
    %215 = arith.mulf %212, %168 : vector<8x32xf32>
    %216 = arith.mulf %211, %213 : vector<8x32xf32>
    %217 = arith.addf %215, %216 : vector<8x32xf32>
    %218 = math.tanh %217 : vector<8x32xf32>
    %219 = arith.mulf %214, %218 : vector<8x32xf32>
    %220 = arith.index_cast %177 : i32 to index
    %c0_63 = arith.constant 0 : index
    %221 = vector.load %arg12[%220, %c0_63] : memref<64x64xf32, #tpu.memory_space<vmem>>, vector<8x32xf32>
    tpu.vector_store %arg12[%220, %c0_63], %203 {strides = array<i32>} : memref<64x64xf32, #tpu.memory_space<vmem>>, vector<8x32xf32>,
    %222 = arith.index_cast %179 : i32 to index
    %c32_64 = arith.constant 32 : index
    %223 = vector.load %arg12[%222, %c32_64] : memref<64x64xf32, #tpu.memory_space<vmem>>, vector<8x32xf32>
    tpu.vector_store %arg12[%222, %c32_64], %219 {strides = array<i32>} : memref<64x64xf32, #tpu.memory_space<vmem>>, vector<8x32xf32>,
    %c4_i32 = arith.constant 4 : i32
    %c7_i32_65 = arith.constant 7 : i32
    %224 = arith.subi %c7_i32_65, %c4_i32 : i32
    %c8_i32_66 = arith.constant 8 : i32
    %225 = arith.muli %c4_i32, %c8_i32_66 : i32
    %226 = tpu.assume_multiple %225, 8 : i32
    %c8_i32_67 = arith.constant 8 : i32
    %227 = arith.muli %224, %c8_i32_67 : i32
    %228 = tpu.assume_multiple %227, 8 : i32
    %229 = arith.index_cast %226 : i32 to index
    %c0_68 = arith.constant 0 : index
    %230 = vector.load %arg13[%229, %c0_68] : memref<64x128xf32, #tpu.memory_space<vmem>>, vector<8x128xf32>
    %cst_69 = arith.constant dense<0.000000e+00> : vector<8x128xf32>
    %231 = tpu.matmul %203, %24, %cst_69 {dimension_numbers = #tpu.dot_dimension_numbers<[1], [0], [0], [1], [0, 0, 1, 1], [], []>} : vector<8x32xf32>, vector<32x128xf32>, vector<8x128xf32> -> vector<8x128xf32>
    %232 = arith.addf %230, %231 : vector<8x128xf32>
    %233 = arith.index_cast %228 : i32 to index
    %c0_70 = arith.constant 0 : index
    %234 = vector.load %arg14[%233, %c0_70] : memref<64x128xf32, #tpu.memory_space<vmem>>, vector<8x128xf32>
    %cst_71 = arith.constant dense<0.000000e+00> : vector<8x128xf32>
    %235 = tpu.matmul %219, %26, %cst_71 {dimension_numbers = #tpu.dot_dimension_numbers<[1], [0], [0], [1], [0, 0, 1, 1], [], []>} : vector<8x32xf32>, vector<32x128xf32>, vector<8x128xf32> -> vector<8x128xf32>
    %236 = arith.addf %234, %235 : vector<8x128xf32>
    %237 = arith.negf %232 : vector<8x128xf32>
    %238 = math.exp %237 : vector<8x128xf32>
    %cst_72 = arith.constant 1.000000e+00 : f32
    %239 = vector.broadcast %cst_72 : f32 to vector<8x128xf32>
    %240 = arith.addf %239, %238 : vector<8x128xf32>
    %241 = arith.divf %239, %240 : vector<8x128xf32>
    %242 = math.tanh %232 : vector<8x128xf32>
    %243 = arith.select %5, %242, %241 : vector<8x128xi1>, vector<8x128xf32>
    %244 = vector.extract_strided_slice %243 {offsets = [0, 0], sizes = [8, 32], strides = [1, 1]} : vector<8x128xf32> to vector<8x32xf32>
    %245 = vector.extract_strided_slice %243 {offsets = [0, 32], sizes = [8, 32], strides = [1, 1]} : vector<8x128xf32> to vector<8x32xf32>
    %246 = vector.extract_strided_slice %243 {offsets = [0, 64], sizes = [8, 32], strides = [1, 1]} : vector<8x128xf32> to vector<8x32xf32>
    %247 = vector.extract_strided_slice %243 {offsets = [0, 96], sizes = [8, 32], strides = [1, 1]} : vector<8x128xf32> to vector<8x32xf32>
    %248 = arith.mulf %245, %201 : vector<8x32xf32>
    %249 = arith.mulf %244, %246 : vector<8x32xf32>
    %250 = arith.addf %248, %249 : vector<8x32xf32>
    %251 = math.tanh %250 : vector<8x32xf32>
    %252 = arith.mulf %247, %251 : vector<8x32xf32>
    %253 = arith.negf %236 : vector<8x128xf32>
    %254 = math.exp %253 : vector<8x128xf32>
    %cst_73 = arith.constant 1.000000e+00 : f32
    %255 = vector.broadcast %cst_73 : f32 to vector<8x128xf32>
    %256 = arith.addf %255, %254 : vector<8x128xf32>
    %257 = arith.divf %255, %256 : vector<8x128xf32>
    %258 = math.tanh %236 : vector<8x128xf32>
    %259 = arith.select %5, %258, %257 : vector<8x128xi1>, vector<8x128xf32>
    %260 = vector.extract_strided_slice %259 {offsets = [0, 0], sizes = [8, 32], strides = [1, 1]} : vector<8x128xf32> to vector<8x32xf32>
    %261 = vector.extract_strided_slice %259 {offsets = [0, 32], sizes = [8, 32], strides = [1, 1]} : vector<8x128xf32> to vector<8x32xf32>
    %262 = vector.extract_strided_slice %259 {offsets = [0, 64], sizes = [8, 32], strides = [1, 1]} : vector<8x128xf32> to vector<8x32xf32>
    %263 = vector.extract_strided_slice %259 {offsets = [0, 96], sizes = [8, 32], strides = [1, 1]} : vector<8x128xf32> to vector<8x32xf32>
    %264 = arith.mulf %261, %217 : vector<8x32xf32>
    %265 = arith.mulf %260, %262 : vector<8x32xf32>
    %266 = arith.addf %264, %265 : vector<8x32xf32>
    %267 = math.tanh %266 : vector<8x32xf32>
    %268 = arith.mulf %263, %267 : vector<8x32xf32>
    %269 = arith.index_cast %226 : i32 to index
    %c0_74 = arith.constant 0 : index
    %270 = vector.load %arg12[%269, %c0_74] : memref<64x64xf32, #tpu.memory_space<vmem>>, vector<8x32xf32>
    tpu.vector_store %arg12[%269, %c0_74], %252 {strides = array<i32>} : memref<64x64xf32, #tpu.memory_space<vmem>>, vector<8x32xf32>,
    %271 = arith.index_cast %228 : i32 to index
    %c32_75 = arith.constant 32 : index
    %272 = vector.load %arg12[%271, %c32_75] : memref<64x64xf32, #tpu.memory_space<vmem>>, vector<8x32xf32>
    tpu.vector_store %arg12[%271, %c32_75], %268 {strides = array<i32>} : memref<64x64xf32, #tpu.memory_space<vmem>>, vector<8x32xf32>,
    %c5_i32 = arith.constant 5 : i32
    %c7_i32_76 = arith.constant 7 : i32
    %273 = arith.subi %c7_i32_76, %c5_i32 : i32
    %c8_i32_77 = arith.constant 8 : i32
    %274 = arith.muli %c5_i32, %c8_i32_77 : i32
    %275 = tpu.assume_multiple %274, 8 : i32
    %c8_i32_78 = arith.constant 8 : i32
    %276 = arith.muli %273, %c8_i32_78 : i32
    %277 = tpu.assume_multiple %276, 8 : i32
    %278 = arith.index_cast %275 : i32 to index
    %c0_79 = arith.constant 0 : index
    %279 = vector.load %arg13[%278, %c0_79] : memref<64x128xf32, #tpu.memory_space<vmem>>, vector<8x128xf32>
    %cst_80 = arith.constant dense<0.000000e+00> : vector<8x128xf32>
    %280 = tpu.matmul %252, %24, %cst_80 {dimension_numbers = #tpu.dot_dimension_numbers<[1], [0], [0], [1], [0, 0, 1, 1], [], []>} : vector<8x32xf32>, vector<32x128xf32>, vector<8x128xf32> -> vector<8x128xf32>
    %281 = arith.addf %279, %280 : vector<8x128xf32>
    %282 = arith.index_cast %277 : i32 to index
    %c0_81 = arith.constant 0 : index
    %283 = vector.load %arg14[%282, %c0_81] : memref<64x128xf32, #tpu.memory_space<vmem>>, vector<8x128xf32>
    %cst_82 = arith.constant dense<0.000000e+00> : vector<8x128xf32>
    %284 = tpu.matmul %268, %26, %cst_82 {dimension_numbers = #tpu.dot_dimension_numbers<[1], [0], [0], [1], [0, 0, 1, 1], [], []>} : vector<8x32xf32>, vector<32x128xf32>, vector<8x128xf32> -> vector<8x128xf32>
    %285 = arith.addf %283, %284 : vector<8x128xf32>
    %286 = arith.negf %281 : vector<8x128xf32>
    %287 = math.exp %286 : vector<8x128xf32>
    %cst_83 = arith.constant 1.000000e+00 : f32
    %288 = vector.broadcast %cst_83 : f32 to vector<8x128xf32>
    %289 = arith.addf %288, %287 : vector<8x128xf32>
    %290 = arith.divf %288, %289 : vector<8x128xf32>
    %291 = math.tanh %281 : vector<8x128xf32>
    %292 = arith.select %5, %291, %290 : vector<8x128xi1>, vector<8x128xf32>
    %293 = vector.extract_strided_slice %292 {offsets = [0, 0], sizes = [8, 32], strides = [1, 1]} : vector<8x128xf32> to vector<8x32xf32>
    %294 = vector.extract_strided_slice %292 {offsets = [0, 32], sizes = [8, 32], strides = [1, 1]} : vector<8x128xf32> to vector<8x32xf32>
    %295 = vector.extract_strided_slice %292 {offsets = [0, 64], sizes = [8, 32], strides = [1, 1]} : vector<8x128xf32> to vector<8x32xf32>
    %296 = vector.extract_strided_slice %292 {offsets = [0, 96], sizes = [8, 32], strides = [1, 1]} : vector<8x128xf32> to vector<8x32xf32>
    %297 = arith.mulf %294, %250 : vector<8x32xf32>
    %298 = arith.mulf %293, %295 : vector<8x32xf32>
    %299 = arith.addf %297, %298 : vector<8x32xf32>
    %300 = math.tanh %299 : vector<8x32xf32>
    %301 = arith.mulf %296, %300 : vector<8x32xf32>
    %302 = arith.negf %285 : vector<8x128xf32>
    %303 = math.exp %302 : vector<8x128xf32>
    %cst_84 = arith.constant 1.000000e+00 : f32
    %304 = vector.broadcast %cst_84 : f32 to vector<8x128xf32>
    %305 = arith.addf %304, %303 : vector<8x128xf32>
    %306 = arith.divf %304, %305 : vector<8x128xf32>
    %307 = math.tanh %285 : vector<8x128xf32>
    %308 = arith.select %5, %307, %306 : vector<8x128xi1>, vector<8x128xf32>
    %309 = vector.extract_strided_slice %308 {offsets = [0, 0], sizes = [8, 32], strides = [1, 1]} : vector<8x128xf32> to vector<8x32xf32>
    %310 = vector.extract_strided_slice %308 {offsets = [0, 32], sizes = [8, 32], strides = [1, 1]} : vector<8x128xf32> to vector<8x32xf32>
    %311 = vector.extract_strided_slice %308 {offsets = [0, 64], sizes = [8, 32], strides = [1, 1]} : vector<8x128xf32> to vector<8x32xf32>
    %312 = vector.extract_strided_slice %308 {offsets = [0, 96], sizes = [8, 32], strides = [1, 1]} : vector<8x128xf32> to vector<8x32xf32>
    %313 = arith.mulf %310, %266 : vector<8x32xf32>
    %314 = arith.mulf %309, %311 : vector<8x32xf32>
    %315 = arith.addf %313, %314 : vector<8x32xf32>
    %316 = math.tanh %315 : vector<8x32xf32>
    %317 = arith.mulf %312, %316 : vector<8x32xf32>
    %318 = arith.index_cast %275 : i32 to index
    %c0_85 = arith.constant 0 : index
    %319 = vector.load %arg12[%318, %c0_85] : memref<64x64xf32, #tpu.memory_space<vmem>>, vector<8x32xf32>
    tpu.vector_store %arg12[%318, %c0_85], %301 {strides = array<i32>} : memref<64x64xf32, #tpu.memory_space<vmem>>, vector<8x32xf32>,
    %320 = arith.index_cast %277 : i32 to index
    %c32_86 = arith.constant 32 : index
    %321 = vector.load %arg12[%320, %c32_86] : memref<64x64xf32, #tpu.memory_space<vmem>>, vector<8x32xf32>
    tpu.vector_store %arg12[%320, %c32_86], %317 {strides = array<i32>} : memref<64x64xf32, #tpu.memory_space<vmem>>, vector<8x32xf32>,
    %c6_i32 = arith.constant 6 : i32
    %c7_i32_87 = arith.constant 7 : i32
    %322 = arith.subi %c7_i32_87, %c6_i32 : i32
    %c8_i32_88 = arith.constant 8 : i32
    %323 = arith.muli %c6_i32, %c8_i32_88 : i32
    %324 = tpu.assume_multiple %323, 8 : i32
    %c8_i32_89 = arith.constant 8 : i32
    %325 = arith.muli %322, %c8_i32_89 : i32
    %326 = tpu.assume_multiple %325, 8 : i32
    %327 = arith.index_cast %324 : i32 to index
    %c0_90 = arith.constant 0 : index
    %328 = vector.load %arg13[%327, %c0_90] : memref<64x128xf32, #tpu.memory_space<vmem>>, vector<8x128xf32>
    %cst_91 = arith.constant dense<0.000000e+00> : vector<8x128xf32>
    %329 = tpu.matmul %301, %24, %cst_91 {dimension_numbers = #tpu.dot_dimension_numbers<[1], [0], [0], [1], [0, 0, 1, 1], [], []>} : vector<8x32xf32>, vector<32x128xf32>, vector<8x128xf32> -> vector<8x128xf32>
    %330 = arith.addf %328, %329 : vector<8x128xf32>
    %331 = arith.index_cast %326 : i32 to index
    %c0_92 = arith.constant 0 : index
    %332 = vector.load %arg14[%331, %c0_92] : memref<64x128xf32, #tpu.memory_space<vmem>>, vector<8x128xf32>
    %cst_93 = arith.constant dense<0.000000e+00> : vector<8x128xf32>
    %333 = tpu.matmul %317, %26, %cst_93 {dimension_numbers = #tpu.dot_dimension_numbers<[1], [0], [0], [1], [0, 0, 1, 1], [], []>} : vector<8x32xf32>, vector<32x128xf32>, vector<8x128xf32> -> vector<8x128xf32>
    %334 = arith.addf %332, %333 : vector<8x128xf32>
    %335 = arith.negf %330 : vector<8x128xf32>
    %336 = math.exp %335 : vector<8x128xf32>
    %cst_94 = arith.constant 1.000000e+00 : f32
    %337 = vector.broadcast %cst_94 : f32 to vector<8x128xf32>
    %338 = arith.addf %337, %336 : vector<8x128xf32>
    %339 = arith.divf %337, %338 : vector<8x128xf32>
    %340 = math.tanh %330 : vector<8x128xf32>
    %341 = arith.select %5, %340, %339 : vector<8x128xi1>, vector<8x128xf32>
    %342 = vector.extract_strided_slice %341 {offsets = [0, 0], sizes = [8, 32], strides = [1, 1]} : vector<8x128xf32> to vector<8x32xf32>
    %343 = vector.extract_strided_slice %341 {offsets = [0, 32], sizes = [8, 32], strides = [1, 1]} : vector<8x128xf32> to vector<8x32xf32>
    %344 = vector.extract_strided_slice %341 {offsets = [0, 64], sizes = [8, 32], strides = [1, 1]} : vector<8x128xf32> to vector<8x32xf32>
    %345 = vector.extract_strided_slice %341 {offsets = [0, 96], sizes = [8, 32], strides = [1, 1]} : vector<8x128xf32> to vector<8x32xf32>
    %346 = arith.mulf %343, %299 : vector<8x32xf32>
    %347 = arith.mulf %342, %344 : vector<8x32xf32>
    %348 = arith.addf %346, %347 : vector<8x32xf32>
    %349 = math.tanh %348 : vector<8x32xf32>
    %350 = arith.mulf %345, %349 : vector<8x32xf32>
    %351 = arith.negf %334 : vector<8x128xf32>
    %352 = math.exp %351 : vector<8x128xf32>
    %cst_95 = arith.constant 1.000000e+00 : f32
    %353 = vector.broadcast %cst_95 : f32 to vector<8x128xf32>
    %354 = arith.addf %353, %352 : vector<8x128xf32>
    %355 = arith.divf %353, %354 : vector<8x128xf32>
    %356 = math.tanh %334 : vector<8x128xf32>
    %357 = arith.select %5, %356, %355 : vector<8x128xi1>, vector<8x128xf32>
    %358 = vector.extract_strided_slice %357 {offsets = [0, 0], sizes = [8, 32], strides = [1, 1]} : vector<8x128xf32> to vector<8x32xf32>
    %359 = vector.extract_strided_slice %357 {offsets = [0, 32], sizes = [8, 32], strides = [1, 1]} : vector<8x128xf32> to vector<8x32xf32>
    %360 = vector.extract_strided_slice %357 {offsets = [0, 64], sizes = [8, 32], strides = [1, 1]} : vector<8x128xf32> to vector<8x32xf32>
    %361 = vector.extract_strided_slice %357 {offsets = [0, 96], sizes = [8, 32], strides = [1, 1]} : vector<8x128xf32> to vector<8x32xf32>
    %362 = arith.mulf %359, %315 : vector<8x32xf32>
    %363 = arith.mulf %358, %360 : vector<8x32xf32>
    %364 = arith.addf %362, %363 : vector<8x32xf32>
    %365 = math.tanh %364 : vector<8x32xf32>
    %366 = arith.mulf %361, %365 : vector<8x32xf32>
    %367 = arith.index_cast %324 : i32 to index
    %c0_96 = arith.constant 0 : index
    %368 = vector.load %arg12[%367, %c0_96] : memref<64x64xf32, #tpu.memory_space<vmem>>, vector<8x32xf32>
    tpu.vector_store %arg12[%367, %c0_96], %350 {strides = array<i32>} : memref<64x64xf32, #tpu.memory_space<vmem>>, vector<8x32xf32>,
    %369 = arith.index_cast %326 : i32 to index
    %c32_97 = arith.constant 32 : index
    %370 = vector.load %arg12[%369, %c32_97] : memref<64x64xf32, #tpu.memory_space<vmem>>, vector<8x32xf32>
    tpu.vector_store %arg12[%369, %c32_97], %366 {strides = array<i32>} : memref<64x64xf32, #tpu.memory_space<vmem>>, vector<8x32xf32>,
    %c7_i32_98 = arith.constant 7 : i32
    %c7_i32_99 = arith.constant 7 : i32
    %371 = arith.subi %c7_i32_99, %c7_i32_98 : i32
    %c8_i32_100 = arith.constant 8 : i32
    %372 = arith.muli %c7_i32_98, %c8_i32_100 : i32
    %373 = tpu.assume_multiple %372, 8 : i32
    %c8_i32_101 = arith.constant 8 : i32
    %374 = arith.muli %371, %c8_i32_101 : i32
    %375 = tpu.assume_multiple %374, 8 : i32
    %376 = arith.index_cast %373 : i32 to index
    %c0_102 = arith.constant 0 : index
    %377 = vector.load %arg13[%376, %c0_102] : memref<64x128xf32, #tpu.memory_space<vmem>>, vector<8x128xf32>
    %cst_103 = arith.constant dense<0.000000e+00> : vector<8x128xf32>
    %378 = tpu.matmul %350, %24, %cst_103 {dimension_numbers = #tpu.dot_dimension_numbers<[1], [0], [0], [1], [0, 0, 1, 1], [], []>} : vector<8x32xf32>, vector<32x128xf32>, vector<8x128xf32> -> vector<8x128xf32>
    %379 = arith.addf %377, %378 : vector<8x128xf32>
    %380 = arith.index_cast %375 : i32 to index
    %c0_104 = arith.constant 0 : index
    %381 = vector.load %arg14[%380, %c0_104] : memref<64x128xf32, #tpu.memory_space<vmem>>, vector<8x128xf32>
    %cst_105 = arith.constant dense<0.000000e+00> : vector<8x128xf32>
    %382 = tpu.matmul %366, %26, %cst_105 {dimension_numbers = #tpu.dot_dimension_numbers<[1], [0], [0], [1], [0, 0, 1, 1], [], []>} : vector<8x32xf32>, vector<32x128xf32>, vector<8x128xf32> -> vector<8x128xf32>
    %383 = arith.addf %381, %382 : vector<8x128xf32>
    %384 = arith.negf %379 : vector<8x128xf32>
    %385 = math.exp %384 : vector<8x128xf32>
    %cst_106 = arith.constant 1.000000e+00 : f32
    %386 = vector.broadcast %cst_106 : f32 to vector<8x128xf32>
    %387 = arith.addf %386, %385 : vector<8x128xf32>
    %388 = arith.divf %386, %387 : vector<8x128xf32>
    %389 = math.tanh %379 : vector<8x128xf32>
    %390 = arith.select %5, %389, %388 : vector<8x128xi1>, vector<8x128xf32>
    %391 = vector.extract_strided_slice %390 {offsets = [0, 0], sizes = [8, 32], strides = [1, 1]} : vector<8x128xf32> to vector<8x32xf32>
    %392 = vector.extract_strided_slice %390 {offsets = [0, 32], sizes = [8, 32], strides = [1, 1]} : vector<8x128xf32> to vector<8x32xf32>
    %393 = vector.extract_strided_slice %390 {offsets = [0, 64], sizes = [8, 32], strides = [1, 1]} : vector<8x128xf32> to vector<8x32xf32>
    %394 = vector.extract_strided_slice %390 {offsets = [0, 96], sizes = [8, 32], strides = [1, 1]} : vector<8x128xf32> to vector<8x32xf32>
    %395 = arith.mulf %392, %348 : vector<8x32xf32>
    %396 = arith.mulf %391, %393 : vector<8x32xf32>
    %397 = arith.addf %395, %396 : vector<8x32xf32>
    %398 = math.tanh %397 : vector<8x32xf32>
    %399 = arith.mulf %394, %398 : vector<8x32xf32>
    %400 = arith.negf %383 : vector<8x128xf32>
    %401 = math.exp %400 : vector<8x128xf32>
    %cst_107 = arith.constant 1.000000e+00 : f32
    %402 = vector.broadcast %cst_107 : f32 to vector<8x128xf32>
    %403 = arith.addf %402, %401 : vector<8x128xf32>
    %404 = arith.divf %402, %403 : vector<8x128xf32>
    %405 = math.tanh %383 : vector<8x128xf32>
    %406 = arith.select %5, %405, %404 : vector<8x128xi1>, vector<8x128xf32>
    %407 = vector.extract_strided_slice %406 {offsets = [0, 0], sizes = [8, 32], strides = [1, 1]} : vector<8x128xf32> to vector<8x32xf32>
    %408 = vector.extract_strided_slice %406 {offsets = [0, 32], sizes = [8, 32], strides = [1, 1]} : vector<8x128xf32> to vector<8x32xf32>
    %409 = vector.extract_strided_slice %406 {offsets = [0, 64], sizes = [8, 32], strides = [1, 1]} : vector<8x128xf32> to vector<8x32xf32>
    %410 = vector.extract_strided_slice %406 {offsets = [0, 96], sizes = [8, 32], strides = [1, 1]} : vector<8x128xf32> to vector<8x32xf32>
    %411 = arith.mulf %408, %364 : vector<8x32xf32>
    %412 = arith.mulf %407, %409 : vector<8x32xf32>
    %413 = arith.addf %411, %412 : vector<8x32xf32>
    %414 = math.tanh %413 : vector<8x32xf32>
    %415 = arith.mulf %410, %414 : vector<8x32xf32>
    %416 = arith.index_cast %373 : i32 to index
    %c0_108 = arith.constant 0 : index
    %417 = vector.load %arg12[%416, %c0_108] : memref<64x64xf32, #tpu.memory_space<vmem>>, vector<8x32xf32>
    tpu.vector_store %arg12[%416, %c0_108], %399 {strides = array<i32>} : memref<64x64xf32, #tpu.memory_space<vmem>>, vector<8x32xf32>,
    %418 = arith.index_cast %375 : i32 to index
    %c32_109 = arith.constant 32 : index
    %419 = vector.load %arg12[%418, %c32_109] : memref<64x64xf32, #tpu.memory_space<vmem>>, vector<8x32xf32>
    tpu.vector_store %arg12[%418, %c32_109], %415 {strides = array<i32>} : memref<64x64xf32, #tpu.memory_space<vmem>>, vector<8x32xf32>,
    %c8_i32_110 = arith.constant 8 : i32
    %c0_111 = arith.constant 0 : index
    %c0_112 = arith.constant 0 : index
    %420 = vector.load %arg12[%c0_111, %c0_112] : memref<64x64xf32, #tpu.memory_space<vmem>>, vector<64x64xf32>
    %c0_113 = arith.constant 0 : index
    %c0_114 = arith.constant 0 : index
    %c0_115 = arith.constant 0 : index
    %421 = vector.load %arg4[%c0_113, %c0_114, %c0_115] : memref<2x64x128xf32, #tpu.memory_space<vmem>>, vector<1x64x128xf32>
    %422 = vector.shape_cast %421 : vector<1x64x128xf32> to vector<64x128xf32>
    %cst_116 = arith.constant dense<0.000000e+00> : vector<64x128xf32>
    %423 = tpu.matmul %420, %422, %cst_116 {dimension_numbers = #tpu.dot_dimension_numbers<[1], [0], [0], [1], [0, 0, 1, 1], [], []>} : vector<64x64xf32>, vector<64x128xf32>, vector<64x128xf32> -> vector<64x128xf32>
    %c0_117 = arith.constant 0 : index
    %c0_118 = arith.constant 0 : index
    %c0_119 = arith.constant 0 : index
    %424 = vector.load %arg6[%c0_117, %c0_118, %c0_119] : memref<2x1x128xf32, #tpu.memory_space<vmem>>, vector<1x1x128xf32>
    %425 = vector.shape_cast %424 : vector<1x1x128xf32> to vector<1x128xf32>
    %426 = vector.broadcast %425 : vector<1x128xf32> to vector<64x128xf32>
    %427 = arith.addf %423, %426 : vector<64x128xf32>
    %c0_120 = arith.constant 0 : index
    %c0_121 = arith.constant 0 : index
    %428 = vector.load %arg13[%c0_120, %c0_121] : memref<64x128xf32, #tpu.memory_space<vmem>>, vector<64x128xf32>
    tpu.vector_store %arg13[%c0_120, %c0_121], %427 {strides = array<i32>} : memref<64x128xf32, #tpu.memory_space<vmem>>, vector<64x128xf32>,
    %c1_122 = arith.constant 1 : index
    %c0_123 = arith.constant 0 : index
    %c0_124 = arith.constant 0 : index
    %429 = vector.load %arg4[%c1_122, %c0_123, %c0_124] : memref<2x64x128xf32, #tpu.memory_space<vmem>>, vector<1x64x128xf32>
    %430 = vector.shape_cast %429 : vector<1x64x128xf32> to vector<64x128xf32>
    %cst_125 = arith.constant dense<0.000000e+00> : vector<64x128xf32>
    %431 = tpu.matmul %420, %430, %cst_125 {dimension_numbers = #tpu.dot_dimension_numbers<[1], [0], [0], [1], [0, 0, 1, 1], [], []>} : vector<64x64xf32>, vector<64x128xf32>, vector<64x128xf32> -> vector<64x128xf32>
    %c1_126 = arith.constant 1 : index
    %c0_127 = arith.constant 0 : index
    %c0_128 = arith.constant 0 : index
    %432 = vector.load %arg6[%c1_126, %c0_127, %c0_128] : memref<2x1x128xf32, #tpu.memory_space<vmem>>, vector<1x1x128xf32>
    %433 = vector.shape_cast %432 : vector<1x1x128xf32> to vector<1x128xf32>
    %434 = vector.broadcast %433 : vector<1x128xf32> to vector<64x128xf32>
    %435 = arith.addf %431, %434 : vector<64x128xf32>
    %c0_129 = arith.constant 0 : index
    %c0_130 = arith.constant 0 : index
    %436 = vector.load %arg14[%c0_129, %c0_130] : memref<64x128xf32, #tpu.memory_space<vmem>>, vector<64x128xf32>
    tpu.vector_store %arg14[%c0_129, %c0_130], %435 {strides = array<i32>} : memref<64x128xf32, #tpu.memory_space<vmem>>, vector<64x128xf32>,
    %c0_131 = arith.constant 0 : index
    %c0_132 = arith.constant 0 : index
    %c0_133 = arith.constant 0 : index
    %437 = vector.load %arg5[%c0_131, %c0_132, %c0_133] : memref<2x32x128xf32, #tpu.memory_space<vmem>>, vector<1x32x128xf32>
    %438 = vector.shape_cast %437 : vector<1x32x128xf32> to vector<32x128xf32>
    %c1_134 = arith.constant 1 : index
    %c0_135 = arith.constant 0 : index
    %c0_136 = arith.constant 0 : index
    %439 = vector.load %arg5[%c1_134, %c0_135, %c0_136] : memref<2x32x128xf32, #tpu.memory_space<vmem>>, vector<1x32x128xf32>
    %440 = vector.shape_cast %439 : vector<1x32x128xf32> to vector<32x128xf32>
    %cst_137 = arith.constant 0.000000e+00 : f32
    %441 = vector.broadcast %cst_137 : f32 to vector<8x32xf32>
    %c0_i32_138 = arith.constant 0 : i32
    %c7_i32_139 = arith.constant 7 : i32
    %442 = arith.subi %c7_i32_139, %c0_i32_138 : i32
    %c8_i32_140 = arith.constant 8 : i32
    %443 = arith.muli %c0_i32_138, %c8_i32_140 : i32
    %444 = tpu.assume_multiple %443, 8 : i32
    %c8_i32_141 = arith.constant 8 : i32
    %445 = arith.muli %442, %c8_i32_141 : i32
    %446 = tpu.assume_multiple %445, 8 : i32
    %447 = arith.index_cast %444 : i32 to index
    %c0_142 = arith.constant 0 : index
    %448 = vector.load %arg13[%447, %c0_142] : memref<64x128xf32, #tpu.memory_space<vmem>>, vector<8x128xf32>
    %cst_143 = arith.constant dense<0.000000e+00> : vector<8x128xf32>
    %449 = tpu.matmul %441, %438, %cst_143 {dimension_numbers = #tpu.dot_dimension_numbers<[1], [0], [0], [1], [0, 0, 1, 1], [], []>} : vector<8x32xf32>, vector<32x128xf32>, vector<8x128xf32> -> vector<8x128xf32>
    %450 = arith.addf %448, %449 : vector<8x128xf32>
    %451 = arith.index_cast %446 : i32 to index
    %c0_144 = arith.constant 0 : index
    %452 = vector.load %arg14[%451, %c0_144] : memref<64x128xf32, #tpu.memory_space<vmem>>, vector<8x128xf32>
    %cst_145 = arith.constant dense<0.000000e+00> : vector<8x128xf32>
    %453 = tpu.matmul %441, %440, %cst_145 {dimension_numbers = #tpu.dot_dimension_numbers<[1], [0], [0], [1], [0, 0, 1, 1], [], []>} : vector<8x32xf32>, vector<32x128xf32>, vector<8x128xf32> -> vector<8x128xf32>
    %454 = arith.addf %452, %453 : vector<8x128xf32>
    %455 = arith.negf %450 : vector<8x128xf32>
    %456 = math.exp %455 : vector<8x128xf32>
    %cst_146 = arith.constant 1.000000e+00 : f32
    %457 = vector.broadcast %cst_146 : f32 to vector<8x128xf32>
    %458 = arith.addf %457, %456 : vector<8x128xf32>
    %459 = arith.divf %457, %458 : vector<8x128xf32>
    %460 = math.tanh %450 : vector<8x128xf32>
    %461 = arith.select %5, %460, %459 : vector<8x128xi1>, vector<8x128xf32>
    %462 = vector.extract_strided_slice %461 {offsets = [0, 0], sizes = [8, 32], strides = [1, 1]} : vector<8x128xf32> to vector<8x32xf32>
    %463 = vector.extract_strided_slice %461 {offsets = [0, 32], sizes = [8, 32], strides = [1, 1]} : vector<8x128xf32> to vector<8x32xf32>
    %464 = vector.extract_strided_slice %461 {offsets = [0, 64], sizes = [8, 32], strides = [1, 1]} : vector<8x128xf32> to vector<8x32xf32>
    %465 = vector.extract_strided_slice %461 {offsets = [0, 96], sizes = [8, 32], strides = [1, 1]} : vector<8x128xf32> to vector<8x32xf32>
    %466 = arith.mulf %463, %441 : vector<8x32xf32>
    %467 = arith.mulf %462, %464 : vector<8x32xf32>
    %468 = arith.addf %466, %467 : vector<8x32xf32>
    %469 = math.tanh %468 : vector<8x32xf32>
    %470 = arith.mulf %465, %469 : vector<8x32xf32>
    %471 = arith.negf %454 : vector<8x128xf32>
    %472 = math.exp %471 : vector<8x128xf32>
    %cst_147 = arith.constant 1.000000e+00 : f32
    %473 = vector.broadcast %cst_147 : f32 to vector<8x128xf32>
    %474 = arith.addf %473, %472 : vector<8x128xf32>
    %475 = arith.divf %473, %474 : vector<8x128xf32>
    %476 = math.tanh %454 : vector<8x128xf32>
    %477 = arith.select %5, %476, %475 : vector<8x128xi1>, vector<8x128xf32>
    %478 = vector.extract_strided_slice %477 {offsets = [0, 0], sizes = [8, 32], strides = [1, 1]} : vector<8x128xf32> to vector<8x32xf32>
    %479 = vector.extract_strided_slice %477 {offsets = [0, 32], sizes = [8, 32], strides = [1, 1]} : vector<8x128xf32> to vector<8x32xf32>
    %480 = vector.extract_strided_slice %477 {offsets = [0, 64], sizes = [8, 32], strides = [1, 1]} : vector<8x128xf32> to vector<8x32xf32>
    %481 = vector.extract_strided_slice %477 {offsets = [0, 96], sizes = [8, 32], strides = [1, 1]} : vector<8x128xf32> to vector<8x32xf32>
    %482 = arith.mulf %479, %441 : vector<8x32xf32>
    %483 = arith.mulf %478, %480 : vector<8x32xf32>
    %484 = arith.addf %482, %483 : vector<8x32xf32>
    %485 = math.tanh %484 : vector<8x32xf32>
    %486 = arith.mulf %481, %485 : vector<8x32xf32>
    %c0_i32_148 = arith.constant 0 : i32
    %487 = arith.cmpi eq, %c0_i32_138, %c0_i32_148 : i32
    %488 = arith.select %487, %486, %441 : vector<8x32xf32>
    %c1_i32_149 = arith.constant 1 : i32
    %c7_i32_150 = arith.constant 7 : i32
    %489 = arith.subi %c7_i32_150, %c1_i32_149 : i32
    %c8_i32_151 = arith.constant 8 : i32
    %490 = arith.muli %c1_i32_149, %c8_i32_151 : i32
    %491 = tpu.assume_multiple %490, 8 : i32
    %c8_i32_152 = arith.constant 8 : i32
    %492 = arith.muli %489, %c8_i32_152 : i32
    %493 = tpu.assume_multiple %492, 8 : i32
    %494 = arith.index_cast %491 : i32 to index
    %c0_153 = arith.constant 0 : index
    %495 = vector.load %arg13[%494, %c0_153] : memref<64x128xf32, #tpu.memory_space<vmem>>, vector<8x128xf32>
    %cst_154 = arith.constant dense<0.000000e+00> : vector<8x128xf32>
    %496 = tpu.matmul %470, %438, %cst_154 {dimension_numbers = #tpu.dot_dimension_numbers<[1], [0], [0], [1], [0, 0, 1, 1], [], []>} : vector<8x32xf32>, vector<32x128xf32>, vector<8x128xf32> -> vector<8x128xf32>
    %497 = arith.addf %495, %496 : vector<8x128xf32>
    %498 = arith.index_cast %493 : i32 to index
    %c0_155 = arith.constant 0 : index
    %499 = vector.load %arg14[%498, %c0_155] : memref<64x128xf32, #tpu.memory_space<vmem>>, vector<8x128xf32>
    %cst_156 = arith.constant dense<0.000000e+00> : vector<8x128xf32>
    %500 = tpu.matmul %486, %440, %cst_156 {dimension_numbers = #tpu.dot_dimension_numbers<[1], [0], [0], [1], [0, 0, 1, 1], [], []>} : vector<8x32xf32>, vector<32x128xf32>, vector<8x128xf32> -> vector<8x128xf32>
    %501 = arith.addf %499, %500 : vector<8x128xf32>
    %502 = arith.negf %497 : vector<8x128xf32>
    %503 = math.exp %502 : vector<8x128xf32>
    %cst_157 = arith.constant 1.000000e+00 : f32
    %504 = vector.broadcast %cst_157 : f32 to vector<8x128xf32>
    %505 = arith.addf %504, %503 : vector<8x128xf32>
    %506 = arith.divf %504, %505 : vector<8x128xf32>
    %507 = math.tanh %497 : vector<8x128xf32>
    %508 = arith.select %5, %507, %506 : vector<8x128xi1>, vector<8x128xf32>
    %509 = vector.extract_strided_slice %508 {offsets = [0, 0], sizes = [8, 32], strides = [1, 1]} : vector<8x128xf32> to vector<8x32xf32>
    %510 = vector.extract_strided_slice %508 {offsets = [0, 32], sizes = [8, 32], strides = [1, 1]} : vector<8x128xf32> to vector<8x32xf32>
    %511 = vector.extract_strided_slice %508 {offsets = [0, 64], sizes = [8, 32], strides = [1, 1]} : vector<8x128xf32> to vector<8x32xf32>
    %512 = vector.extract_strided_slice %508 {offsets = [0, 96], sizes = [8, 32], strides = [1, 1]} : vector<8x128xf32> to vector<8x32xf32>
    %513 = arith.mulf %510, %468 : vector<8x32xf32>
    %514 = arith.mulf %509, %511 : vector<8x32xf32>
    %515 = arith.addf %513, %514 : vector<8x32xf32>
    %516 = math.tanh %515 : vector<8x32xf32>
    %517 = arith.mulf %512, %516 : vector<8x32xf32>
    %518 = arith.negf %501 : vector<8x128xf32>
    %519 = math.exp %518 : vector<8x128xf32>
    %cst_158 = arith.constant 1.000000e+00 : f32
    %520 = vector.broadcast %cst_158 : f32 to vector<8x128xf32>
    %521 = arith.addf %520, %519 : vector<8x128xf32>
    %522 = arith.divf %520, %521 : vector<8x128xf32>
    %523 = math.tanh %501 : vector<8x128xf32>
    %524 = arith.select %5, %523, %522 : vector<8x128xi1>, vector<8x128xf32>
    %525 = vector.extract_strided_slice %524 {offsets = [0, 0], sizes = [8, 32], strides = [1, 1]} : vector<8x128xf32> to vector<8x32xf32>
    %526 = vector.extract_strided_slice %524 {offsets = [0, 32], sizes = [8, 32], strides = [1, 1]} : vector<8x128xf32> to vector<8x32xf32>
    %527 = vector.extract_strided_slice %524 {offsets = [0, 64], sizes = [8, 32], strides = [1, 1]} : vector<8x128xf32> to vector<8x32xf32>
    %528 = vector.extract_strided_slice %524 {offsets = [0, 96], sizes = [8, 32], strides = [1, 1]} : vector<8x128xf32> to vector<8x32xf32>
    %529 = arith.mulf %526, %484 : vector<8x32xf32>
    %530 = arith.mulf %525, %527 : vector<8x32xf32>
    %531 = arith.addf %529, %530 : vector<8x32xf32>
    %532 = math.tanh %531 : vector<8x32xf32>
    %533 = arith.mulf %528, %532 : vector<8x32xf32>
    %c0_i32_159 = arith.constant 0 : i32
    %534 = arith.cmpi eq, %c1_i32_149, %c0_i32_159 : i32
    %535 = arith.select %534, %533, %488 : vector<8x32xf32>
    %c2_i32_160 = arith.constant 2 : i32
    %c7_i32_161 = arith.constant 7 : i32
    %536 = arith.subi %c7_i32_161, %c2_i32_160 : i32
    %c8_i32_162 = arith.constant 8 : i32
    %537 = arith.muli %c2_i32_160, %c8_i32_162 : i32
    %538 = tpu.assume_multiple %537, 8 : i32
    %c8_i32_163 = arith.constant 8 : i32
    %539 = arith.muli %536, %c8_i32_163 : i32
    %540 = tpu.assume_multiple %539, 8 : i32
    %541 = arith.index_cast %538 : i32 to index
    %c0_164 = arith.constant 0 : index
    %542 = vector.load %arg13[%541, %c0_164] : memref<64x128xf32, #tpu.memory_space<vmem>>, vector<8x128xf32>
    %cst_165 = arith.constant dense<0.000000e+00> : vector<8x128xf32>
    %543 = tpu.matmul %517, %438, %cst_165 {dimension_numbers = #tpu.dot_dimension_numbers<[1], [0], [0], [1], [0, 0, 1, 1], [], []>} : vector<8x32xf32>, vector<32x128xf32>, vector<8x128xf32> -> vector<8x128xf32>
    %544 = arith.addf %542, %543 : vector<8x128xf32>
    %545 = arith.index_cast %540 : i32 to index
    %c0_166 = arith.constant 0 : index
    %546 = vector.load %arg14[%545, %c0_166] : memref<64x128xf32, #tpu.memory_space<vmem>>, vector<8x128xf32>
    %cst_167 = arith.constant dense<0.000000e+00> : vector<8x128xf32>
    %547 = tpu.matmul %533, %440, %cst_167 {dimension_numbers = #tpu.dot_dimension_numbers<[1], [0], [0], [1], [0, 0, 1, 1], [], []>} : vector<8x32xf32>, vector<32x128xf32>, vector<8x128xf32> -> vector<8x128xf32>
    %548 = arith.addf %546, %547 : vector<8x128xf32>
    %549 = arith.negf %544 : vector<8x128xf32>
    %550 = math.exp %549 : vector<8x128xf32>
    %cst_168 = arith.constant 1.000000e+00 : f32
    %551 = vector.broadcast %cst_168 : f32 to vector<8x128xf32>
    %552 = arith.addf %551, %550 : vector<8x128xf32>
    %553 = arith.divf %551, %552 : vector<8x128xf32>
    %554 = math.tanh %544 : vector<8x128xf32>
    %555 = arith.select %5, %554, %553 : vector<8x128xi1>, vector<8x128xf32>
    %556 = vector.extract_strided_slice %555 {offsets = [0, 0], sizes = [8, 32], strides = [1, 1]} : vector<8x128xf32> to vector<8x32xf32>
    %557 = vector.extract_strided_slice %555 {offsets = [0, 32], sizes = [8, 32], strides = [1, 1]} : vector<8x128xf32> to vector<8x32xf32>
    %558 = vector.extract_strided_slice %555 {offsets = [0, 64], sizes = [8, 32], strides = [1, 1]} : vector<8x128xf32> to vector<8x32xf32>
    %559 = vector.extract_strided_slice %555 {offsets = [0, 96], sizes = [8, 32], strides = [1, 1]} : vector<8x128xf32> to vector<8x32xf32>
    %560 = arith.mulf %557, %515 : vector<8x32xf32>
    %561 = arith.mulf %556, %558 : vector<8x32xf32>
    %562 = arith.addf %560, %561 : vector<8x32xf32>
    %563 = math.tanh %562 : vector<8x32xf32>
    %564 = arith.mulf %559, %563 : vector<8x32xf32>
    %565 = arith.negf %548 : vector<8x128xf32>
    %566 = math.exp %565 : vector<8x128xf32>
    %cst_169 = arith.constant 1.000000e+00 : f32
    %567 = vector.broadcast %cst_169 : f32 to vector<8x128xf32>
    %568 = arith.addf %567, %566 : vector<8x128xf32>
    %569 = arith.divf %567, %568 : vector<8x128xf32>
    %570 = math.tanh %548 : vector<8x128xf32>
    %571 = arith.select %5, %570, %569 : vector<8x128xi1>, vector<8x128xf32>
    %572 = vector.extract_strided_slice %571 {offsets = [0, 0], sizes = [8, 32], strides = [1, 1]} : vector<8x128xf32> to vector<8x32xf32>
    %573 = vector.extract_strided_slice %571 {offsets = [0, 32], sizes = [8, 32], strides = [1, 1]} : vector<8x128xf32> to vector<8x32xf32>
    %574 = vector.extract_strided_slice %571 {offsets = [0, 64], sizes = [8, 32], strides = [1, 1]} : vector<8x128xf32> to vector<8x32xf32>
    %575 = vector.extract_strided_slice %571 {offsets = [0, 96], sizes = [8, 32], strides = [1, 1]} : vector<8x128xf32> to vector<8x32xf32>
    %576 = arith.mulf %573, %531 : vector<8x32xf32>
    %577 = arith.mulf %572, %574 : vector<8x32xf32>
    %578 = arith.addf %576, %577 : vector<8x32xf32>
    %579 = math.tanh %578 : vector<8x32xf32>
    %580 = arith.mulf %575, %579 : vector<8x32xf32>
    %c0_i32_170 = arith.constant 0 : i32
    %581 = arith.cmpi eq, %c2_i32_160, %c0_i32_170 : i32
    %582 = arith.select %581, %580, %535 : vector<8x32xf32>
    %c3_i32_171 = arith.constant 3 : i32
    %c7_i32_172 = arith.constant 7 : i32
    %583 = arith.subi %c7_i32_172, %c3_i32_171 : i32
    %c8_i32_173 = arith.constant 8 : i32
    %584 = arith.muli %c3_i32_171, %c8_i32_173 : i32
    %585 = tpu.assume_multiple %584, 8 : i32
    %c8_i32_174 = arith.constant 8 : i32
    %586 = arith.muli %583, %c8_i32_174 : i32
    %587 = tpu.assume_multiple %586, 8 : i32
    %588 = arith.index_cast %585 : i32 to index
    %c0_175 = arith.constant 0 : index
    %589 = vector.load %arg13[%588, %c0_175] : memref<64x128xf32, #tpu.memory_space<vmem>>, vector<8x128xf32>
    %cst_176 = arith.constant dense<0.000000e+00> : vector<8x128xf32>
    %590 = tpu.matmul %564, %438, %cst_176 {dimension_numbers = #tpu.dot_dimension_numbers<[1], [0], [0], [1], [0, 0, 1, 1], [], []>} : vector<8x32xf32>, vector<32x128xf32>, vector<8x128xf32> -> vector<8x128xf32>
    %591 = arith.addf %589, %590 : vector<8x128xf32>
    %592 = arith.index_cast %587 : i32 to index
    %c0_177 = arith.constant 0 : index
    %593 = vector.load %arg14[%592, %c0_177] : memref<64x128xf32, #tpu.memory_space<vmem>>, vector<8x128xf32>
    %cst_178 = arith.constant dense<0.000000e+00> : vector<8x128xf32>
    %594 = tpu.matmul %580, %440, %cst_178 {dimension_numbers = #tpu.dot_dimension_numbers<[1], [0], [0], [1], [0, 0, 1, 1], [], []>} : vector<8x32xf32>, vector<32x128xf32>, vector<8x128xf32> -> vector<8x128xf32>
    %595 = arith.addf %593, %594 : vector<8x128xf32>
    %596 = arith.negf %591 : vector<8x128xf32>
    %597 = math.exp %596 : vector<8x128xf32>
    %cst_179 = arith.constant 1.000000e+00 : f32
    %598 = vector.broadcast %cst_179 : f32 to vector<8x128xf32>
    %599 = arith.addf %598, %597 : vector<8x128xf32>
    %600 = arith.divf %598, %599 : vector<8x128xf32>
    %601 = math.tanh %591 : vector<8x128xf32>
    %602 = arith.select %5, %601, %600 : vector<8x128xi1>, vector<8x128xf32>
    %603 = vector.extract_strided_slice %602 {offsets = [0, 0], sizes = [8, 32], strides = [1, 1]} : vector<8x128xf32> to vector<8x32xf32>
    %604 = vector.extract_strided_slice %602 {offsets = [0, 32], sizes = [8, 32], strides = [1, 1]} : vector<8x128xf32> to vector<8x32xf32>
    %605 = vector.extract_strided_slice %602 {offsets = [0, 64], sizes = [8, 32], strides = [1, 1]} : vector<8x128xf32> to vector<8x32xf32>
    %606 = vector.extract_strided_slice %602 {offsets = [0, 96], sizes = [8, 32], strides = [1, 1]} : vector<8x128xf32> to vector<8x32xf32>
    %607 = arith.mulf %604, %562 : vector<8x32xf32>
    %608 = arith.mulf %603, %605 : vector<8x32xf32>
    %609 = arith.addf %607, %608 : vector<8x32xf32>
    %610 = math.tanh %609 : vector<8x32xf32>
    %611 = arith.mulf %606, %610 : vector<8x32xf32>
    %612 = arith.negf %595 : vector<8x128xf32>
    %613 = math.exp %612 : vector<8x128xf32>
    %cst_180 = arith.constant 1.000000e+00 : f32
    %614 = vector.broadcast %cst_180 : f32 to vector<8x128xf32>
    %615 = arith.addf %614, %613 : vector<8x128xf32>
    %616 = arith.divf %614, %615 : vector<8x128xf32>
    %617 = math.tanh %595 : vector<8x128xf32>
    %618 = arith.select %5, %617, %616 : vector<8x128xi1>, vector<8x128xf32>
    %619 = vector.extract_strided_slice %618 {offsets = [0, 0], sizes = [8, 32], strides = [1, 1]} : vector<8x128xf32> to vector<8x32xf32>
    %620 = vector.extract_strided_slice %618 {offsets = [0, 32], sizes = [8, 32], strides = [1, 1]} : vector<8x128xf32> to vector<8x32xf32>
    %621 = vector.extract_strided_slice %618 {offsets = [0, 64], sizes = [8, 32], strides = [1, 1]} : vector<8x128xf32> to vector<8x32xf32>
    %622 = vector.extract_strided_slice %618 {offsets = [0, 96], sizes = [8, 32], strides = [1, 1]} : vector<8x128xf32> to vector<8x32xf32>
    %623 = arith.mulf %620, %578 : vector<8x32xf32>
    %624 = arith.mulf %619, %621 : vector<8x32xf32>
    %625 = arith.addf %623, %624 : vector<8x32xf32>
    %626 = math.tanh %625 : vector<8x32xf32>
    %627 = arith.mulf %622, %626 : vector<8x32xf32>
    %c0_i32_181 = arith.constant 0 : i32
    %628 = arith.cmpi eq, %c3_i32_171, %c0_i32_181 : i32
    %629 = arith.select %628, %627, %582 : vector<8x32xf32>
    %c4_i32_182 = arith.constant 4 : i32
    %c7_i32_183 = arith.constant 7 : i32
    %630 = arith.subi %c7_i32_183, %c4_i32_182 : i32
    %c8_i32_184 = arith.constant 8 : i32
    %631 = arith.muli %c4_i32_182, %c8_i32_184 : i32
    %632 = tpu.assume_multiple %631, 8 : i32
    %c8_i32_185 = arith.constant 8 : i32
    %633 = arith.muli %630, %c8_i32_185 : i32
    %634 = tpu.assume_multiple %633, 8 : i32
    %635 = arith.index_cast %632 : i32 to index
    %c0_186 = arith.constant 0 : index
    %636 = vector.load %arg13[%635, %c0_186] : memref<64x128xf32, #tpu.memory_space<vmem>>, vector<8x128xf32>
    %cst_187 = arith.constant dense<0.000000e+00> : vector<8x128xf32>
    %637 = tpu.matmul %611, %438, %cst_187 {dimension_numbers = #tpu.dot_dimension_numbers<[1], [0], [0], [1], [0, 0, 1, 1], [], []>} : vector<8x32xf32>, vector<32x128xf32>, vector<8x128xf32> -> vector<8x128xf32>
    %638 = arith.addf %636, %637 : vector<8x128xf32>
    %639 = arith.index_cast %634 : i32 to index
    %c0_188 = arith.constant 0 : index
    %640 = vector.load %arg14[%639, %c0_188] : memref<64x128xf32, #tpu.memory_space<vmem>>, vector<8x128xf32>
    %cst_189 = arith.constant dense<0.000000e+00> : vector<8x128xf32>
    %641 = tpu.matmul %627, %440, %cst_189 {dimension_numbers = #tpu.dot_dimension_numbers<[1], [0], [0], [1], [0, 0, 1, 1], [], []>} : vector<8x32xf32>, vector<32x128xf32>, vector<8x128xf32> -> vector<8x128xf32>
    %642 = arith.addf %640, %641 : vector<8x128xf32>
    %643 = arith.negf %638 : vector<8x128xf32>
    %644 = math.exp %643 : vector<8x128xf32>
    %cst_190 = arith.constant 1.000000e+00 : f32
    %645 = vector.broadcast %cst_190 : f32 to vector<8x128xf32>
    %646 = arith.addf %645, %644 : vector<8x128xf32>
    %647 = arith.divf %645, %646 : vector<8x128xf32>
    %648 = math.tanh %638 : vector<8x128xf32>
    %649 = arith.select %5, %648, %647 : vector<8x128xi1>, vector<8x128xf32>
    %650 = vector.extract_strided_slice %649 {offsets = [0, 0], sizes = [8, 32], strides = [1, 1]} : vector<8x128xf32> to vector<8x32xf32>
    %651 = vector.extract_strided_slice %649 {offsets = [0, 32], sizes = [8, 32], strides = [1, 1]} : vector<8x128xf32> to vector<8x32xf32>
    %652 = vector.extract_strided_slice %649 {offsets = [0, 64], sizes = [8, 32], strides = [1, 1]} : vector<8x128xf32> to vector<8x32xf32>
    %653 = vector.extract_strided_slice %649 {offsets = [0, 96], sizes = [8, 32], strides = [1, 1]} : vector<8x128xf32> to vector<8x32xf32>
    %654 = arith.mulf %651, %609 : vector<8x32xf32>
    %655 = arith.mulf %650, %652 : vector<8x32xf32>
    %656 = arith.addf %654, %655 : vector<8x32xf32>
    %657 = math.tanh %656 : vector<8x32xf32>
    %658 = arith.mulf %653, %657 : vector<8x32xf32>
    %659 = arith.negf %642 : vector<8x128xf32>
    %660 = math.exp %659 : vector<8x128xf32>
    %cst_191 = arith.constant 1.000000e+00 : f32
    %661 = vector.broadcast %cst_191 : f32 to vector<8x128xf32>
    %662 = arith.addf %661, %660 : vector<8x128xf32>
    %663 = arith.divf %661, %662 : vector<8x128xf32>
    %664 = math.tanh %642 : vector<8x128xf32>
    %665 = arith.select %5, %664, %663 : vector<8x128xi1>, vector<8x128xf32>
    %666 = vector.extract_strided_slice %665 {offsets = [0, 0], sizes = [8, 32], strides = [1, 1]} : vector<8x128xf32> to vector<8x32xf32>
    %667 = vector.extract_strided_slice %665 {offsets = [0, 32], sizes = [8, 32], strides = [1, 1]} : vector<8x128xf32> to vector<8x32xf32>
    %668 = vector.extract_strided_slice %665 {offsets = [0, 64], sizes = [8, 32], strides = [1, 1]} : vector<8x128xf32> to vector<8x32xf32>
    %669 = vector.extract_strided_slice %665 {offsets = [0, 96], sizes = [8, 32], strides = [1, 1]} : vector<8x128xf32> to vector<8x32xf32>
    %670 = arith.mulf %667, %625 : vector<8x32xf32>
    %671 = arith.mulf %666, %668 : vector<8x32xf32>
    %672 = arith.addf %670, %671 : vector<8x32xf32>
    %673 = math.tanh %672 : vector<8x32xf32>
    %674 = arith.mulf %669, %673 : vector<8x32xf32>
    %c0_i32_192 = arith.constant 0 : i32
    %675 = arith.cmpi eq, %c4_i32_182, %c0_i32_192 : i32
    %676 = arith.select %675, %674, %629 : vector<8x32xf32>
    %c5_i32_193 = arith.constant 5 : i32
    %c7_i32_194 = arith.constant 7 : i32
    %677 = arith.subi %c7_i32_194, %c5_i32_193 : i32
    %c8_i32_195 = arith.constant 8 : i32
    %678 = arith.muli %c5_i32_193, %c8_i32_195 : i32
    %679 = tpu.assume_multiple %678, 8 : i32
    %c8_i32_196 = arith.constant 8 : i32
    %680 = arith.muli %677, %c8_i32_196 : i32
    %681 = tpu.assume_multiple %680, 8 : i32
    %682 = arith.index_cast %679 : i32 to index
    %c0_197 = arith.constant 0 : index
    %683 = vector.load %arg13[%682, %c0_197] : memref<64x128xf32, #tpu.memory_space<vmem>>, vector<8x128xf32>
    %cst_198 = arith.constant dense<0.000000e+00> : vector<8x128xf32>
    %684 = tpu.matmul %658, %438, %cst_198 {dimension_numbers = #tpu.dot_dimension_numbers<[1], [0], [0], [1], [0, 0, 1, 1], [], []>} : vector<8x32xf32>, vector<32x128xf32>, vector<8x128xf32> -> vector<8x128xf32>
    %685 = arith.addf %683, %684 : vector<8x128xf32>
    %686 = arith.index_cast %681 : i32 to index
    %c0_199 = arith.constant 0 : index
    %687 = vector.load %arg14[%686, %c0_199] : memref<64x128xf32, #tpu.memory_space<vmem>>, vector<8x128xf32>
    %cst_200 = arith.constant dense<0.000000e+00> : vector<8x128xf32>
    %688 = tpu.matmul %674, %440, %cst_200 {dimension_numbers = #tpu.dot_dimension_numbers<[1], [0], [0], [1], [0, 0, 1, 1], [], []>} : vector<8x32xf32>, vector<32x128xf32>, vector<8x128xf32> -> vector<8x128xf32>
    %689 = arith.addf %687, %688 : vector<8x128xf32>
    %690 = arith.negf %685 : vector<8x128xf32>
    %691 = math.exp %690 : vector<8x128xf32>
    %cst_201 = arith.constant 1.000000e+00 : f32
    %692 = vector.broadcast %cst_201 : f32 to vector<8x128xf32>
    %693 = arith.addf %692, %691 : vector<8x128xf32>
    %694 = arith.divf %692, %693 : vector<8x128xf32>
    %695 = math.tanh %685 : vector<8x128xf32>
    %696 = arith.select %5, %695, %694 : vector<8x128xi1>, vector<8x128xf32>
    %697 = vector.extract_strided_slice %696 {offsets = [0, 0], sizes = [8, 32], strides = [1, 1]} : vector<8x128xf32> to vector<8x32xf32>
    %698 = vector.extract_strided_slice %696 {offsets = [0, 32], sizes = [8, 32], strides = [1, 1]} : vector<8x128xf32> to vector<8x32xf32>
    %699 = vector.extract_strided_slice %696 {offsets = [0, 64], sizes = [8, 32], strides = [1, 1]} : vector<8x128xf32> to vector<8x32xf32>
    %700 = vector.extract_strided_slice %696 {offsets = [0, 96], sizes = [8, 32], strides = [1, 1]} : vector<8x128xf32> to vector<8x32xf32>
    %701 = arith.mulf %698, %656 : vector<8x32xf32>
    %702 = arith.mulf %697, %699 : vector<8x32xf32>
    %703 = arith.addf %701, %702 : vector<8x32xf32>
    %704 = math.tanh %703 : vector<8x32xf32>
    %705 = arith.mulf %700, %704 : vector<8x32xf32>
    %706 = arith.negf %689 : vector<8x128xf32>
    %707 = math.exp %706 : vector<8x128xf32>
    %cst_202 = arith.constant 1.000000e+00 : f32
    %708 = vector.broadcast %cst_202 : f32 to vector<8x128xf32>
    %709 = arith.addf %708, %707 : vector<8x128xf32>
    %710 = arith.divf %708, %709 : vector<8x128xf32>
    %711 = math.tanh %689 : vector<8x128xf32>
    %712 = arith.select %5, %711, %710 : vector<8x128xi1>, vector<8x128xf32>
    %713 = vector.extract_strided_slice %712 {offsets = [0, 0], sizes = [8, 32], strides = [1, 1]} : vector<8x128xf32> to vector<8x32xf32>
    %714 = vector.extract_strided_slice %712 {offsets = [0, 32], sizes = [8, 32], strides = [1, 1]} : vector<8x128xf32> to vector<8x32xf32>
    %715 = vector.extract_strided_slice %712 {offsets = [0, 64], sizes = [8, 32], strides = [1, 1]} : vector<8x128xf32> to vector<8x32xf32>
    %716 = vector.extract_strided_slice %712 {offsets = [0, 96], sizes = [8, 32], strides = [1, 1]} : vector<8x128xf32> to vector<8x32xf32>
    %717 = arith.mulf %714, %672 : vector<8x32xf32>
    %718 = arith.mulf %713, %715 : vector<8x32xf32>
    %719 = arith.addf %717, %718 : vector<8x32xf32>
    %720 = math.tanh %719 : vector<8x32xf32>
    %721 = arith.mulf %716, %720 : vector<8x32xf32>
    %c0_i32_203 = arith.constant 0 : i32
    %722 = arith.cmpi eq, %c5_i32_193, %c0_i32_203 : i32
    %723 = arith.select %722, %721, %676 : vector<8x32xf32>
    %c6_i32_204 = arith.constant 6 : i32
    %c7_i32_205 = arith.constant 7 : i32
    %724 = arith.subi %c7_i32_205, %c6_i32_204 : i32
    %c8_i32_206 = arith.constant 8 : i32
    %725 = arith.muli %c6_i32_204, %c8_i32_206 : i32
    %726 = tpu.assume_multiple %725, 8 : i32
    %c8_i32_207 = arith.constant 8 : i32
    %727 = arith.muli %724, %c8_i32_207 : i32
    %728 = tpu.assume_multiple %727, 8 : i32
    %729 = arith.index_cast %726 : i32 to index
    %c0_208 = arith.constant 0 : index
    %730 = vector.load %arg13[%729, %c0_208] : memref<64x128xf32, #tpu.memory_space<vmem>>, vector<8x128xf32>
    %cst_209 = arith.constant dense<0.000000e+00> : vector<8x128xf32>
    %731 = tpu.matmul %705, %438, %cst_209 {dimension_numbers = #tpu.dot_dimension_numbers<[1], [0], [0], [1], [0, 0, 1, 1], [], []>} : vector<8x32xf32>, vector<32x128xf32>, vector<8x128xf32> -> vector<8x128xf32>
    %732 = arith.addf %730, %731 : vector<8x128xf32>
    %733 = arith.index_cast %728 : i32 to index
    %c0_210 = arith.constant 0 : index
    %734 = vector.load %arg14[%733, %c0_210] : memref<64x128xf32, #tpu.memory_space<vmem>>, vector<8x128xf32>
    %cst_211 = arith.constant dense<0.000000e+00> : vector<8x128xf32>
    %735 = tpu.matmul %721, %440, %cst_211 {dimension_numbers = #tpu.dot_dimension_numbers<[1], [0], [0], [1], [0, 0, 1, 1], [], []>} : vector<8x32xf32>, vector<32x128xf32>, vector<8x128xf32> -> vector<8x128xf32>
    %736 = arith.addf %734, %735 : vector<8x128xf32>
    %737 = arith.negf %732 : vector<8x128xf32>
    %738 = math.exp %737 : vector<8x128xf32>
    %cst_212 = arith.constant 1.000000e+00 : f32
    %739 = vector.broadcast %cst_212 : f32 to vector<8x128xf32>
    %740 = arith.addf %739, %738 : vector<8x128xf32>
    %741 = arith.divf %739, %740 : vector<8x128xf32>
    %742 = math.tanh %732 : vector<8x128xf32>
    %743 = arith.select %5, %742, %741 : vector<8x128xi1>, vector<8x128xf32>
    %744 = vector.extract_strided_slice %743 {offsets = [0, 0], sizes = [8, 32], strides = [1, 1]} : vector<8x128xf32> to vector<8x32xf32>
    %745 = vector.extract_strided_slice %743 {offsets = [0, 32], sizes = [8, 32], strides = [1, 1]} : vector<8x128xf32> to vector<8x32xf32>
    %746 = vector.extract_strided_slice %743 {offsets = [0, 64], sizes = [8, 32], strides = [1, 1]} : vector<8x128xf32> to vector<8x32xf32>
    %747 = vector.extract_strided_slice %743 {offsets = [0, 96], sizes = [8, 32], strides = [1, 1]} : vector<8x128xf32> to vector<8x32xf32>
    %748 = arith.mulf %745, %703 : vector<8x32xf32>
    %749 = arith.mulf %744, %746 : vector<8x32xf32>
    %750 = arith.addf %748, %749 : vector<8x32xf32>
    %751 = math.tanh %750 : vector<8x32xf32>
    %752 = arith.mulf %747, %751 : vector<8x32xf32>
    %753 = arith.negf %736 : vector<8x128xf32>
    %754 = math.exp %753 : vector<8x128xf32>
    %cst_213 = arith.constant 1.000000e+00 : f32
    %755 = vector.broadcast %cst_213 : f32 to vector<8x128xf32>
    %756 = arith.addf %755, %754 : vector<8x128xf32>
    %757 = arith.divf %755, %756 : vector<8x128xf32>
    %758 = math.tanh %736 : vector<8x128xf32>
    %759 = arith.select %5, %758, %757 : vector<8x128xi1>, vector<8x128xf32>
    %760 = vector.extract_strided_slice %759 {offsets = [0, 0], sizes = [8, 32], strides = [1, 1]} : vector<8x128xf32> to vector<8x32xf32>
    %761 = vector.extract_strided_slice %759 {offsets = [0, 32], sizes = [8, 32], strides = [1, 1]} : vector<8x128xf32> to vector<8x32xf32>
    %762 = vector.extract_strided_slice %759 {offsets = [0, 64], sizes = [8, 32], strides = [1, 1]} : vector<8x128xf32> to vector<8x32xf32>
    %763 = vector.extract_strided_slice %759 {offsets = [0, 96], sizes = [8, 32], strides = [1, 1]} : vector<8x128xf32> to vector<8x32xf32>
    %764 = arith.mulf %761, %719 : vector<8x32xf32>
    %765 = arith.mulf %760, %762 : vector<8x32xf32>
    %766 = arith.addf %764, %765 : vector<8x32xf32>
    %767 = math.tanh %766 : vector<8x32xf32>
    %768 = arith.mulf %763, %767 : vector<8x32xf32>
    %c0_i32_214 = arith.constant 0 : i32
    %769 = arith.cmpi eq, %c6_i32_204, %c0_i32_214 : i32
    %770 = arith.select %769, %768, %723 : vector<8x32xf32>
    %c7_i32_215 = arith.constant 7 : i32
    %c7_i32_216 = arith.constant 7 : i32
    %771 = arith.subi %c7_i32_216, %c7_i32_215 : i32
    %c8_i32_217 = arith.constant 8 : i32
    %772 = arith.muli %c7_i32_215, %c8_i32_217 : i32
    %773 = tpu.assume_multiple %772, 8 : i32
    %c8_i32_218 = arith.constant 8 : i32
    %774 = arith.muli %771, %c8_i32_218 : i32
    %775 = tpu.assume_multiple %774, 8 : i32
    %776 = arith.index_cast %773 : i32 to index
    %c0_219 = arith.constant 0 : index
    %777 = vector.load %arg13[%776, %c0_219] : memref<64x128xf32, #tpu.memory_space<vmem>>, vector<8x128xf32>
    %cst_220 = arith.constant dense<0.000000e+00> : vector<8x128xf32>
    %778 = tpu.matmul %752, %438, %cst_220 {dimension_numbers = #tpu.dot_dimension_numbers<[1], [0], [0], [1], [0, 0, 1, 1], [], []>} : vector<8x32xf32>, vector<32x128xf32>, vector<8x128xf32> -> vector<8x128xf32>
    %779 = arith.addf %777, %778 : vector<8x128xf32>
    %780 = arith.index_cast %775 : i32 to index
    %c0_221 = arith.constant 0 : index
    %781 = vector.load %arg14[%780, %c0_221] : memref<64x128xf32, #tpu.memory_space<vmem>>, vector<8x128xf32>
    %cst_222 = arith.constant dense<0.000000e+00> : vector<8x128xf32>
    %782 = tpu.matmul %768, %440, %cst_222 {dimension_numbers = #tpu.dot_dimension_numbers<[1], [0], [0], [1], [0, 0, 1, 1], [], []>} : vector<8x32xf32>, vector<32x128xf32>, vector<8x128xf32> -> vector<8x128xf32>
    %783 = arith.addf %781, %782 : vector<8x128xf32>
    %784 = arith.negf %779 : vector<8x128xf32>
    %785 = math.exp %784 : vector<8x128xf32>
    %cst_223 = arith.constant 1.000000e+00 : f32
    %786 = vector.broadcast %cst_223 : f32 to vector<8x128xf32>
    %787 = arith.addf %786, %785 : vector<8x128xf32>
    %788 = arith.divf %786, %787 : vector<8x128xf32>
    %789 = math.tanh %779 : vector<8x128xf32>
    %790 = arith.select %5, %789, %788 : vector<8x128xi1>, vector<8x128xf32>
    %791 = vector.extract_strided_slice %790 {offsets = [0, 0], sizes = [8, 32], strides = [1, 1]} : vector<8x128xf32> to vector<8x32xf32>
    %792 = vector.extract_strided_slice %790 {offsets = [0, 32], sizes = [8, 32], strides = [1, 1]} : vector<8x128xf32> to vector<8x32xf32>
    %793 = vector.extract_strided_slice %790 {offsets = [0, 64], sizes = [8, 32], strides = [1, 1]} : vector<8x128xf32> to vector<8x32xf32>
    %794 = vector.extract_strided_slice %790 {offsets = [0, 96], sizes = [8, 32], strides = [1, 1]} : vector<8x128xf32> to vector<8x32xf32>
    %795 = arith.mulf %792, %750 : vector<8x32xf32>
    %796 = arith.mulf %791, %793 : vector<8x32xf32>
    %797 = arith.addf %795, %796 : vector<8x32xf32>
    %798 = math.tanh %797 : vector<8x32xf32>
    %799 = arith.mulf %794, %798 : vector<8x32xf32>
    %800 = arith.negf %783 : vector<8x128xf32>
    %801 = math.exp %800 : vector<8x128xf32>
    %cst_224 = arith.constant 1.000000e+00 : f32
    %802 = vector.broadcast %cst_224 : f32 to vector<8x128xf32>
    %803 = arith.addf %802, %801 : vector<8x128xf32>
    %804 = arith.divf %802, %803 : vector<8x128xf32>
    %805 = math.tanh %783 : vector<8x128xf32>
    %806 = arith.select %5, %805, %804 : vector<8x128xi1>, vector<8x128xf32>
    %807 = vector.extract_strided_slice %806 {offsets = [0, 0], sizes = [8, 32], strides = [1, 1]} : vector<8x128xf32> to vector<8x32xf32>
    %808 = vector.extract_strided_slice %806 {offsets = [0, 32], sizes = [8, 32], strides = [1, 1]} : vector<8x128xf32> to vector<8x32xf32>
    %809 = vector.extract_strided_slice %806 {offsets = [0, 64], sizes = [8, 32], strides = [1, 1]} : vector<8x128xf32> to vector<8x32xf32>
    %810 = vector.extract_strided_slice %806 {offsets = [0, 96], sizes = [8, 32], strides = [1, 1]} : vector<8x128xf32> to vector<8x32xf32>
    %811 = arith.mulf %808, %766 : vector<8x32xf32>
    %812 = arith.mulf %807, %809 : vector<8x32xf32>
    %813 = arith.addf %811, %812 : vector<8x32xf32>
    %814 = math.tanh %813 : vector<8x32xf32>
    %815 = arith.mulf %810, %814 : vector<8x32xf32>
    %c0_i32_225 = arith.constant 0 : i32
    %816 = arith.cmpi eq, %c7_i32_215, %c0_i32_225 : i32
    %817 = arith.select %816, %815, %770 : vector<8x32xf32>
    %c8_i32_226 = arith.constant 8 : i32
    %c0_227 = arith.constant 0 : index
    %c0_228 = arith.constant 0 : index
    %c0_229 = arith.constant 0 : index
    %818 = vector.load %arg7[%c0_227, %c0_228, %c0_229] : memref<2x32x64xf32, #tpu.memory_space<vmem>>, vector<1x32x64xf32>
    %819 = vector.shape_cast %818 : vector<1x32x64xf32> to vector<32x64xf32>
    %cst_230 = arith.constant dense<0.000000e+00> : vector<8x64xf32>
    %820 = tpu.matmul %799, %819, %cst_230 {dimension_numbers = #tpu.dot_dimension_numbers<[1], [0], [0], [1], [0, 0, 1, 1], [], []>} : vector<8x32xf32>, vector<32x64xf32>, vector<8x64xf32> -> vector<8x64xf32>
    %c1_231 = arith.constant 1 : index
    %c0_232 = arith.constant 0 : index
    %c0_233 = arith.constant 0 : index
    %821 = vector.load %arg7[%c1_231, %c0_232, %c0_233] : memref<2x32x64xf32, #tpu.memory_space<vmem>>, vector<1x32x64xf32>
    %822 = vector.shape_cast %821 : vector<1x32x64xf32> to vector<32x64xf32>
    %cst_234 = arith.constant dense<0.000000e+00> : vector<8x64xf32>
    %823 = tpu.matmul %817, %822, %cst_234 {dimension_numbers = #tpu.dot_dimension_numbers<[1], [0], [0], [1], [0, 0, 1, 1], [], []>} : vector<8x32xf32>, vector<32x64xf32>, vector<8x64xf32> -> vector<8x64xf32>
    %824 = arith.addf %820, %823 : vector<8x64xf32>
    %c0_235 = arith.constant 0 : index
    %c0_236 = arith.constant 0 : index
    %825 = vector.load %arg8[%c0_235, %c0_236] : memref<1x64xf32, #tpu.memory_space<vmem>>, vector<1x64xf32>
    %826 = vector.broadcast %825 : vector<1x64xf32> to vector<8x64xf32>
    %827 = arith.addf %824, %826 : vector<8x64xf32>
    %cst_237 = arith.constant 0.000000e+00 : f32
    %828 = vector.broadcast %cst_237 : f32 to vector<8x64xf32>
    %829 = arith.maximumf %827, %828 : vector<8x64xf32>
    %c0_238 = arith.constant 0 : index
    %c0_239 = arith.constant 0 : index
    %830 = vector.load %arg9[%c0_238, %c0_239] : memref<64x4xf32, #tpu.memory_space<vmem>>, vector<64x4xf32>
    %cst_240 = arith.constant dense<0.000000e+00> : vector<8x4xf32>
    %831 = tpu.matmul %829, %830, %cst_240 {dimension_numbers = #tpu.dot_dimension_numbers<[1], [0], [0], [1], [0, 0, 1, 1], [], []>} : vector<8x64xf32>, vector<64x4xf32>, vector<8x4xf32> -> vector<8x4xf32>
    %c0_241 = arith.constant 0 : index
    %c0_242 = arith.constant 0 : index
    %832 = vector.load %arg10[%c0_241, %c0_242] : memref<1x4xf32, #tpu.memory_space<vmem>>, vector<1x4xf32>
    %833 = vector.broadcast %832 : vector<1x4xf32> to vector<8x4xf32>
    %834 = arith.addf %831, %833 : vector<8x4xf32>
    %c0_243 = arith.constant 0 : index
    %c0_244 = arith.constant 0 : index
    %835 = vector.load %arg11[%c0_243, %c0_244] : memref<8x4xf32, #tpu.memory_space<vmem>>, vector<8x4xf32>
    tpu.vector_store %arg11[%c0_243, %c0_244], %834 {strides = array<i32>} : memref<8x4xf32, #tpu.memory_space<vmem>>, vector<8x4xf32>,
    return
  }
}

</mosaic_0001>

<llo_original>
// kernel: bilstm_predictor.1
$region0: #{bilstm_predictor.1}
  #allocation0 [shape = 'u32[]', space=smem, size = 0x4, offset = 0x4, fixed_abs, tag = 'smem constant byte address 0x4 - core index']
  #allocation1 [shape = 'u32[144,128]{1,0:T(1,128)}', space=vmem, size = 0x12000, scoped, tag = 'internal scratch']
  #allocation2 [shape = 'f32[64,64]{1,0:T(8,128)}', space=vmem, size = 0x8000, scoped, tag = 'scratch operand']
  #allocation3 [shape = 'f32[64,128]{1,0:T(8,128)}', space=vmem, size = 0x8000, scoped, tag = 'scratch operand']
  #allocation4 [shape = 'f32[64,128]{1,0:T(8,128)}', space=vmem, size = 0x8000, scoped, tag = 'scratch operand']
  %s0 = inlined_call_operand.vmem [shape: f32[64,16], index: 0, kind: input, shape index: {}]
  %s1 = inlined_call_operand.hbm [shape: f32[2,16,128], index: 1, kind: input, shape index: {}]
  %s2 = inlined_call_operand.vmem [shape: f32[2,32,128], index: 2, kind: input, shape index: {}]
  %s3 = inlined_call_operand.vmem [shape: f32[2,1,128], index: 3, kind: input, shape index: {}]
  %s4 = inlined_call_operand.vmem [shape: f32[2,64,128], index: 4, kind: input, shape index: {}]
  %s5 = inlined_call_operand.hbm [shape: f32[2,32,128], index: 5, kind: input, shape index: {}]
  %s6 = inlined_call_operand.vmem [shape: f32[2,1,128], index: 6, kind: input, shape index: {}]
  %s7 = inlined_call_operand.hbm [shape: f32[2,32,64], index: 7, kind: input, shape index: {}]
  %s8 = inlined_call_operand.vmem [shape: f32[1,64], index: 8, kind: input, shape index: {}]
  %s9 = inlined_call_operand.vmem [shape: f32[64,4], index: 9, kind: input, shape index: {}]
  %s10 = inlined_call_operand.vmem [shape: f32[1,4], index: 10, kind: input, shape index: {}]
  %s11 = inlined_call_operand.vmem [shape: f32[8,4], index: 11, kind: output, shape index: {}]
  %s12 = sld [smem:[#allocation0]]
  $region66: #{bilstm_predictor.1} parent=0
    _
  %s14 = ssub.s32 1, %s12
  %s15 = scalar_select 0, %s14, %s12
  $region1: #{bilstm_predictor.1} parent=0
    #allocation5 [shape = 'u8[16384]{0}', space=vmem, size = 0x4000, scoped, tag = 'input window, operand 1, single buffered']
    #allocation6 [shape = 's32[1]{0}', space=sflag, size = 0x4, scoped, tag = 'scoped memory for bilstm_predictor.1']
    #allocation7 [shape = 'u8[32768]{0}', space=vmem, size = 0x8000, scoped, tag = 'input window, operand 5, single buffered']
    #allocation8 [shape = 's32[1]{0}', space=sflag, size = 0x4, scoped, tag = 'scoped memory for bilstm_predictor.1']
    #allocation9 [shape = 'u8[32768]{0}', space=vmem, size = 0x8000, scoped, tag = 'input window, operand 7, single buffered']
    %16 = vsyncpa [#allocation6], 0
    %17 = vsyncpa [#allocation8], 0
    // Predicated region
    $region2: #{bilstm_predictor.1} parent=1 // pred_check
      _
    $region3: #{bilstm_predictor.1} parent=1 // pred_check_branch
      %19 = sbr.rel (0) target = $region5
    $region4: #{bilstm_predictor.1} parent=1 // pred_region
      _
    $region5: #{bilstm_predictor.1} parent=1 // pred_fallthru
      _
    // Predicated region
    $region6: #{bilstm_predictor.1} parent=1 // pred_check
      _
    $region7: #{bilstm_predictor.1} parent=1 // pred_check_branch
      %21 = sbr.rel (0) target = $region9
    $region8: #{bilstm_predictor.1} parent=1 // pred_region
      %s23 = ssub.s32 512, 512
      %24 = vsyncadd [#allocation6], %s23
      %s25 = sshll.u32 [#allocation5], 4
      %s26 = int_to_ptr.vmem [resolvable:$true] %s25
      %31 = dma.hbm_to_vmem [thread:$0]  %s1, 512, %s26, [#allocation6], 128, 128, 8
    $region9: #{bilstm_predictor.1} parent=1 // pred_fallthru
      _
    // Predicated region
    $region10: #{bilstm_predictor.1} parent=1 // pred_check
      _
    $region11: #{bilstm_predictor.1} parent=1 // pred_check_branch
      %33 = sbr.rel (0) target = $region13
    $region12: #{bilstm_predictor.1} parent=1 // pred_region
      _
    $region13: #{bilstm_predictor.1} parent=1 // pred_fallthru
      _
    // Predicated region
    $region14: #{bilstm_predictor.1} parent=1 // pred_check
      _
    $region15: #{bilstm_predictor.1} parent=1 // pred_check_branch
      %35 = sbr.rel (0) target = $region17
    $region16: #{bilstm_predictor.1} parent=1 // pred_region
      _
    $region17: #{bilstm_predictor.1} parent=1 // pred_fallthru
      _
    // Predicated region
    $region18: #{bilstm_predictor.1} parent=1 // pred_check
      _
    $region19: #{bilstm_predictor.1} parent=1 // pred_check_branch
      %37 = sbr.rel (0) target = $region21
    $region20: #{bilstm_predictor.1} parent=1 // pred_region
      _
    $region21: #{bilstm_predictor.1} parent=1 // pred_fallthru
      _
    // Predicated region
    $region22: #{bilstm_predictor.1} parent=1 // pred_check
      _
    $region23: #{bilstm_predictor.1} parent=1 // pred_check_branch
      %39 = sbr.rel (0) target = $region25
    $region24: #{bilstm_predictor.1} parent=1 // pred_region
      %s41 = ssub.s32 1024, 1024
      %42 = vsyncadd [#allocation8], %s41
      %s43 = sshll.u32 [#allocation7], 4
      %s44 = int_to_ptr.vmem [resolvable:$true] %s43
      %49 = dma.hbm_to_vmem [thread:$0]  %s5, 1024, %s44, [#allocation8], 128, 128, 8
    $region25: #{bilstm_predictor.1} parent=1 // pred_fallthru
      _
    // Predicated region
    $region26: #{bilstm_predictor.1} parent=1 // pred_check
      _
    $region27: #{bilstm_predictor.1} parent=1 // pred_check_branch
      %51 = sbr.rel (0) target = $region29
    $region28: #{bilstm_predictor.1} parent=1 // pred_region
      _
    $region29: #{bilstm_predictor.1} parent=1 // pred_fallthru
      _
    // Predicated region
    $region30: #{bilstm_predictor.1} parent=1 // pred_check
      _
    $region31: #{bilstm_predictor.1} parent=1 // pred_check_branch
      %53 = sbr.rel (0) target = $region33
    $region32: #{bilstm_predictor.1} parent=1 // pred_region
      %s55 = ssub.s32 1024, 1024
      %56 = vsyncadd [#allocation8], %s55
      %s57 = sshll.u32 [#allocation9], 4
      %s58 = int_to_ptr.vmem [resolvable:$true] %s57
      %63 = dma.hbm_to_vmem [thread:$0]  %s7, 1024, %s58, [#allocation8], 128, 128, 8
    $region33: #{bilstm_predictor.1} parent=1 // pred_fallthru
      _
    // Predicated region
    $region34: #{bilstm_predictor.1} parent=1 // pred_check
      _
    $region35: #{bilstm_predictor.1} parent=1 // pred_check_branch
      %65 = sbr.rel (0) target = $region37
    $region36: #{bilstm_predictor.1} parent=1 // pred_region
      _
    $region37: #{bilstm_predictor.1} parent=1 // pred_fallthru
      _
    // Predicated region
    $region38: #{bilstm_predictor.1} parent=1 // pred_check
      _
    $region39: #{bilstm_predictor.1} parent=1 // pred_check_branch
      %67 = sbr.rel (0) target = $region41
    $region40: #{bilstm_predictor.1} parent=1 // pred_region
      _
    $region41: #{bilstm_predictor.1} parent=1 // pred_fallthru
      _
    // Predicated region
    $region42: #{bilstm_predictor.1} parent=1 // pred_check
      _
    $region43: #{bilstm_predictor.1} parent=1 // pred_check_branch
      %69 = sbr.rel (0) target = $region45
    $region44: #{bilstm_predictor.1} parent=1 // pred_region
      _
    $region45: #{bilstm_predictor.1} parent=1 // pred_fallthru
      _
    // Predicated region
    $region46: #{bilstm_predictor.1} parent=1 // pred_check
      _
    $region47: #{bilstm_predictor.1} parent=1 // pred_check_branch
      %71 = sbr.rel (0) target = $region49
    $region48: #{bilstm_predictor.1} parent=1 // pred_region
      %72 = dma.done [#allocation6], 512
    $region49: #{bilstm_predictor.1} parent=1 // pred_fallthru
      _
    // Predicated region
    $region50: #{bilstm_predictor.1} parent=1 // pred_check
      _
    $region51: #{bilstm_predictor.1} parent=1 // pred_check_branch
      %74 = sbr.rel (0) target = $region53
    $region52: #{bilstm_predictor.1} parent=1 // pred_region
      %75 = dma.done [#allocation8], 1024
    $region53: #{bilstm_predictor.1} parent=1 // pred_fallthru
      _
    // Predicated region
    $region54: #{bilstm_predictor.1} parent=1 // pred_check
      _
    $region55: #{bilstm_predictor.1} parent=1 // pred_check_branch
      %77 = sbr.rel (0) target = $region57
    $region56: #{bilstm_predictor.1} parent=1 // pred_region
      %78 = dma.done [#allocation8], 1024
    $region57: #{bilstm_predictor.1} parent=1 // pred_fallthru
      _
    %v79 = vlaneseq
    %v80 = vand.u32 %v79, 127
    %vm81 = vcmp.ge.s32.totalorder %v80, 64
    %vm82 = vcmp.lt.s32.totalorder %v80, 96
    %vm83 = vmand %vm81, %vm82
    %v84 = vld [vmem:[%s0] sm:$0xff]
    %v85 = vld [vmem:[%s0 + $0x8] sm:$0xff]
    %v86 = vld [vmem:[%s0 + $0x10] sm:$0xff]
    %v87 = vld [vmem:[%s0 + $0x18] sm:$0xff]
    %v88 = vld [vmem:[%s0 + $0x20] sm:$0xff]
    %v89 = vld [vmem:[%s0 + $0x28] sm:$0xff]
    %v90 = vld [vmem:[%s0 + $0x30] sm:$0xff]
    %v91 = vld [vmem:[%s0 + $0x38] sm:$0xff]
    %v92 = vld [vmem:[#allocation5] sm:$0xff]
    %v93 = vld [vmem:[#allocation5 + $0x8] sm:$0xff]
    %v94 = vld [vmem:[%s3] sm:$0x1]
    %v96 = vlaneseq
    %v97 = vshrl.u32 %v96, 7
    %v98 = vsub.s32 0, %v97
    %v99 = vrot.slane %v94, %v98
    %vm101 = vcmask 130048
    %v103 = vsel %vm101, %v84, 0
    %v106 = vsel %vm101, %v85, 0
    %v109 = vsel %vm101, %v86, 0
    %v112 = vsel %vm101, %v87, 0
    %v115 = vsel %vm101, %v88, 0
    %v118 = vsel %vm101, %v89, 0
    %v121 = vsel %vm101, %v90, 0
    %v124 = vsel %vm101, %v91, 0
    %126 = vmatprep.subr.mxu0 0.0
    %127 = vmatpush1.msra.mxu0 %v92
    %128 = vmatprep.subr.mxu0 0.0
    %129 = vmatpush1.msra.mxu0 %v93
    %130 = vmatprep.subr.mxu0 0.0
    %131 = vmatpush1.msra.mxu0 0.0
    %132 = vmatprep.subr.mxu0 0.0
    %133 = vmatpush1.msra.mxu0 0.0
    %134 = vmatprep.subr.mxu0 0.0
    %135 = vmatpush1.msra.mxu0 0.0
    %136 = vmatprep.subr.mxu0 0.0
    %137 = vmatpush1.msra.mxu0 0.0
    %138 = vmatprep.subr.mxu0 0.0
    %139 = vmatpush1.msra.mxu0 0.0
    %140 = vmatprep.subr.mxu0 0.0
    %141 = vmatpush1.msra.mxu0 0.0
    %142 = vmatprep.subr.mxu0 0.0
    %143 = vmatpush1.msra.mxu0 0.0
    %144 = vmatprep.subr.mxu0 0.0
    %145 = vmatpush1.msra.mxu0 0.0
    %146 = vmatprep.subr.mxu0 0.0
    %147 = vmatpush1.msra.mxu0 0.0
    %148 = vmatprep.subr.mxu0 0.0
    %149 = vmatpush1.msra.mxu0 0.0
    %150 = vmatprep.subr.mxu0 0.0
    %151 = vmatpush1.msra.mxu0 0.0
    %152 = vmatprep.subr.mxu0 0.0
    %153 = vmatpush1.msra.mxu0 0.0
    %154 = vmatprep.subr.mxu0 0.0
    %155 = vmatpush1.msra.mxu0 0.0
    %156 = vmatprep.subr.mxu0 0.0
    %157 = vmatpush1.msra.mxu0 0.0
    %158 = vmatprep.subr.mxu0 0.0
    %159 = vmatpush1.msra.mxu0 0.0
    %160 = vmatprep.subr.mxu0 0.0
    %161 = vmatpush1.msra.mxu0 0.0
    %162 = vmatprep.subr.mxu0 0.0
    %163 = vmatpush1.msra.mxu0 0.0
    %164 = vmatprep.subr.mxu0 0.0
    %165 = vmatpush1.msra.mxu0 0.0
    %166 = vmatprep.subr.mxu0 0.0
    %167 = vmatpush1.msra.mxu0 0.0
    %168 = vmatprep.subr.mxu0 0.0
    %169 = vmatpush1.msra.mxu0 0.0
    %170 = vmatprep.subr.mxu0 0.0
    %171 = vmatpush1.msra.mxu0 0.0
    %172 = vmatprep.subr.mxu0 0.0
    %173 = vmatpush1.msra.mxu0 0.0
    %174 = vmatprep.subr.mxu0 0.0
    %175 = vmatpush1.msra.mxu0 0.0
    %176 = vmatprep.subr.mxu0 0.0
    %177 = vmatpush1.msra.mxu0 0.0
    %178 = vmatprep.subr.mxu0 0.0
    %179 = vmatpush1.msra.mxu0 0.0
    %180 = vmatprep.subr.mxu0 0.0
    %181 = vmatpush1.msra.mxu0 0.0
    %182 = vmatprep.subr.mxu0 0.0
    %183 = vmatpush1.msra.mxu0 0.0
    %184 = vmatprep.subr.mxu0 0.0
    %185 = vmatpush1.msra.mxu0 0.0
    %186 = vmatprep.subr.mxu0 0.0
    %187 = vmatpush1.msra.mxu0 0.0
    %188 = vmatprep.subr.mxu0 0.0
    %189 = vmatpush1.msra.mxu0 0.0
    %190 = vmatprep.mubr.f32.mxu0 0.0
    %191 = vmatmul.mubr.f32.gmra.mrb[0].mxu0 %v103
    %v192 = vpop.f32.mrb[0].mxu0
    %v193 = vadd.f32 %v99, %v192
    %v194 = vpop.f32.mrb[0].mxu0
    %195 = vmatprep.mubr.f32.mxu0 0.0
    %196 = vmatmul.mubr.f32.gmra.mrb[0].mxu0 %v106
    %v197 = vpop.f32.mrb[0].mxu0
    %v198 = vadd.f32 %v99, %v197
    %v199 = vpop.f32.mrb[0].mxu0
    %200 = vmatprep.mubr.f32.mxu0 0.0
    %201 = vmatmul.mubr.f32.gmra.mrb[0].mxu0 %v109
    %v202 = vpop.f32.mrb[0].mxu0
    %v203 = vadd.f32 %v99, %v202
    %v204 = vpop.f32.mrb[0].mxu0
    %205 = vmatprep.mubr.f32.mxu0 0.0
    %206 = vmatmul.mubr.f32.gmra.mrb[0].mxu0 %v112
    %v207 = vpop.f32.mrb[0].mxu0
    %v208 = vadd.f32 %v99, %v207
    %v209 = vpop.f32.mrb[0].mxu0
    %210 = vmatprep.mubr.f32.mxu0 0.0
    %211 = vmatmul.mubr.f32.gmra.mrb[0].mxu0 %v115
    %v212 = vpop.f32.mrb[0].mxu0
    %v213 = vadd.f32 %v99, %v212
    %v214 = vpop.f32.mrb[0].mxu0
    %215 = vmatprep.mubr.f32.mxu0 0.0
    %216 = vmatmul.mubr.f32.gmra.mrb[0].mxu0 %v118
    %v217 = vpop.f32.mrb[0].mxu0
    %v218 = vadd.f32 %v99, %v217
    %v219 = vpop.f32.mrb[0].mxu0
    %220 = vmatprep.mubr.f32.mxu0 0.0
    %221 = vmatmul.mubr.f32.gmra.mrb[0].mxu0 %v121
    %v222 = vpop.f32.mrb[0].mxu0
    %v223 = vadd.f32 %v99, %v222
    %v224 = vpop.f32.mrb[0].mxu0
    %225 = vmatprep.mubr.f32.mxu0 0.0
    %226 = vmatmul.mubr.f32.gmra.mrb[0].mxu0 %v124
    %v227 = vpop.f32.mrb[0].mxu0
    %v228 = vadd.f32 %v99, %v227
    %v229 = vpop.f32.mrb[0].mxu0
    %230 = vdwg.mxu0
    %231 = vst [vmem:[#allocation3] sm:$0xff] %v193
    %232 = vst [vmem:[#allocation3 + $0x8] sm:$0xff] %v198
    %233 = vst [vmem:[#allocation3 + $0x10] sm:$0xff] %v203
    %234 = vst [vmem:[#allocation3 + $0x18] sm:$0xff] %v208
    %235 = vst [vmem:[#allocation3 + $0x20] sm:$0xff] %v213
    %236 = vst [vmem:[#allocation3 + $0x28] sm:$0xff] %v218
    %237 = vst [vmem:[#allocation3 + $0x30] sm:$0xff] %v223
    %238 = vst [vmem:[#allocation3 + $0x38] sm:$0xff] %v228
    %s239 = scalar_lea.vmem [#allocation5], 16
    %v240 = vld [vmem:[%s239] sm:$0xff]
    %v241 = vld [vmem:[%s239 + $0x8] sm:$0xff]
    %s242 = scalar_lea.vmem %s3, 1
    %v243 = vld [vmem:[%s242] sm:$0x1]
    %v245 = vlaneseq
    %v246 = vshrl.u32 %v245, 7
    %v247 = vsub.s32 0, %v246
    %v248 = vrot.slane %v243, %v247
    %250 = vmatprep.subr.mxu0 0.0
    %251 = vmatpush1.msra.mxu0 %v240
    %252 = vmatprep.subr.mxu0 0.0
    %253 = vmatpush1.msra.mxu0 %v241
    %254 = vmatprep.subr.mxu0 0.0
    %255 = vmatpush1.msra.mxu0 0.0
    %256 = vmatprep.subr.mxu0 0.0
    %257 = vmatpush1.msra.mxu0 0.0
    %258 = vmatprep.subr.mxu0 0.0
    %259 = vmatpush1.msra.mxu0 0.0
    %260 = vmatprep.subr.mxu0 0.0
    %261 = vmatpush1.msra.mxu0 0.0
    %262 = vmatprep.subr.mxu0 0.0
    %263 = vmatpush1.msra.mxu0 0.0
    %264 = vmatprep.subr.mxu0 0.0
    %265 = vmatpush1.msra.mxu0 0.0
    %266 = vmatprep.subr.mxu0 0.0
    %267 = vmatpush1.msra.mxu0 0.0
    %268 = vmatprep.subr.mxu0 0.0
    %269 = vmatpush1.msra.mxu0 0.0
    %270 = vmatprep.subr.mxu0 0.0
    %271 = vmatpush1.msra.mxu0 0.0
    %272 = vmatprep.subr.mxu0 0.0
    %273 = vmatpush1.msra.mxu0 0.0
    %274 = vmatprep.subr.mxu0 0.0
    %275 = vmatpush1.msra.mxu0 0.0
    %276 = vmatprep.subr.mxu0 0.0
    %277 = vmatpush1.msra.mxu0 0.0
    %278 = vmatprep.subr.mxu0 0.0
    %279 = vmatpush1.msra.mxu0 0.0
    %280 = vmatprep.subr.mxu0 0.0
    %281 = vmatpush1.msra.mxu0 0.0
    %282 = vmatprep.subr.mxu0 0.0
    %283 = vmatpush1.msra.mxu0 0.0
    %284 = vmatprep.subr.mxu0 0.0
    %285 = vmatpush1.msra.mxu0 0.0
    %286 = vmatprep.subr.mxu0 0.0
    %287 = vmatpush1.msra.mxu0 0.0
    %288 = vmatprep.subr.mxu0 0.0
    %289 = vmatpush1.msra.mxu0 0.0
    %290 = vmatprep.subr.mxu0 0.0
    %291 = vmatpush1.msra.mxu0 0.0
    %292 = vmatprep.subr.mxu0 0.0
    %293 = vmatpush1.msra.mxu0 0.0
    %294 = vmatprep.subr.mxu0 0.0
    %295 = vmatpush1.msra.mxu0 0.0
    %296 = vmatprep.subr.mxu0 0.0
    %297 = vmatpush1.msra.mxu0 0.0
    %298 = vmatprep.subr.mxu0 0.0
    %299 = vmatpush1.msra.mxu0 0.0
    %300 = vmatprep.subr.mxu0 0.0
    %301 = vmatpush1.msra.mxu0 0.0
    %302 = vmatprep.subr.mxu0 0.0
    %303 = vmatpush1.msra.mxu0 0.0
    %304 = vmatprep.subr.mxu0 0.0
    %305 = vmatpush1.msra.mxu0 0.0
    %306 = vmatprep.subr.mxu0 0.0
    %307 = vmatpush1.msra.mxu0 0.0
    %308 = vmatprep.subr.mxu0 0.0
    %309 = vmatpush1.msra.mxu0 0.0
    %310 = vmatprep.subr.mxu0 0.0
    %311 = vmatpush1.msra.mxu0 0.0
    %312 = vmatprep.subr.mxu0 0.0
    %313 = vmatpush1.msra.mxu0 0.0
    %314 = vmatprep.mubr.f32.mxu0 0.0
    %315 = vmatmul.mubr.f32.gmra.mrb[0].mxu0 %v103
    %v316 = vpop.f32.mrb[0].mxu0
    %v317 = vadd.f32 %v248, %v316
    %v318 = vpop.f32.mrb[0].mxu0
    %319 = vmatprep.mubr.f32.mxu0 0.0
    %320 = vmatmul.mubr.f32.gmra.mrb[0].mxu0 %v106
    %v321 = vpop.f32.mrb[0].mxu0
    %v322 = vadd.f32 %v248, %v321
    %v323 = vpop.f32.mrb[0].mxu0
    %324 = vmatprep.mubr.f32.mxu0 0.0
    %325 = vmatmul.mubr.f32.gmra.mrb[0].mxu0 %v109
    %v326 = vpop.f32.mrb[0].mxu0
    %v327 = vadd.f32 %v248, %v326
    %v328 = vpop.f32.mrb[0].mxu0
    %329 = vmatprep.mubr.f32.mxu0 0.0
    %330 = vmatmul.mubr.f32.gmra.mrb[0].mxu0 %v112
    %v331 = vpop.f32.mrb[0].mxu0
    %v332 = vadd.f32 %v248, %v331
    %v333 = vpop.f32.mrb[0].mxu0
    %334 = vmatprep.mubr.f32.mxu0 0.0
    %335 = vmatmul.mubr.f32.gmra.mrb[0].mxu0 %v115
    %v336 = vpop.f32.mrb[0].mxu0
    %v337 = vadd.f32 %v248, %v336
    %v338 = vpop.f32.mrb[0].mxu0
    %339 = vmatprep.mubr.f32.mxu0 0.0
    %340 = vmatmul.mubr.f32.gmra.mrb[0].mxu0 %v118
    %v341 = vpop.f32.mrb[0].mxu0
    %v342 = vadd.f32 %v248, %v341
    %v343 = vpop.f32.mrb[0].mxu0
    %344 = vmatprep.mubr.f32.mxu0 0.0
    %345 = vmatmul.mubr.f32.gmra.mrb[0].mxu0 %v121
    %v346 = vpop.f32.mrb[0].mxu0
    %v347 = vadd.f32 %v248, %v346
    %v348 = vpop.f32.mrb[0].mxu0
    %349 = vmatprep.mubr.f32.mxu0 0.0
    %350 = vmatmul.mubr.f32.gmra.mrb[0].mxu0 %v124
    %v351 = vpop.f32.mrb[0].mxu0
    %v352 = vadd.f32 %v248, %v351
    %v353 = vpop.f32.mrb[0].mxu0
    %354 = vdwg.mxu0
    %355 = vst [vmem:[#allocation4] sm:$0xff] %v317
    %356 = vst [vmem:[#allocation4 + $0x8] sm:$0xff] %v322
    %357 = vst [vmem:[#allocation4 + $0x10] sm:$0xff] %v327
    %358 = vst [vmem:[#allocation4 + $0x18] sm:$0xff] %v332
    %359 = vst [vmem:[#allocation4 + $0x20] sm:$0xff] %v337
    %360 = vst [vmem:[#allocation4 + $0x28] sm:$0xff] %v342
    %361 = vst [vmem:[#allocation4 + $0x30] sm:$0xff] %v347
    %362 = vst [vmem:[#allocation4 + $0x38] sm:$0xff] %v352
    %v363 = vld [vmem:[%s2] sm:$0xff]
    %v364 = vld [vmem:[%s2 + $0x8] sm:$0xff]
    %v365 = vld [vmem:[%s2 + $0x10] sm:$0xff]
    %v366 = vld [vmem:[%s2 + $0x18] sm:$0xff]
    %s367 = scalar_lea.vmem %s2, 32
    %v368 = vld [vmem:[%s367] sm:$0xff]
    %v369 = vld [vmem:[%s367 + $0x8] sm:$0xff]
    %v370 = vld [vmem:[%s367 + $0x10] sm:$0xff]
    %v371 = vld [vmem:[%s367 + $0x18] sm:$0xff]
    %v372 = vld [vmem:[#allocation3] sm:$0xff]
    %vm373 = vcmask 261120
    %v375 = vsel %vm373, 0.0, 0
    %377 = vmatprep.subr.mxu0 0.0
    %378 = vmatpush1.msra.mxu0 %v363
    %379 = vmatprep.subr.mxu0 0.0
    %380 = vmatpush1.msra.mxu0 %v364
    %381 = vmatprep.subr.mxu0 0.0
    %382 = vmatpush1.msra.mxu0 %v365
    %383 = vmatprep.subr.mxu0 0.0
    %384 = vmatpush1.msra.mxu0 %v366
    %385 = vmatprep.subr.mxu0 0.0
    %386 = vmatpush1.msra.mxu0 0.0
    %387 = vmatprep.subr.mxu0 0.0
    %388 = vmatpush1.msra.mxu0 0.0
    %389 = vmatprep.subr.mxu0 0.0
    %390 = vmatpush1.msra.mxu0 0.0
    %391 = vmatprep.subr.mxu0 0.0
    %392 = vmatpush1.msra.mxu0 0.0
    %393 = vmatprep.subr.mxu0 0.0
    %394 = vmatpush1.msra.mxu0 0.0
    %395 = vmatprep.subr.mxu0 0.0
    %396 = vmatpush1.msra.mxu0 0.0
    %397 = vmatprep.subr.mxu0 0.0
    %398 = vmatpush1.msra.mxu0 0.0
    %399 = vmatprep.subr.mxu0 0.0
    %400 = vmatpush1.msra.mxu0 0.0
    %401 = vmatprep.subr.mxu0 0.0
    %402 = vmatpush1.msra.mxu0 0.0
    %403 = vmatprep.subr.mxu0 0.0
    %404 = vmatpush1.msra.mxu0 0.0
    %405 = vmatprep.subr.mxu0 0.0
    %406 = vmatpush1.msra.mxu0 0.0
    %407 = vmatprep.subr.mxu0 0.0
    %408 = vmatpush1.msra.mxu0 0.0
    %409 = vmatprep.subr.mxu0 0.0
    %410 = vmatpush1.msra.mxu0 0.0
    %411 = vmatprep.subr.mxu0 0.0
    %412 = vmatpush1.msra.mxu0 0.0
    %413 = vmatprep.subr.mxu0 0.0
    %414 = vmatpush1.msra.mxu0 0.0
    %415 = vmatprep.subr.mxu0 0.0
    %416 = vmatpush1.msra.mxu0 0.0
    %417 = vmatprep.subr.mxu0 0.0
    %418 = vmatpush1.msra.mxu0 0.0
    %419 = vmatprep.subr.mxu0 0.0
    %420 = vmatpush1.msra.mxu0 0.0
    %421 = vmatprep.subr.mxu0 0.0
    %422 = vmatpush1.msra.mxu0 0.0
    %423 = vmatprep.subr.mxu0 0.0
    %424 = vmatpush1.msra.mxu0 0.0
    %425 = vmatprep.subr.mxu0 0.0
    %426 = vmatpush1.msra.mxu0 0.0
    %427 = vmatprep.subr.mxu0 0.0
    %428 = vmatpush1.msra.mxu0 0.0
    %429 = vmatprep.subr.mxu0 0.0
    %430 = vmatpush1.msra.mxu0 0.0
    %431 = vmatprep.subr.mxu0 0.0
    %432 = vmatpush1.msra.mxu0 0.0
    %433 = vmatprep.subr.mxu0 0.0
    %434 = vmatpush1.msra.mxu0 0.0
    %435 = vmatprep.subr.mxu0 0.0
    %436 = vmatpush1.msra.mxu0 0.0
    %437 = vmatprep.subr.mxu0 0.0
    %438 = vmatpush1.msra.mxu0 0.0
    %439 = vmatprep.subr.mxu0 0.0
    %440 = vmatpush1.msra.mxu0 0.0
    %441 = vmatprep.mubr.f32.mxu0 0.0
    %442 = vmatmul.mubr.f32.gmra.mrb[0].mxu0 %v375
    %v443 = vpop.f32.mrb[0].mxu0
    %v444 = vadd.f32 0.0, %v443
    %v445 = vpop.f32.mrb[0].mxu0
    %446 = vdwg.mxu0
    %v447 = vadd.f32 %v372, %v444
    %s448 = scalar_lea.vmem [#allocation4], 56
    %v449 = vld [vmem:[%s448] sm:$0xff]
    %450 = vmatprep.subr.mxu0 0.0
    %451 = vmatpush1.msra.mxu0 %v368
    %452 = vmatprep.subr.mxu0 0.0
    %453 = vmatpush1.msra.mxu0 %v369
    %454 = vmatprep.subr.mxu0 0.0
    %455 = vmatpush1.msra.mxu0 %v370
    %456 = vmatprep.subr.mxu0 0.0
    %457 = vmatpush1.msra.mxu0 %v371
    %458 = vmatprep.subr.mxu0 0.0
    %459 = vmatpush1.msra.mxu0 0.0
    %460 = vmatprep.subr.mxu0 0.0
    %461 = vmatpush1.msra.mxu0 0.0
    %462 = vmatprep.subr.mxu0 0.0
    %463 = vmatpush1.msra.mxu0 0.0
    %464 = vmatprep.subr.mxu0 0.0
    %465 = vmatpush1.msra.mxu0 0.0
    %466 = vmatprep.subr.mxu0 0.0
    %467 = vmatpush1.msra.mxu0 0.0
    %468 = vmatprep.subr.mxu0 0.0
    %469 = vmatpush1.msra.mxu0 0.0
    %470 = vmatprep.subr.mxu0 0.0
    %471 = vmatpush1.msra.mxu0 0.0
    %472 = vmatprep.subr.mxu0 0.0
    %473 = vmatpush1.msra.mxu0 0.0
    %474 = vmatprep.subr.mxu0 0.0
    %475 = vmatpush1.msra.mxu0 0.0
    %476 = vmatprep.subr.mxu0 0.0
    %477 = vmatpush1.msra.mxu0 0.0
    %478 = vmatprep.subr.mxu0 0.0
    %479 = vmatpush1.msra.mxu0 0.0
    %480 = vmatprep.subr.mxu0 0.0
    %481 = vmatpush1.msra.mxu0 0.0
    %482 = vmatprep.subr.mxu0 0.0
    %483 = vmatpush1.msra.mxu0 0.0
    %484 = vmatprep.subr.mxu0 0.0
    %485 = vmatpush1.msra.mxu0 0.0
    %486 = vmatprep.subr.mxu0 0.0
    %487 = vmatpush1.msra.mxu0 0.0
    %488 = vmatprep.subr.mxu0 0.0
    %489 = vmatpush1.msra.mxu0 0.0
    %490 = vmatprep.subr.mxu0 0.0
    %491 = vmatpush1.msra.mxu0 0.0
    %492 = vmatprep.subr.mxu0 0.0
    %493 = vmatpush1.msra.mxu0 0.0
    %494 = vmatprep.subr.mxu0 0.0
    %495 = vmatpush1.msra.mxu0 0.0
    %496 = vmatprep.subr.mxu0 0.0
    %497 = vmatpush1.msra.mxu0 0.0
    %498 = vmatprep.subr.mxu0 0.0
    %499 = vmatpush1.msra.mxu0 0.0
    %500 = vmatprep.subr.mxu0 0.0
    %501 = vmatpush1.msra.mxu0 0.0
    %502 = vmatprep.subr.mxu0 0.0
    %503 = vmatpush1.msra.mxu0 0.0
    %504 = vmatprep.subr.mxu0 0.0
    %505 = vmatpush1.msra.mxu0 0.0
    %506 = vmatprep.subr.mxu0 0.0
    %507 = vmatpush1.msra.mxu0 0.0
    %508 = vmatprep.subr.mxu0 0.0
    %509 = vmatpush1.msra.mxu0 0.0
    %510 = vmatprep.subr.mxu0 0.0
    %511 = vmatpush1.msra.mxu0 0.0
    %512 = vmatprep.subr.mxu0 0.0
    %513 = vmatpush1.msra.mxu0 0.0
    %514 = vmatprep.mubr.f32.mxu0 0.0
    %515 = vmatmul.mubr.f32.gmra.mrb[0].mxu0 %v375
    %v516 = vpop.f32.mrb[0].mxu0
    %v517 = vadd.f32 0.0, %v516
    %v518 = vpop.f32.mrb[0].mxu0
    %519 = vdwg.mxu0
    %v520 = vadd.f32 %v449, %v517
    %v521 = vxor.u32 %v447, 2147483648
    %v522 = vmul.f32 %v521, 1.442695
    %v523 = vpow.pop %v522
    %v524 = vadd.f32 %v523, 1.0
    %v525 = vrcp.pop %v524
    %v526 = vmul.f32 1.0, %v525
    %v527 = vtanh.pop %v447
    %v528 = vsel %vm83, %v527, %v526
    %v529 = vmul.f32 %v528, 0.0
    %531 = vrot.lane.b32.xlu0 %v528, 64
    %v532 = vpop.permute.xlu0 %531
    %v534 = vmul.f32 %v528, %v532
    %536 = vrot.lane.b32.xlu0 %v534, 32
    %v537 = vpop.permute.xlu0 %536
    %v539 = vadd.f32 %v529, %v537
    %v540 = vtanh.pop %v539
    %542 = vrot.lane.b32.xlu0 %v540, 64
    %v543 = vpop.permute.xlu0 %542
    %v545 = vmul.f32 %v528, %v543
    %v546 = vxor.u32 %v520, 2147483648
    %v547 = vmul.f32 %v546, 1.442695
    %v548 = vpow.pop %v547
    %v549 = vadd.f32 %v548, 1.0
    %v550 = vrcp.pop %v549
    %v551 = vmul.f32 1.0, %v550
    %v552 = vtanh.pop %v520
    %v553 = vsel %vm83, %v552, %v551
    %v554 = vmul.f32 %v553, 0.0
    %556 = vrot.lane.b32.xlu0 %v553, 64
    %v557 = vpop.permute.xlu0 %556
    %v559 = vmul.f32 %v553, %v557
    %561 = vrot.lane.b32.xlu0 %v559, 32
    %v562 = vpop.permute.xlu0 %561
    %v564 = vadd.f32 %v554, %v562
    %v565 = vtanh.pop %v564
    %567 = vrot.lane.b32.xlu0 %v565, 64
    %v568 = vpop.permute.xlu0 %567
    %v570 = vmul.f32 %v553, %v568
    %572 = vrot.lane.b32.xlu0 %v545, 32
    %v573 = vpop.permute.xlu0 %572
    %575 = vst.msk [vmem:[#allocation2] sm:$0xff] %vm373, %v573
    %577 = vrot.lane.b32.xlu0 %v570, 64
    %v578 = vpop.permute.xlu0 %577
    %s580 = scalar_lea.vmem [#allocation2], 56
    %vm581 = vcmask 523520
    %582 = vst.msk [vmem:[%s580] sm:$0xff] %vm581, %v578
    %s583 = scalar_lea.vmem [#allocation3], 8
    %v584 = vld [vmem:[%s583] sm:$0xff]
    %v585 = vsel %vm373, %v573, 0
    %587 = vmatprep.subr.mxu0 0.0
    %588 = vmatpush1.msra.mxu0 %v363
    %589 = vmatprep.subr.mxu0 0.0
    %590 = vmatpush1.msra.mxu0 %v364
    %591 = vmatprep.subr.mxu0 0.0
    %592 = vmatpush1.msra.mxu0 %v365
    %593 = vmatprep.subr.mxu0 0.0
    %594 = vmatpush1.msra.mxu0 %v366
    %595 = vmatprep.subr.mxu0 0.0
    %596 = vmatpush1.msra.mxu0 0.0
    %597 = vmatprep.subr.mxu0 0.0
    %598 = vmatpush1.msra.mxu0 0.0
    %599 = vmatprep.subr.mxu0 0.0
    %600 = vmatpush1.msra.mxu0 0.0
    %601 = vmatprep.subr.mxu0 0.0
    %602 = vmatpush1.msra.mxu0 0.0
    %603 = vmatprep.subr.mxu0 0.0
    %604 = vmatpush1.msra.mxu0 0.0
    %605 = vmatprep.subr.mxu0 0.0
    %606 = vmatpush1.msra.mxu0 0.0
    %607 = vmatprep.subr.mxu0 0.0
    %608 = vmatpush1.msra.mxu0 0.0
    %609 = vmatprep.subr.mxu0 0.0
    %610 = vmatpush1.msra.mxu0 0.0
    %611 = vmatprep.subr.mxu0 0.0
    %612 = vmatpush1.msra.mxu0 0.0
    %613 = vmatprep.subr.mxu0 0.0
    %614 = vmatpush1.msra.mxu0 0.0
    %615 = vmatprep.subr.mxu0 0.0
    %616 = vmatpush1.msra.mxu0 0.0
    %617 = vmatprep.subr.mxu0 0.0
    %618 = vmatpush1.msra.mxu0 0.0
    %619 = vmatprep.subr.mxu0 0.0
    %620 = vmatpush1.msra.mxu0 0.0
    %621 = vmatprep.subr.mxu0 0.0
    %622 = vmatpush1.msra.mxu0 0.0
    %623 = vmatprep.subr.mxu0 0.0
    %624 = vmatpush1.msra.mxu0 0.0
    %625 = vmatprep.subr.mxu0 0.0
    %626 = vmatpush1.msra.mxu0 0.0
    %627 = vmatprep.subr.mxu0 0.0
    %628 = vmatpush1.msra.mxu0 0.0
    %629 = vmatprep.subr.mxu0 0.0
    %630 = vmatpush1.msra.mxu0 0.0
    %631 = vmatprep.subr.mxu0 0.0
    %632 = vmatpush1.msra.mxu0 0.0
    %633 = vmatprep.subr.mxu0 0.0
    %634 = vmatpush1.msra.mxu0 0.0
    %635 = vmatprep.subr.mxu0 0.0
    %636 = vmatpush1.msra.mxu0 0.0
    %637 = vmatprep.subr.mxu0 0.0
    %638 = vmatpush1.msra.mxu0 0.0
    %639 = vmatprep.subr.mxu0 0.0
    %640 = vmatpush1.msra.mxu0 0.0
    %641 = vmatprep.subr.mxu0 0.0
    %642 = vmatpush1.msra.mxu0 0.0
    %643 = vmatprep.subr.mxu0 0.0
    %644 = vmatpush1.msra.mxu0 0.0
    %645 = vmatprep.subr.mxu0 0.0
    %646 = vmatpush1.msra.mxu0 0.0
    %647 = vmatprep.subr.mxu0 0.0
    %648 = vmatpush1.msra.mxu0 0.0
    %649 = vmatprep.subr.mxu0 0.0
    %650 = vmatpush1.msra.mxu0 0.0
    %651 = vmatprep.mubr.f32.mxu0 0.0
    %652 = vmatmul.mubr.f32.gmra.mrb[0].mxu0 %v585
    %v653 = vpop.f32.mrb[0].mxu0
    %v654 = vadd.f32 0.0, %v653
    %v655 = vpop.f32.mrb[0].mxu0
    %656 = vdwg.mxu0
    %v657 = vadd.f32 %v584, %v654
    %s658 = scalar_lea.vmem [#allocation4], 48
    %v659 = vld [vmem:[%s658] sm:$0xff]
    %660 = vrot.lane.b32.xlu0 %v570, 32
    %v661 = vpop.permute.xlu0 %660
    %v662 = vsel %vm373, %v661, 0
    %664 = vmatprep.subr.mxu0 0.0
    %665 = vmatpush1.msra.mxu0 %v368
    %666 = vmatprep.subr.mxu0 0.0
    %667 = vmatpush1.msra.mxu0 %v369
    %668 = vmatprep.subr.mxu0 0.0
    %669 = vmatpush1.msra.mxu0 %v370
    %670 = vmatprep.subr.mxu0 0.0
    %671 = vmatpush1.msra.mxu0 %v371
    %672 = vmatprep.subr.mxu0 0.0
    %673 = vmatpush1.msra.mxu0 0.0
    %674 = vmatprep.subr.mxu0 0.0
    %675 = vmatpush1.msra.mxu0 0.0
    %676 = vmatprep.subr.mxu0 0.0
    %677 = vmatpush1.msra.mxu0 0.0
    %678 = vmatprep.subr.mxu0 0.0
    %679 = vmatpush1.msra.mxu0 0.0
    %680 = vmatprep.subr.mxu0 0.0
    %681 = vmatpush1.msra.mxu0 0.0
    %682 = vmatprep.subr.mxu0 0.0
    %683 = vmatpush1.msra.mxu0 0.0
    %684 = vmatprep.subr.mxu0 0.0
    %685 = vmatpush1.msra.mxu0 0.0
    %686 = vmatprep.subr.mxu0 0.0
    %687 = vmatpush1.msra.mxu0 0.0
    %688 = vmatprep.subr.mxu0 0.0
    %689 = vmatpush1.msra.mxu0 0.0
    %690 = vmatprep.subr.mxu0 0.0
    %691 = vmatpush1.msra.mxu0 0.0
    %692 = vmatprep.subr.mxu0 0.0
    %693 = vmatpush1.msra.mxu0 0.0
    %694 = vmatprep.subr.mxu0 0.0
    %695 = vmatpush1.msra.mxu0 0.0
    %696 = vmatprep.subr.mxu0 0.0
    %697 = vmatpush1.msra.mxu0 0.0
    %698 = vmatprep.subr.mxu0 0.0
    %699 = vmatpush1.msra.mxu0 0.0
    %700 = vmatprep.subr.mxu0 0.0
    %701 = vmatpush1.msra.mxu0 0.0
    %702 = vmatprep.subr.mxu0 0.0
    %703 = vmatpush1.msra.mxu0 0.0
    %704 = vmatprep.subr.mxu0 0.0
    %705 = vmatpush1.msra.mxu0 0.0
    %706 = vmatprep.subr.mxu0 0.0
    %707 = vmatpush1.msra.mxu0 0.0
    %708 = vmatprep.subr.mxu0 0.0
    %709 = vmatpush1.msra.mxu0 0.0
    %710 = vmatprep.subr.mxu0 0.0
    %711 = vmatpush1.msra.mxu0 0.0
    %712 = vmatprep.subr.mxu0 0.0
    %713 = vmatpush1.msra.mxu0 0.0
    %714 = vmatprep.subr.mxu0 0.0
    %715 = vmatpush1.msra.mxu0 0.0
    %716 = vmatprep.subr.mxu0 0.0
    %717 = vmatpush1.msra.mxu0 0.0
    %718 = vmatprep.subr.mxu0 0.0
    %719 = vmatpush1.msra.mxu0 0.0
    %720 = vmatprep.subr.mxu0 0.0
    %721 = vmatpush1.msra.mxu0 0.0
    %722 = vmatprep.subr.mxu0 0.0
    %723 = vmatpush1.msra.mxu0 0.0
    %724 = vmatprep.subr.mxu0 0.0
    %725 = vmatpush1.msra.mxu0 0.0
    %726 = vmatprep.subr.mxu0 0.0
    %727 = vmatpush1.msra.mxu0 0.0
    %728 = vmatprep.mubr.f32.mxu0 0.0
    %729 = vmatmul.mubr.f32.gmra.mrb[0].mxu0 %v662
    %v730 = vpop.f32.mrb[0].mxu0
    %v731 = vadd.f32 0.0, %v730
    %v732 = vpop.f32.mrb[0].mxu0
    %733 = vdwg.mxu0
    %v734 = vadd.f32 %v659, %v731
    %v735 = vxor.u32 %v657, 2147483648
    %v736 = vmul.f32 %v735, 1.442695
    %v737 = vpow.pop %v736
    %v738 = vadd.f32 %v737, 1.0
    %v739 = vrcp.pop %v738
    %v740 = vmul.f32 1.0, %v739
    %v741 = vtanh.pop %v657
    %v742 = vsel %vm83, %v741, %v740
    %v743 = vmul.f32 %v742, %v539
    %745 = vrot.lane.b32.xlu0 %v742, 64
    %v746 = vpop.permute.xlu0 %745
    %v748 = vmul.f32 %v742, %v746
    %750 = vrot.lane.b32.xlu0 %v748, 32
    %v751 = vpop.permute.xlu0 %750
    %v753 = vadd.f32 %v743, %v751
    %v754 = vtanh.pop %v753
    %756 = vrot.lane.b32.xlu0 %v754, 64
    %v757 = vpop.permute.xlu0 %756
    %v759 = vmul.f32 %v742, %v757
    %v760 = vxor.u32 %v734, 2147483648
    %v761 = vmul.f32 %v760, 1.442695
    %v762 = vpow.pop %v761
    %v763 = vadd.f32 %v762, 1.0
    %v764 = vrcp.pop %v763
    %v765 = vmul.f32 1.0, %v764
    %v766 = vtanh.pop %v734
    %v767 = vsel %vm83, %v766, %v765
    %v768 = vmul.f32 %v767, %v564
    %770 = vrot.lane.b32.xlu0 %v767, 64
    %v771 = vpop.permute.xlu0 %770
    %v773 = vmul.f32 %v767, %v771
    %775 = vrot.lane.b32.xlu0 %v773, 32
    %v776 = vpop.permute.xlu0 %775
    %v778 = vadd.f32 %v768, %v776
    %v779 = vtanh.pop %v778
    %781 = vrot.lane.b32.xlu0 %v779, 64
    %v782 = vpop.permute.xlu0 %781
    %v784 = vmul.f32 %v767, %v782
    %786 = vrot.lane.b32.xlu0 %v759, 32
    %v787 = vpop.permute.xlu0 %786
    %s789 = scalar_lea.vmem [#allocation2], 8
    %790 = vst.msk [vmem:[%s789] sm:$0xff] %vm373, %v787
    %792 = vrot.lane.b32.xlu0 %v784, 64
    %v793 = vpop.permute.xlu0 %792
    %s795 = scalar_lea.vmem [#allocation2], 48
    %796 = vst.msk [vmem:[%s795] sm:$0xff] %vm581, %v793
    %s797 = scalar_lea.vmem [#allocation3], 16
    %v798 = vld [vmem:[%s797] sm:$0xff]
    %v799 = vsel %vm373, %v787, 0
    %801 = vmatprep.subr.mxu0 0.0
    %802 = vmatpush1.msra.mxu0 %v363
    %803 = vmatprep.subr.mxu0 0.0
    %804 = vmatpush1.msra.mxu0 %v364
    %805 = vmatprep.subr.mxu0 0.0
    %806 = vmatpush1.msra.mxu0 %v365
    %807 = vmatprep.subr.mxu0 0.0
    %808 = vmatpush1.msra.mxu0 %v366
    %809 = vmatprep.subr.mxu0 0.0
    %810 = vmatpush1.msra.mxu0 0.0
    %811 = vmatprep.subr.mxu0 0.0
    %812 = vmatpush1.msra.mxu0 0.0
    %813 = vmatprep.subr.mxu0 0.0
    %814 = vmatpush1.msra.mxu0 0.0
    %815 = vmatprep.subr.mxu0 0.0
    %816 = vmatpush1.msra.mxu0 0.0
    %817 = vmatprep.subr.mxu0 0.0
    %818 = vmatpush1.msra.mxu0 0.0
    %819 = vmatprep.subr.mxu0 0.0
    %820 = vmatpush1.msra.mxu0 0.0
    %821 = vmatprep.subr.mxu0 0.0
    %822 = vmatpush1.msra.mxu0 0.0
    %823 = vmatprep.subr.mxu0 0.0
    %824 = vmatpush1.msra.mxu0 0.0
    %825 = vmatprep.subr.mxu0 0.0
    %826 = vmatpush1.msra.mxu0 0.0
    %827 = vmatprep.subr.mxu0 0.0
    %828 = vmatpush1.msra.mxu0 0.0
    %829 = vmatprep.subr.mxu0 0.0
    %830 = vmatpush1.msra.mxu0 0.0
    %831 = vmatprep.subr.mxu0 0.0
    %832 = vmatpush1.msra.mxu0 0.0
    %833 = vmatprep.subr.mxu0 0.0
    %834 = vmatpush1.msra.mxu0 0.0
    %835 = vmatprep.subr.mxu0 0.0
    %836 = vmatpush1.msra.mxu0 0.0
    %837 = vmatprep.subr.mxu0 0.0
    %838 = vmatpush1.msra.mxu0 0.0
    %839 = vmatprep.subr.mxu0 0.0
    %840 = vmatpush1.msra.mxu0 0.0
    %841 = vmatprep.subr.mxu0 0.0
    %842 = vmatpush1.msra.mxu0 0.0
    %843 = vmatprep.subr.mxu0 0.0
    %844 = vmatpush1.msra.mxu0 0.0
    %845 = vmatprep.subr.mxu0 0.0
    %846 = vmatpush1.msra.mxu0 0.0
    %847 = vmatprep.subr.mxu0 0.0
    %848 = vmatpush1.msra.mxu0 0.0
    %849 = vmatprep.subr.mxu0 0.0
    %850 = vmatpush1.msra.mxu0 0.0
    %851 = vmatprep.subr.mxu0 0.0
    %852 = vmatpush1.msra.mxu0 0.0
    %853 = vmatprep.subr.mxu0 0.0
    %854 = vmatpush1.msra.mxu0 0.0
    %855 = vmatprep.subr.mxu0 0.0
    %856 = vmatpush1.msra.mxu0 0.0
    %857 = vmatprep.subr.mxu0 0.0
    %858 = vmatpush1.msra.mxu0 0.0
    %859 = vmatprep.subr.mxu0 0.0
    %860 = vmatpush1.msra.mxu0 0.0
    %861 = vmatprep.subr.mxu0 0.0
    %862 = vmatpush1.msra.mxu0 0.0
    %863 = vmatprep.subr.mxu0 0.0
    %864 = vmatpush1.msra.mxu0 0.0
    %865 = vmatprep.mubr.f32.mxu0 0.0
    %866 = vmatmul.mubr.f32.gmra.mrb[0].mxu0 %v799
    %v867 = vpop.f32.mrb[0].mxu0
    %v868 = vadd.f32 0.0, %v867
    %v869 = vpop.f32.mrb[0].mxu0
    %870 = vdwg.mxu0
    %v871 = vadd.f32 %v798, %v868
    %s872 = scalar_lea.vmem [#allocation4], 40
    %v873 = vld [vmem:[%s872] sm:$0xff]
    %874 = vrot.lane.b32.xlu0 %v784, 32
    %v875 = vpop.permute.xlu0 %874
    %v876 = vsel %vm373, %v875, 0
    %878 = vmatprep.subr.mxu0 0.0
    %879 = vmatpush1.msra.mxu0 %v368
    %880 = vmatprep.subr.mxu0 0.0
    %881 = vmatpush1.msra.mxu0 %v369
    %882 = vmatprep.subr.mxu0 0.0
    %883 = vmatpush1.msra.mxu0 %v370
    %884 = vmatprep.subr.mxu0 0.0
    %885 = vmatpush1.msra.mxu0 %v371
    %886 = vmatprep.subr.mxu0 0.0
    %887 = vmatpush1.msra.mxu0 0.0
    %888 = vmatprep.subr.mxu0 0.0
    %889 = vmatpush1.msra.mxu0 0.0
    %890 = vmatprep.subr.mxu0 0.0
    %891 = vmatpush1.msra.mxu0 0.0
    %892 = vmatprep.subr.mxu0 0.0
    %893 = vmatpush1.msra.mxu0 0.0
    %894 = vmatprep.subr.mxu0 0.0
    %895 = vmatpush1.msra.mxu0 0.0
    %896 = vmatprep.subr.mxu0 0.0
    %897 = vmatpush1.msra.mxu0 0.0
    %898 = vmatprep.subr.mxu0 0.0
    %899 = vmatpush1.msra.mxu0 0.0
    %900 = vmatprep.subr.mxu0 0.0
    %901 = vmatpush1.msra.mxu0 0.0
    %902 = vmatprep.subr.mxu0 0.0
    %903 = vmatpush1.msra.mxu0 0.0
    %904 = vmatprep.subr.mxu0 0.0
    %905 = vmatpush1.msra.mxu0 0.0
    %906 = vmatprep.subr.mxu0 0.0
    %907 = vmatpush1.msra.mxu0 0.0
    %908 = vmatprep.subr.mxu0 0.0
    %909 = vmatpush1.msra.mxu0 0.0
    %910 = vmatprep.subr.mxu0 0.0
    %911 = vmatpush1.msra.mxu0 0.0
    %912 = vmatprep.subr.mxu0 0.0
    %913 = vmatpush1.msra.mxu0 0.0
    %914 = vmatprep.subr.mxu0 0.0
    %915 = vmatpush1.msra.mxu0 0.0
    %916 = vmatprep.subr.mxu0 0.0
    %917 = vmatpush1.msra.mxu0 0.0
    %918 = vmatprep.subr.mxu0 0.0
    %919 = vmatpush1.msra.mxu0 0.0
    %920 = vmatprep.subr.mxu0 0.0
    %921 = vmatpush1.msra.mxu0 0.0
    %922 = vmatprep.subr.mxu0 0.0
    %923 = vmatpush1.msra.mxu0 0.0
    %924 = vmatprep.subr.mxu0 0.0
    %925 = vmatpush1.msra.mxu0 0.0
    %926 = vmatprep.subr.mxu0 0.0
    %927 = vmatpush1.msra.mxu0 0.0
    %928 = vmatprep.subr.mxu0 0.0
    %929 = vmatpush1.msra.mxu0 0.0
    %930 = vmatprep.subr.mxu0 0.0
    %931 = vmatpush1.msra.mxu0 0.0
    %932 = vmatprep.subr.mxu0 0.0
    %933 = vmatpush1.msra.mxu0 0.0
    %934 = vmatprep.subr.mxu0 0.0
    %935 = vmatpush1.msra.mxu0 0.0
    %936 = vmatprep.subr.mxu0 0.0
    %937 = vmatpush1.msra.mxu0 0.0
    %938 = vmatprep.subr.mxu0 0.0
    %939 = vmatpush1.msra.mxu0 0.0
    %940 = vmatprep.subr.mxu0 0.0
    %941 = vmatpush1.msra.mxu0 0.0
    %942 = vmatprep.mubr.f32.mxu0 0.0
    %943 = vmatmul.mubr.f32.gmra.mrb[0].mxu0 %v876
    %v944 = vpop.f32.mrb[0].mxu0
    %v945 = vadd.f32 0.0, %v944
    %v946 = vpop.f32.mrb[0].mxu0
    %947 = vdwg.mxu0
    %v948 = vadd.f32 %v873, %v945
    %v949 = vxor.u32 %v871, 2147483648
    %v950 = vmul.f32 %v949, 1.442695
    %v951 = vpow.pop %v950
    %v952 = vadd.f32 %v951, 1.0
    %v953 = vrcp.pop %v952
    %v954 = vmul.f32 1.0, %v953
    %v955 = vtanh.pop %v871
    %v956 = vsel %vm83, %v955, %v954
    %v957 = vmul.f32 %v956, %v753
    %959 = vrot.lane.b32.xlu0 %v956, 64
    %v960 = vpop.permute.xlu0 %959
    %v962 = vmul.f32 %v956, %v960
    %964 = vrot.lane.b32.xlu0 %v962, 32
    %v965 = vpop.permute.xlu0 %964
    %v967 = vadd.f32 %v957, %v965
    %v968 = vtanh.pop %v967
    %970 = vrot.lane.b32.xlu0 %v968, 64
    %v971 = vpop.permute.xlu0 %970
    %v973 = vmul.f32 %v956, %v971
    %v974 = vxor.u32 %v948, 2147483648
    %v975 = vmul.f32 %v974, 1.442695
    %v976 = vpow.pop %v975
    %v977 = vadd.f32 %v976, 1.0
    %v978 = vrcp.pop %v977
    %v979 = vmul.f32 1.0, %v978
    %v980 = vtanh.pop %v948
    %v981 = vsel %vm83, %v980, %v979
    %v982 = vmul.f32 %v981, %v778
    %984 = vrot.lane.b32.xlu0 %v981, 64
    %v985 = vpop.permute.xlu0 %984
    %v987 = vmul.f32 %v981, %v985
    %989 = vrot.lane.b32.xlu0 %v987, 32
    %v990 = vpop.permute.xlu0 %989
    %v992 = vadd.f32 %v982, %v990
    %v993 = vtanh.pop %v992
    %995 = vrot.lane.b32.xlu0 %v993, 64
    %v996 = vpop.permute.xlu0 %995
    %v998 = vmul.f32 %v981, %v996
    %1000 = vrot.lane.b32.xlu0 %v973, 32
    %v1001 = vpop.permute.xlu0 %1000
    %s1003 = scalar_lea.vmem [#allocation2], 16
    %1004 = vst.msk [vmem:[%s1003] sm:$0xff] %vm373, %v1001
    %1006 = vrot.lane.b32.xlu0 %v998, 64
    %v1007 = vpop.permute.xlu0 %1006
    %s1009 = scalar_lea.vmem [#allocation2], 40
    %1010 = vst.msk [vmem:[%s1009] sm:$0xff] %vm581, %v1007
    %s1011 = scalar_lea.vmem [#allocation3], 24
    %v1012 = vld [vmem:[%s1011] sm:$0xff]
    %v1013 = vsel %vm373, %v1001, 0
    %1015 = vmatprep.subr.mxu0 0.0
    %1016 = vmatpush1.msra.mxu0 %v363
    %1017 = vmatprep.subr.mxu0 0.0
    %1018 = vmatpush1.msra.mxu0 %v364
    %1019 = vmatprep.subr.mxu0 0.0
    %1020 = vmatpush1.msra.mxu0 %v365
    %1021 = vmatprep.subr.mxu0 0.0
    %1022 = vmatpush1.msra.mxu0 %v366
    %1023 = vmatprep.subr.mxu0 0.0
    %1024 = vmatpush1.msra.mxu0 0.0
    %1025 = vmatprep.subr.mxu0 0.0
    %1026 = vmatpush1.msra.mxu0 0.0
    %1027 = vmatprep.subr.mxu0 0.0
    %1028 = vmatpush1.msra.mxu0 0.0
    %1029 = vmatprep.subr.mxu0 0.0
    %1030 = vmatpush1.msra.mxu0 0.0
    %1031 = vmatprep.subr.mxu0 0.0
    %1032 = vmatpush1.msra.mxu0 0.0
    %1033 = vmatprep.subr.mxu0 0.0
    %1034 = vmatpush1.msra.mxu0 0.0
    %1035 = vmatprep.subr.mxu0 0.0
    %1036 = vmatpush1.msra.mxu0 0.0
    %1037 = vmatprep.subr.mxu0 0.0
    %1038 = vmatpush1.msra.mxu0 0.0
    %1039 = vmatprep.subr.mxu0 0.0
    %1040 = vmatpush1.msra.mxu0 0.0
    %1041 = vmatprep.subr.mxu0 0.0
    %1042 = vmatpush1.msra.mxu0 0.0
    %1043 = vmatprep.subr.mxu0 0.0
    %1044 = vmatpush1.msra.mxu0 0.0
    %1045 = vmatprep.subr.mxu0 0.0
    %1046 = vmatpush1.msra.mxu0 0.0
    %1047 = vmatprep.subr.mxu0 0.0
    %1048 = vmatpush1.msra.mxu0 0.0
    %1049 = vmatprep.subr.mxu0 0.0
    %1050 = vmatpush1.msra.mxu0 0.0
    %1051 = vmatprep.subr.mxu0 0.0
    %1052 = vmatpush1.msra.mxu0 0.0
    %1053 = vmatprep.subr.mxu0 0.0
    %1054 = vmatpush1.msra.mxu0 0.0
    %1055 = vmatprep.subr.mxu0 0.0
    %1056 = vmatpush1.msra.mxu0 0.0
    %1057 = vmatprep.subr.mxu0 0.0
    %1058 = vmatpush1.msra.mxu0 0.0
    %1059 = vmatprep.subr.mxu0 0.0
    %1060 = vmatpush1.msra.mxu0 0.0
    %1061 = vmatprep.subr.mxu0 0.0
    %1062 = vmatpush1.msra.mxu0 0.0
    %1063 = vmatprep.subr.mxu0 0.0
    %1064 = vmatpush1.msra.mxu0 0.0
    %1065 = vmatprep.subr.mxu0 0.0
    %1066 = vmatpush1.msra.mxu0 0.0
    %1067 = vmatprep.subr.mxu0 0.0
    %1068 = vmatpush1.msra.mxu0 0.0
    %1069 = vmatprep.subr.mxu0 0.0
    %1070 = vmatpush1.msra.mxu0 0.0
    %1071 = vmatprep.subr.mxu0 0.0
    %1072 = vmatpush1.msra.mxu0 0.0
    %1073 = vmatprep.subr.mxu0 0.0
    %1074 = vmatpush1.msra.mxu0 0.0
    %1075 = vmatprep.subr.mxu0 0.0
    %1076 = vmatpush1.msra.mxu0 0.0
    %1077 = vmatprep.subr.mxu0 0.0
    %1078 = vmatpush1.msra.mxu0 0.0
    %1079 = vmatprep.mubr.f32.mxu0 0.0
    %1080 = vmatmul.mubr.f32.gmra.mrb[0].mxu0 %v1013
    %v1081 = vpop.f32.mrb[0].mxu0
    %v1082 = vadd.f32 0.0, %v1081
    %v1083 = vpop.f32.mrb[0].mxu0
    %1084 = vdwg.mxu0
    %v1085 = vadd.f32 %v1012, %v1082
    %s1086 = scalar_lea.vmem [#allocation4], 32
    %v1087 = vld [vmem:[%s1086] sm:$0xff]
    %1088 = vrot.lane.b32.xlu0 %v998, 32
    %v1089 = vpop.permute.xlu0 %1088
    %v1090 = vsel %vm373, %v1089, 0
    %1092 = vmatprep.subr.mxu0 0.0
    %1093 = vmatpush1.msra.mxu0 %v368
    %1094 = vmatprep.subr.mxu0 0.0
    %1095 = vmatpush1.msra.mxu0 %v369
    %1096 = vmatprep.subr.mxu0 0.0
    %1097 = vmatpush1.msra.mxu0 %v370
    %1098 = vmatprep.subr.mxu0 0.0
    %1099 = vmatpush1.msra.mxu0 %v371
    %1100 = vmatprep.subr.mxu0 0.0
    %1101 = vmatpush1.msra.mxu0 0.0
    %1102 = vmatprep.subr.mxu0 0.0
    %1103 = vmatpush1.msra.mxu0 0.0
    %1104 = vmatprep.subr.mxu0 0.0
    %1105 = vmatpush1.msra.mxu0 0.0
    %1106 = vmatprep.subr.mxu0 0.0
    %1107 = vmatpush1.msra.mxu0 0.0
    %1108 = vmatprep.subr.mxu0 0.0
    %1109 = vmatpush1.msra.mxu0 0.0
    %1110 = vmatprep.subr.mxu0 0.0
    %1111 = vmatpush1.msra.mxu0 0.0
    %1112 = vmatprep.subr.mxu0 0.0
    %1113 = vmatpush1.msra.mxu0 0.0
    %1114 = vmatprep.subr.mxu0 0.0
    %1115 = vmatpush1.msra.mxu0 0.0
    %1116 = vmatprep.subr.mxu0 0.0
    %1117 = vmatpush1.msra.mxu0 0.0
    %1118 = vmatprep.subr.mxu0 0.0
    %1119 = vmatpush1.msra.mxu0 0.0
    %1120 = vmatprep.subr.mxu0 0.0
    %1121 = vmatpush1.msra.mxu0 0.0
    %1122 = vmatprep.subr.mxu0 0.0
    %1123 = vmatpush1.msra.mxu0 0.0
    %1124 = vmatprep.subr.mxu0 0.0
    %1125 = vmatpush1.msra.mxu0 0.0
    %1126 = vmatprep.subr.mxu0 0.0
    %1127 = vmatpush1.msra.mxu0 0.0
    %1128 = vmatprep.subr.mxu0 0.0
    %1129 = vmatpush1.msra.mxu0 0.0
    %1130 = vmatprep.subr.mxu0 0.0
    %1131 = vmatpush1.msra.mxu0 0.0
    %1132 = vmatprep.subr.mxu0 0.0
    %1133 = vmatpush1.msra.mxu0 0.0
    %1134 = vmatprep.subr.mxu0 0.0
    %1135 = vmatpush1.msra.mxu0 0.0
    %1136 = vmatprep.subr.mxu0 0.0
    %1137 = vmatpush1.msra.mxu0 0.0
    %1138 = vmatprep.subr.mxu0 0.0
    %1139 = vmatpush1.msra.mxu0 0.0
    %1140 = vmatprep.subr.mxu0 0.0
    %1141 = vmatpush1.msra.mxu0 0.0
    %1142 = vmatprep.subr.mxu0 0.0
    %1143 = vmatpush1.msra.mxu0 0.0
    %1144 = vmatprep.subr.mxu0 0.0
    %1145 = vmatpush1.msra.mxu0 0.0
    %1146 = vmatprep.subr.mxu0 0.0
    %1147 = vmatpush1.msra.mxu0 0.0
    %1148 = vmatprep.subr.mxu0 0.0
    %1149 = vmatpush1.msra.mxu0 0.0
    %1150 = vmatprep.subr.mxu0 0.0
    %1151 = vmatpush1.msra.mxu0 0.0
    %1152 = vmatprep.subr.mxu0 0.0
    %1153 = vmatpush1.msra.mxu0 0.0
    %1154 = vmatprep.subr.mxu0 0.0
    %1155 = vmatpush1.msra.mxu0 0.0
    %1156 = vmatprep.mubr.f32.mxu0 0.0
    %1157 = vmatmul.mubr.f32.gmra.mrb[0].mxu0 %v1090
    %v1158 = vpop.f32.mrb[0].mxu0
    %v1159 = vadd.f32 0.0, %v1158
    %v1160 = vpop.f32.mrb[0].mxu0
    %1161 = vdwg.mxu0
    %v1162 = vadd.f32 %v1087, %v1159
    %v1163 = vxor.u32 %v1085, 2147483648
    %v1164 = vmul.f32 %v1163, 1.442695
    %v1165 = vpow.pop %v1164
    %v1166 = vadd.f32 %v1165, 1.0
    %v1167 = vrcp.pop %v1166
    %v1168 = vmul.f32 1.0, %v1167
    %v1169 = vtanh.pop %v1085
    %v1170 = vsel %vm83, %v1169, %v1168
    %v1171 = vmul.f32 %v1170, %v967
    %1173 = vrot.lane.b32.xlu0 %v1170, 64
    %v1174 = vpop.permute.xlu0 %1173
    %v1176 = vmul.f32 %v1170, %v1174
    %1178 = vrot.lane.b32.xlu0 %v1176, 32
    %v1179 = vpop.permute.xlu0 %1178
    %v1181 = vadd.f32 %v1171, %v1179
    %v1182 = vtanh.pop %v1181
    %1184 = vrot.lane.b32.xlu0 %v1182, 64
    %v1185 = vpop.permute.xlu0 %1184
    %v1187 = vmul.f32 %v1170, %v1185
    %v1188 = vxor.u32 %v1162, 2147483648
    %v1189 = vmul.f32 %v1188, 1.442695
    %v1190 = vpow.pop %v1189
    %v1191 = vadd.f32 %v1190, 1.0
    %v1192 = vrcp.pop %v1191
    %v1193 = vmul.f32 1.0, %v1192
    %v1194 = vtanh.pop %v1162
    %v1195 = vsel %vm83, %v1194, %v1193
    %v1196 = vmul.f32 %v1195, %v992
    %1198 = vrot.lane.b32.xlu0 %v1195, 64
    %v1199 = vpop.permute.xlu0 %1198
    %v1201 = vmul.f32 %v1195, %v1199
    %1203 = vrot.lane.b32.xlu0 %v1201, 32
    %v1204 = vpop.permute.xlu0 %1203
    %v1206 = vadd.f32 %v1196, %v1204
    %v1207 = vtanh.pop %v1206
    %1209 = vrot.lane.b32.xlu0 %v1207, 64
    %v1210 = vpop.permute.xlu0 %1209
    %v1212 = vmul.f32 %v1195, %v1210
    %1214 = vrot.lane.b32.xlu0 %v1187, 32
    %v1215 = vpop.permute.xlu0 %1214
    %s1217 = scalar_lea.vmem [#allocation2], 24
    %1218 = vst.msk [vmem:[%s1217] sm:$0xff] %vm373, %v1215
    %1220 = vrot.lane.b32.xlu0 %v1212, 64
    %v1221 = vpop.permute.xlu0 %1220
    %s1223 = scalar_lea.vmem [#allocation2], 32
    %1224 = vst.msk [vmem:[%s1223] sm:$0xff] %vm581, %v1221
    %s1225 = scalar_lea.vmem [#allocation3], 32
    %v1226 = vld [vmem:[%s1225] sm:$0xff]
    %v1227 = vsel %vm373, %v1215, 0
    %1229 = vmatprep.subr.mxu0 0.0
    %1230 = vmatpush1.msra.mxu0 %v363
    %1231 = vmatprep.subr.mxu0 0.0
    %1232 = vmatpush1.msra.mxu0 %v364
    %1233 = vmatprep.subr.mxu0 0.0
    %1234 = vmatpush1.msra.mxu0 %v365
    %1235 = vmatprep.subr.mxu0 0.0
    %1236 = vmatpush1.msra.mxu0 %v366
    %1237 = vmatprep.subr.mxu0 0.0
    %1238 = vmatpush1.msra.mxu0 0.0
    %1239 = vmatprep.subr.mxu0 0.0
    %1240 = vmatpush1.msra.mxu0 0.0
    %1241 = vmatprep.subr.mxu0 0.0
    %1242 = vmatpush1.msra.mxu0 0.0
    %1243 = vmatprep.subr.mxu0 0.0
    %1244 = vmatpush1.msra.mxu0 0.0
    %1245 = vmatprep.subr.mxu0 0.0
    %1246 = vmatpush1.msra.mxu0 0.0
    %1247 = vmatprep.subr.mxu0 0.0
    %1248 = vmatpush1.msra.mxu0 0.0
    %1249 = vmatprep.subr.mxu0 0.0
    %1250 = vmatpush1.msra.mxu0 0.0
    %1251 = vmatprep.subr.mxu0 0.0
    %1252 = vmatpush1.msra.mxu0 0.0
    %1253 = vmatprep.subr.mxu0 0.0
    %1254 = vmatpush1.msra.mxu0 0.0
    %1255 = vmatprep.subr.mxu0 0.0
    %1256 = vmatpush1.msra.mxu0 0.0
    %1257 = vmatprep.subr.mxu0 0.0
    %1258 = vmatpush1.msra.mxu0 0.0
    %1259 = vmatprep.subr.mxu0 0.0
    %1260 = vmatpush1.msra.mxu0 0.0
    %1261 = vmatprep.subr.mxu0 0.0
    %1262 = vmatpush1.msra.mxu0 0.0
    %1263 = vmatprep.subr.mxu0 0.0
    %1264 = vmatpush1.msra.mxu0 0.0
    %1265 = vmatprep.subr.mxu0 0.0
    %1266 = vmatpush1.msra.mxu0 0.0
    %1267 = vmatprep.subr.mxu0 0.0
    %1268 = vmatpush1.msra.mxu0 0.0
    %1269 = vmatprep.subr.mxu0 0.0
    %1270 = vmatpush1.msra.mxu0 0.0
    %1271 = vmatprep.subr.mxu0 0.0
    %1272 = vmatpush1.msra.mxu0 0.0
    %1273 = vmatprep.subr.mxu0 0.0
    %1274 = vmatpush1.msra.mxu0 0.0
    %1275 = vmatprep.subr.mxu0 0.0
    %1276 = vmatpush1.msra.mxu0 0.0
    %1277 = vmatprep.subr.mxu0 0.0
    %1278 = vmatpush1.msra.mxu0 0.0
    %1279 = vmatprep.subr.mxu0 0.0
    %1280 = vmatpush1.msra.mxu0 0.0
    %1281 = vmatprep.subr.mxu0 0.0
    %1282 = vmatpush1.msra.mxu0 0.0
    %1283 = vmatprep.subr.mxu0 0.0
    %1284 = vmatpush1.msra.mxu0 0.0
    %1285 = vmatprep.subr.mxu0 0.0
    %1286 = vmatpush1.msra.mxu0 0.0
    %1287 = vmatprep.subr.mxu0 0.0
    %1288 = vmatpush1.msra.mxu0 0.0
    %1289 = vmatprep.subr.mxu0 0.0
    %1290 = vmatpush1.msra.mxu0 0.0
    %1291 = vmatprep.subr.mxu0 0.0
    %1292 = vmatpush1.msra.mxu0 0.0
    %1293 = vmatprep.mubr.f32.mxu0 0.0
    %1294 = vmatmul.mubr.f32.gmra.mrb[0].mxu0 %v1227
    %v1295 = vpop.f32.mrb[0].mxu0
    %v1296 = vadd.f32 0.0, %v1295
    %v1297 = vpop.f32.mrb[0].mxu0
    %1298 = vdwg.mxu0
    %v1299 = vadd.f32 %v1226, %v1296
    %s1300 = scalar_lea.vmem [#allocation4], 24
    %v1301 = vld [vmem:[%s1300] sm:$0xff]
    %1302 = vrot.lane.b32.xlu0 %v1212, 32
    %v1303 = vpop.permute.xlu0 %1302
    %v1304 = vsel %vm373, %v1303, 0
    %1306 = vmatprep.subr.mxu0 0.0
    %1307 = vmatpush1.msra.mxu0 %v368
    %1308 = vmatprep.subr.mxu0 0.0
    %1309 = vmatpush1.msra.mxu0 %v369
    %1310 = vmatprep.subr.mxu0 0.0
    %1311 = vmatpush1.msra.mxu0 %v370
    %1312 = vmatprep.subr.mxu0 0.0
    %1313 = vmatpush1.msra.mxu0 %v371
    %1314 = vmatprep.subr.mxu0 0.0
    %1315 = vmatpush1.msra.mxu0 0.0
    %1316 = vmatprep.subr.mxu0 0.0
    %1317 = vmatpush1.msra.mxu0 0.0
    %1318 = vmatprep.subr.mxu0 0.0
    %1319 = vmatpush1.msra.mxu0 0.0
    %1320 = vmatprep.subr.mxu0 0.0
    %1321 = vmatpush1.msra.mxu0 0.0
    %1322 = vmatprep.subr.mxu0 0.0
    %1323 = vmatpush1.msra.mxu0 0.0
    %1324 = vmatprep.subr.mxu0 0.0
    %1325 = vmatpush1.msra.mxu0 0.0
    %1326 = vmatprep.subr.mxu0 0.0
    %1327 = vmatpush1.msra.mxu0 0.0
    %1328 = vmatprep.subr.mxu0 0.0
    %1329 = vmatpush1.msra.mxu0 0.0
    %1330 = vmatprep.subr.mxu0 0.0
    %1331 = vmatpush1.msra.mxu0 0.0
    %1332 = vmatprep.subr.mxu0 0.0
    %1333 = vmatpush1.msra.mxu0 0.0
    %1334 = vmatprep.subr.mxu0 0.0
    %1335 = vmatpush1.msra.mxu0 0.0
    %1336 = vmatprep.subr.mxu0 0.0
    %1337 = vmatpush1.msra.mxu0 0.0
    %1338 = vmatprep.subr.mxu0 0.0
    %1339 = vmatpush1.msra.mxu0 0.0
    %1340 = vmatprep.subr.mxu0 0.0
    %1341 = vmatpush1.msra.mxu0 0.0
    %1342 = vmatprep.subr.mxu0 0.0
    %1343 = vmatpush1.msra.mxu0 0.0
    %1344 = vmatprep.subr.mxu0 0.0
    %1345 = vmatpush1.msra.mxu0 0.0
    %1346 = vmatprep.subr.mxu0 0.0
    %1347 = vmatpush1.msra.mxu0 0.0
    %1348 = vmatprep.subr.mxu0 0.0
    %1349 = vmatpush1.msra.mxu0 0.0
    %1350 = vmatprep.subr.mxu0 0.0
    %1351 = vmatpush1.msra.mxu0 0.0
    %1352 = vmatprep.subr.mxu0 0.0
    %1353 = vmatpush1.msra.mxu0 0.0
    %1354 = vmatprep.subr.mxu0 0.0
    %1355 = vmatpush1.msra.mxu0 0.0
    %1356 = vmatprep.subr.mxu0 0.0
    %1357 = vmatpush1.msra.mxu0 0.0
    %1358 = vmatprep.subr.mxu0 0.0
    %1359 = vmatpush1.msra.mxu0 0.0
    %1360 = vmatprep.subr.mxu0 0.0
    %1361 = vmatpush1.msra.mxu0 0.0
    %1362 = vmatprep.subr.mxu0 0.0
    %1363 = vmatpush1.msra.mxu0 0.0
    %1364 = vmatprep.subr.mxu0 0.0
    %1365 = vmatpush1.msra.mxu0 0.0
    %1366 = vmatprep.subr.mxu0 0.0
    %1367 = vmatpush1.msra.mxu0 0.0
    %1368 = vmatprep.subr.mxu0 0.0
    %1369 = vmatpush1.msra.mxu0 0.0
    %1370 = vmatprep.mubr.f32.mxu0 0.0
    %1371 = vmatmul.mubr.f32.gmra.mrb[0].mxu0 %v1304
    %v1372 = vpop.f32.mrb[0].mxu0
    %v1373 = vadd.f32 0.0, %v1372
    %v1374 = vpop.f32.mrb[0].mxu0
    %1375 = vdwg.mxu0
    %v1376 = vadd.f32 %v1301, %v1373
    %v1377 = vxor.u32 %v1299, 2147483648
    %v1378 = vmul.f32 %v1377, 1.442695
    %v1379 = vpow.pop %v1378
    %v1380 = vadd.f32 %v1379, 1.0
    %v1381 = vrcp.pop %v1380
    %v1382 = vmul.f32 1.0, %v1381
    %v1383 = vtanh.pop %v1299
    %v1384 = vsel %vm83, %v1383, %v1382
    %v1385 = vmul.f32 %v1384, %v1181
    %1387 = vrot.lane.b32.xlu0 %v1384, 64
    %v1388 = vpop.permute.xlu0 %1387
    %v1390 = vmul.f32 %v1384, %v1388
    %1392 = vrot.lane.b32.xlu0 %v1390, 32
    %v1393 = vpop.permute.xlu0 %1392
    %v1395 = vadd.f32 %v1385, %v1393
    %v1396 = vtanh.pop %v1395
    %1398 = vrot.lane.b32.xlu0 %v1396, 64
    %v1399 = vpop.permute.xlu0 %1398
    %v1401 = vmul.f32 %v1384, %v1399
    %v1402 = vxor.u32 %v1376, 2147483648
    %v1403 = vmul.f32 %v1402, 1.442695
    %v1404 = vpow.pop %v1403
    %v1405 = vadd.f32 %v1404, 1.0
    %v1406 = vrcp.pop %v1405
    %v1407 = vmul.f32 1.0, %v1406
    %v1408 = vtanh.pop %v1376
    %v1409 = vsel %vm83, %v1408, %v1407
    %v1410 = vmul.f32 %v1409, %v1206
    %1412 = vrot.lane.b32.xlu0 %v1409, 64
    %v1413 = vpop.permute.xlu0 %1412
    %v1415 = vmul.f32 %v1409, %v1413
    %1417 = vrot.lane.b32.xlu0 %v1415, 32
    %v1418 = vpop.permute.xlu0 %1417
    %v1420 = vadd.f32 %v1410, %v1418
    %v1421 = vtanh.pop %v1420
    %1423 = vrot.lane.b32.xlu0 %v1421, 64
    %v1424 = vpop.permute.xlu0 %1423
    %v1426 = vmul.f32 %v1409, %v1424
    %1428 = vrot.lane.b32.xlu0 %v1401, 32
    %v1429 = vpop.permute.xlu0 %1428
    %1431 = vst.msk [vmem:[%s1223] sm:$0xff] %vm373, %v1429
    %1433 = vrot.lane.b32.xlu0 %v1426, 64
    %v1434 = vpop.permute.xlu0 %1433
    %1436 = vst.msk [vmem:[%s1217] sm:$0xff] %vm581, %v1434
    %s1437 = scalar_lea.vmem [#allocation3], 40
    %v1438 = vld [vmem:[%s1437] sm:$0xff]
    %v1439 = vsel %vm373, %v1429, 0
    %1441 = vmatprep.subr.mxu0 0.0
    %1442 = vmatpush1.msra.mxu0 %v363
    %1443 = vmatprep.subr.mxu0 0.0
    %1444 = vmatpush1.msra.mxu0 %v364
    %1445 = vmatprep.subr.mxu0 0.0
    %1446 = vmatpush1.msra.mxu0 %v365
    %1447 = vmatprep.subr.mxu0 0.0
    %1448 = vmatpush1.msra.mxu0 %v366
    %1449 = vmatprep.subr.mxu0 0.0
    %1450 = vmatpush1.msra.mxu0 0.0
    %1451 = vmatprep.subr.mxu0 0.0
    %1452 = vmatpush1.msra.mxu0 0.0
    %1453 = vmatprep.subr.mxu0 0.0
    %1454 = vmatpush1.msra.mxu0 0.0
    %1455 = vmatprep.subr.mxu0 0.0
    %1456 = vmatpush1.msra.mxu0 0.0
    %1457 = vmatprep.subr.mxu0 0.0
    %1458 = vmatpush1.msra.mxu0 0.0
    %1459 = vmatprep.subr.mxu0 0.0
    %1460 = vmatpush1.msra.mxu0 0.0
    %1461 = vmatprep.subr.mxu0 0.0
    %1462 = vmatpush1.msra.mxu0 0.0
    %1463 = vmatprep.subr.mxu0 0.0
    %1464 = vmatpush1.msra.mxu0 0.0
    %1465 = vmatprep.subr.mxu0 0.0
    %1466 = vmatpush1.msra.mxu0 0.0
    %1467 = vmatprep.subr.mxu0 0.0
    %1468 = vmatpush1.msra.mxu0 0.0
    %1469 = vmatprep.subr.mxu0 0.0
    %1470 = vmatpush1.msra.mxu0 0.0
    %1471 = vmatprep.subr.mxu0 0.0
    %1472 = vmatpush1.msra.mxu0 0.0
    %1473 = vmatprep.subr.mxu0 0.0
    %1474 = vmatpush1.msra.mxu0 0.0
    %1475 = vmatprep.subr.mxu0 0.0
    %1476 = vmatpush1.msra.mxu0 0.0
    %1477 = vmatprep.subr.mxu0 0.0
    %1478 = vmatpush1.msra.mxu0 0.0
    %1479 = vmatprep.subr.mxu0 0.0
    %1480 = vmatpush1.msra.mxu0 0.0
    %1481 = vmatprep.subr.mxu0 0.0
    %1482 = vmatpush1.msra.mxu0 0.0
    %1483 = vmatprep.subr.mxu0 0.0
    %1484 = vmatpush1.msra.mxu0 0.0
    %1485 = vmatprep.subr.mxu0 0.0
    %1486 = vmatpush1.msra.mxu0 0.0
    %1487 = vmatprep.subr.mxu0 0.0
    %1488 = vmatpush1.msra.mxu0 0.0
    %1489 = vmatprep.subr.mxu0 0.0
    %1490 = vmatpush1.msra.mxu0 0.0
    %1491 = vmatprep.subr.mxu0 0.0
    %1492 = vmatpush1.msra.mxu0 0.0
    %1493 = vmatprep.subr.mxu0 0.0
    %1494 = vmatpush1.msra.mxu0 0.0
    %1495 = vmatprep.subr.mxu0 0.0
    %1496 = vmatpush1.msra.mxu0 0.0
    %1497 = vmatprep.subr.mxu0 0.0
    %1498 = vmatpush1.msra.mxu0 0.0
    %1499 = vmatprep.subr.mxu0 0.0
    %1500 = vmatpush1.msra.mxu0 0.0
    %1501 = vmatprep.subr.mxu0 0.0
    %1502 = vmatpush1.msra.mxu0 0.0
    %1503 = vmatprep.subr.mxu0 0.0
    %1504 = vmatpush1.msra.mxu0 0.0
    %1505 = vmatprep.mubr.f32.mxu0 0.0
    %1506 = vmatmul.mubr.f32.gmra.mrb[0].mxu0 %v1439
    %v1507 = vpop.f32.mrb[0].mxu0
    %v1508 = vadd.f32 0.0, %v1507
    %v1509 = vpop.f32.mrb[0].mxu0
    %1510 = vdwg.mxu0
    %v1511 = vadd.f32 %v1438, %v1508
    %s1512 = scalar_lea.vmem [#allocation4], 16
    %v1513 = vld [vmem:[%s1512] sm:$0xff]
    %1514 = vrot.lane.b32.xlu0 %v1426, 32
    %v1515 = vpop.permute.xlu0 %1514
    %v1516 = vsel %vm373, %v1515, 0
    %1518 = vmatprep.subr.mxu0 0.0
    %1519 = vmatpush1.msra.mxu0 %v368
    %1520 = vmatprep.subr.mxu0 0.0
    %1521 = vmatpush1.msra.mxu0 %v369
    %1522 = vmatprep.subr.mxu0 0.0
    %1523 = vmatpush1.msra.mxu0 %v370
    %1524 = vmatprep.subr.mxu0 0.0
    %1525 = vmatpush1.msra.mxu0 %v371
    %1526 = vmatprep.subr.mxu0 0.0
    %1527 = vmatpush1.msra.mxu0 0.0
    %1528 = vmatprep.subr.mxu0 0.0
    %1529 = vmatpush1.msra.mxu0 0.0
    %1530 = vmatprep.subr.mxu0 0.0
    %1531 = vmatpush1.msra.mxu0 0.0
    %1532 = vmatprep.subr.mxu0 0.0
    %1533 = vmatpush1.msra.mxu0 0.0
    %1534 = vmatprep.subr.mxu0 0.0
    %1535 = vmatpush1.msra.mxu0 0.0
    %1536 = vmatprep.subr.mxu0 0.0
    %1537 = vmatpush1.msra.mxu0 0.0
    %1538 = vmatprep.subr.mxu0 0.0
    %1539 = vmatpush1.msra.mxu0 0.0
    %1540 = vmatprep.subr.mxu0 0.0
    %1541 = vmatpush1.msra.mxu0 0.0
    %1542 = vmatprep.subr.mxu0 0.0
    %1543 = vmatpush1.msra.mxu0 0.0
    %1544 = vmatprep.subr.mxu0 0.0
    %1545 = vmatpush1.msra.mxu0 0.0
    %1546 = vmatprep.subr.mxu0 0.0
    %1547 = vmatpush1.msra.mxu0 0.0
    %1548 = vmatprep.subr.mxu0 0.0
    %1549 = vmatpush1.msra.mxu0 0.0
    %1550 = vmatprep.subr.mxu0 0.0
    %1551 = vmatpush1.msra.mxu0 0.0
    %1552 = vmatprep.subr.mxu0 0.0
    %1553 = vmatpush1.msra.mxu0 0.0
    %1554 = vmatprep.subr.mxu0 0.0
    %1555 = vmatpush1.msra.mxu0 0.0
    %1556 = vmatprep.subr.mxu0 0.0
    %1557 = vmatpush1.msra.mxu0 0.0
    %1558 = vmatprep.subr.mxu0 0.0
    %1559 = vmatpush1.msra.mxu0 0.0
    %1560 = vmatprep.subr.mxu0 0.0
    %1561 = vmatpush1.msra.mxu0 0.0
    %1562 = vmatprep.subr.mxu0 0.0
    %1563 = vmatpush1.msra.mxu0 0.0
    %1564 = vmatprep.subr.mxu0 0.0
    %1565 = vmatpush1.msra.mxu0 0.0
    %1566 = vmatprep.subr.mxu0 0.0
    %1567 = vmatpush1.msra.mxu0 0.0
    %1568 = vmatprep.subr.mxu0 0.0
    %1569 = vmatpush1.msra.mxu0 0.0
    %1570 = vmatprep.subr.mxu0 0.0
    %1571 = vmatpush1.msra.mxu0 0.0
    %1572 = vmatprep.subr.mxu0 0.0
    %1573 = vmatpush1.msra.mxu0 0.0
    %1574 = vmatprep.subr.mxu0 0.0
    %1575 = vmatpush1.msra.mxu0 0.0
    %1576 = vmatprep.subr.mxu0 0.0
    %1577 = vmatpush1.msra.mxu0 0.0
    %1578 = vmatprep.subr.mxu0 0.0
    %1579 = vmatpush1.msra.mxu0 0.0
    %1580 = vmatprep.subr.mxu0 0.0
    %1581 = vmatpush1.msra.mxu0 0.0
    %1582 = vmatprep.mubr.f32.mxu0 0.0
    %1583 = vmatmul.mubr.f32.gmra.mrb[0].mxu0 %v1516
    %v1584 = vpop.f32.mrb[0].mxu0
    %v1585 = vadd.f32 0.0, %v1584
    %v1586 = vpop.f32.mrb[0].mxu0
    %1587 = vdwg.mxu0
    %v1588 = vadd.f32 %v1513, %v1585
    %v1589 = vxor.u32 %v1511, 2147483648
    %v1590 = vmul.f32 %v1589, 1.442695
    %v1591 = vpow.pop %v1590
    %v1592 = vadd.f32 %v1591, 1.0
    %v1593 = vrcp.pop %v1592
    %v1594 = vmul.f32 1.0, %v1593
    %v1595 = vtanh.pop %v1511
    %v1596 = vsel %vm83, %v1595, %v1594
    %v1597 = vmul.f32 %v1596, %v1395
    %1599 = vrot.lane.b32.xlu0 %v1596, 64
    %v1600 = vpop.permute.xlu0 %1599
    %v1602 = vmul.f32 %v1596, %v1600
    %1604 = vrot.lane.b32.xlu0 %v1602, 32
    %v1605 = vpop.permute.xlu0 %1604
    %v1607 = vadd.f32 %v1597, %v1605
    %v1608 = vtanh.pop %v1607
    %1610 = vrot.lane.b32.xlu0 %v1608, 64
    %v1611 = vpop.permute.xlu0 %1610
    %v1613 = vmul.f32 %v1596, %v1611
    %v1614 = vxor.u32 %v1588, 2147483648
    %v1615 = vmul.f32 %v1614, 1.442695
    %v1616 = vpow.pop %v1615
    %v1617 = vadd.f32 %v1616, 1.0
    %v1618 = vrcp.pop %v1617
    %v1619 = vmul.f32 1.0, %v1618
    %v1620 = vtanh.pop %v1588
    %v1621 = vsel %vm83, %v1620, %v1619
    %v1622 = vmul.f32 %v1621, %v1420
    %1624 = vrot.lane.b32.xlu0 %v1621, 64
    %v1625 = vpop.permute.xlu0 %1624
    %v1627 = vmul.f32 %v1621, %v1625
    %1629 = vrot.lane.b32.xlu0 %v1627, 32
    %v1630 = vpop.permute.xlu0 %1629
    %v1632 = vadd.f32 %v1622, %v1630
    %v1633 = vtanh.pop %v1632
    %1635 = vrot.lane.b32.xlu0 %v1633, 64
    %v1636 = vpop.permute.xlu0 %1635
    %v1638 = vmul.f32 %v1621, %v1636
    %1640 = vrot.lane.b32.xlu0 %v1613, 32
    %v1641 = vpop.permute.xlu0 %1640
    %1643 = vst.msk [vmem:[%s1009] sm:$0xff] %vm373, %v1641
    %1645 = vrot.lane.b32.xlu0 %v1638, 64
    %v1646 = vpop.permute.xlu0 %1645
    %1648 = vst.msk [vmem:[%s1003] sm:$0xff] %vm581, %v1646
    %s1649 = scalar_lea.vmem [#allocation3], 48
    %v1650 = vld [vmem:[%s1649] sm:$0xff]
    %v1651 = vsel %vm373, %v1641, 0
    %1653 = vmatprep.subr.mxu0 0.0
    %1654 = vmatpush1.msra.mxu0 %v363
    %1655 = vmatprep.subr.mxu0 0.0
    %1656 = vmatpush1.msra.mxu0 %v364
    %1657 = vmatprep.subr.mxu0 0.0
    %1658 = vmatpush1.msra.mxu0 %v365
    %1659 = vmatprep.subr.mxu0 0.0
    %1660 = vmatpush1.msra.mxu0 %v366
    %1661 = vmatprep.subr.mxu0 0.0
    %1662 = vmatpush1.msra.mxu0 0.0
    %1663 = vmatprep.subr.mxu0 0.0
    %1664 = vmatpush1.msra.mxu0 0.0
    %1665 = vmatprep.subr.mxu0 0.0
    %1666 = vmatpush1.msra.mxu0 0.0
    %1667 = vmatprep.subr.mxu0 0.0
    %1668 = vmatpush1.msra.mxu0 0.0
    %1669 = vmatprep.subr.mxu0 0.0
    %1670 = vmatpush1.msra.mxu0 0.0
    %1671 = vmatprep.subr.mxu0 0.0
    %1672 = vmatpush1.msra.mxu0 0.0
    %1673 = vmatprep.subr.mxu0 0.0
    %1674 = vmatpush1.msra.mxu0 0.0
    %1675 = vmatprep.subr.mxu0 0.0
    %1676 = vmatpush1.msra.mxu0 0.0
    %1677 = vmatprep.subr.mxu0 0.0
    %1678 = vmatpush1.msra.mxu0 0.0
    %1679 = vmatprep.subr.mxu0 0.0
    %1680 = vmatpush1.msra.mxu0 0.0
    %1681 = vmatprep.subr.mxu0 0.0
    %1682 = vmatpush1.msra.mxu0 0.0
    %1683 = vmatprep.subr.mxu0 0.0
    %1684 = vmatpush1.msra.mxu0 0.0
    %1685 = vmatprep.subr.mxu0 0.0
    %1686 = vmatpush1.msra.mxu0 0.0
    %1687 = vmatprep.subr.mxu0 0.0
    %1688 = vmatpush1.msra.mxu0 0.0
    %1689 = vmatprep.subr.mxu0 0.0
    %1690 = vmatpush1.msra.mxu0 0.0
    %1691 = vmatprep.subr.mxu0 0.0
    %1692 = vmatpush1.msra.mxu0 0.0
    %1693 = vmatprep.subr.mxu0 0.0
    %1694 = vmatpush1.msra.mxu0 0.0
    %1695 = vmatprep.subr.mxu0 0.0
    %1696 = vmatpush1.msra.mxu0 0.0
    %1697 = vmatprep.subr.mxu0 0.0
    %1698 = vmatpush1.msra.mxu0 0.0
    %1699 = vmatprep.subr.mxu0 0.0
    %1700 = vmatpush1.msra.mxu0 0.0
    %1701 = vmatprep.subr.mxu0 0.0
    %1702 = vmatpush1.msra.mxu0 0.0
    %1703 = vmatprep.subr.mxu0 0.0
    %1704 = vmatpush1.msra.mxu0 0.0
    %1705 = vmatprep.subr.mxu0 0.0
    %1706 = vmatpush1.msra.mxu0 0.0
    %1707 = vmatprep.subr.mxu0 0.0
    %1708 = vmatpush1.msra.mxu0 0.0
    %1709 = vmatprep.subr.mxu0 0.0
    %1710 = vmatpush1.msra.mxu0 0.0
    %1711 = vmatprep.subr.mxu0 0.0
    %1712 = vmatpush1.msra.mxu0 0.0
    %1713 = vmatprep.subr.mxu0 0.0
    %1714 = vmatpush1.msra.mxu0 0.0
    %1715 = vmatprep.subr.mxu0 0.0
    %1716 = vmatpush1.msra.mxu0 0.0
    %1717 = vmatprep.mubr.f32.mxu0 0.0
    %1718 = vmatmul.mubr.f32.gmra.mrb[0].mxu0 %v1651
    %v1719 = vpop.f32.mrb[0].mxu0
    %v1720 = vadd.f32 0.0, %v1719
    %v1721 = vpop.f32.mrb[0].mxu0
    %1722 = vdwg.mxu0
    %v1723 = vadd.f32 %v1650, %v1720
    %s1724 = scalar_lea.vmem [#allocation4], 8
    %v1725 = vld [vmem:[%s1724] sm:$0xff]
    %1726 = vrot.lane.b32.xlu0 %v1638, 32
    %v1727 = vpop.permute.xlu0 %1726
    %v1728 = vsel %vm373, %v1727, 0
    %1730 = vmatprep.subr.mxu0 0.0
    %1731 = vmatpush1.msra.mxu0 %v368
    %1732 = vmatprep.subr.mxu0 0.0
    %1733 = vmatpush1.msra.mxu0 %v369
    %1734 = vmatprep.subr.mxu0 0.0
    %1735 = vmatpush1.msra.mxu0 %v370
    %1736 = vmatprep.subr.mxu0 0.0
    %1737 = vmatpush1.msra.mxu0 %v371
    %1738 = vmatprep.subr.mxu0 0.0
    %1739 = vmatpush1.msra.mxu0 0.0
    %1740 = vmatprep.subr.mxu0 0.0
    %1741 = vmatpush1.msra.mxu0 0.0
    %1742 = vmatprep.subr.mxu0 0.0
    %1743 = vmatpush1.msra.mxu0 0.0
    %1744 = vmatprep.subr.mxu0 0.0
    %1745 = vmatpush1.msra.mxu0 0.0
    %1746 = vmatprep.subr.mxu0 0.0
    %1747 = vmatpush1.msra.mxu0 0.0
    %1748 = vmatprep.subr.mxu0 0.0
    %1749 = vmatpush1.msra.mxu0 0.0
    %1750 = vmatprep.subr.mxu0 0.0
    %1751 = vmatpush1.msra.mxu0 0.0
    %1752 = vmatprep.subr.mxu0 0.0
    %1753 = vmatpush1.msra.mxu0 0.0
    %1754 = vmatprep.subr.mxu0 0.0
    %1755 = vmatpush1.msra.mxu0 0.0
    %1756 = vmatprep.subr.mxu0 0.0
    %1757 = vmatpush1.msra.mxu0 0.0
    %1758 = vmatprep.subr.mxu0 0.0
    %1759 = vmatpush1.msra.mxu0 0.0
    %1760 = vmatprep.subr.mxu0 0.0
    %1761 = vmatpush1.msra.mxu0 0.0
    %1762 = vmatprep.subr.mxu0 0.0
    %1763 = vmatpush1.msra.mxu0 0.0
    %1764 = vmatprep.subr.mxu0 0.0
    %1765 = vmatpush1.msra.mxu0 0.0
    %1766 = vmatprep.subr.mxu0 0.0
    %1767 = vmatpush1.msra.mxu0 0.0
    %1768 = vmatprep.subr.mxu0 0.0
    %1769 = vmatpush1.msra.mxu0 0.0
    %1770 = vmatprep.subr.mxu0 0.0
    %1771 = vmatpush1.msra.mxu0 0.0
    %1772 = vmatprep.subr.mxu0 0.0
    %1773 = vmatpush1.msra.mxu0 0.0
    %1774 = vmatprep.subr.mxu0 0.0
    %1775 = vmatpush1.msra.mxu0 0.0
    %1776 = vmatprep.subr.mxu0 0.0
    %1777 = vmatpush1.msra.mxu0 0.0
    %1778 = vmatprep.subr.mxu0 0.0
    %1779 = vmatpush1.msra.mxu0 0.0
    %1780 = vmatprep.subr.mxu0 0.0
    %1781 = vmatpush1.msra.mxu0 0.0
    %1782 = vmatprep.subr.mxu0 0.0
    %1783 = vmatpush1.msra.mxu0 0.0
    %1784 = vmatprep.subr.mxu0 0.0
    %1785 = vmatpush1.msra.mxu0 0.0
    %1786 = vmatprep.subr.mxu0 0.0
    %1787 = vmatpush1.msra.mxu0 0.0
    %1788 = vmatprep.subr.mxu0 0.0
    %1789 = vmatpush1.msra.mxu0 0.0
    %1790 = vmatprep.subr.mxu0 0.0
    %1791 = vmatpush1.msra.mxu0 0.0
    %1792 = vmatprep.subr.mxu0 0.0
    %1793 = vmatpush1.msra.mxu0 0.0
    %1794 = vmatprep.mubr.f32.mxu0 0.0
    %1795 = vmatmul.mubr.f32.gmra.mrb[0].mxu0 %v1728
    %v1796 = vpop.f32.mrb[0].mxu0
    %v1797 = vadd.f32 0.0, %v1796
    %v1798 = vpop.f32.mrb[0].mxu0
    %1799 = vdwg.mxu0
    %v1800 = vadd.f32 %v1725, %v1797
    %v1801 = vxor.u32 %v1723, 2147483648
    %v1802 = vmul.f32 %v1801, 1.442695
    %v1803 = vpow.pop %v1802
    %v1804 = vadd.f32 %v1803, 1.0
    %v1805 = vrcp.pop %v1804
    %v1806 = vmul.f32 1.0, %v1805
    %v1807 = vtanh.pop %v1723
    %v1808 = vsel %vm83, %v1807, %v1806
    %v1809 = vmul.f32 %v1808, %v1607
    %1811 = vrot.lane.b32.xlu0 %v1808, 64
    %v1812 = vpop.permute.xlu0 %1811
    %v1814 = vmul.f32 %v1808, %v1812
    %1816 = vrot.lane.b32.xlu0 %v1814, 32
    %v1817 = vpop.permute.xlu0 %1816
    %v1819 = vadd.f32 %v1809, %v1817
    %v1820 = vtanh.pop %v1819
    %1822 = vrot.lane.b32.xlu0 %v1820, 64
    %v1823 = vpop.permute.xlu0 %1822
    %v1825 = vmul.f32 %v1808, %v1823
    %v1826 = vxor.u32 %v1800, 2147483648
    %v1827 = vmul.f32 %v1826, 1.442695
    %v1828 = vpow.pop %v1827
    %v1829 = vadd.f32 %v1828, 1.0
    %v1830 = vrcp.pop %v1829
    %v1831 = vmul.f32 1.0, %v1830
    %v1832 = vtanh.pop %v1800
    %v1833 = vsel %vm83, %v1832, %v1831
    %v1834 = vmul.f32 %v1833, %v1632
    %1836 = vrot.lane.b32.xlu0 %v1833, 64
    %v1837 = vpop.permute.xlu0 %1836
    %v1839 = vmul.f32 %v1833, %v1837
    %1841 = vrot.lane.b32.xlu0 %v1839, 32
    %v1842 = vpop.permute.xlu0 %1841
    %v1844 = vadd.f32 %v1834, %v1842
    %v1845 = vtanh.pop %v1844
    %1847 = vrot.lane.b32.xlu0 %v1845, 64
    %v1848 = vpop.permute.xlu0 %1847
    %v1850 = vmul.f32 %v1833, %v1848
    %1852 = vrot.lane.b32.xlu0 %v1825, 32
    %v1853 = vpop.permute.xlu0 %1852
    %1855 = vst.msk [vmem:[%s795] sm:$0xff] %vm373, %v1853
    %1857 = vrot.lane.b32.xlu0 %v1850, 64
    %v1858 = vpop.permute.xlu0 %1857
    %1860 = vst.msk [vmem:[%s789] sm:$0xff] %vm581, %v1858
    %s1861 = scalar_lea.vmem [#allocation3], 56
    %v1862 = vld [vmem:[%s1861] sm:$0xff]
    %v1863 = vsel %vm373, %v1853, 0
    %1865 = vmatprep.subr.mxu0 0.0
    %1866 = vmatpush1.msra.mxu0 %v363
    %1867 = vmatprep.subr.mxu0 0.0
    %1868 = vmatpush1.msra.mxu0 %v364
    %1869 = vmatprep.subr.mxu0 0.0
    %1870 = vmatpush1.msra.mxu0 %v365
    %1871 = vmatprep.subr.mxu0 0.0
    %1872 = vmatpush1.msra.mxu0 %v366
    %1873 = vmatprep.subr.mxu0 0.0
    %1874 = vmatpush1.msra.mxu0 0.0
    %1875 = vmatprep.subr.mxu0 0.0
    %1876 = vmatpush1.msra.mxu0 0.0
    %1877 = vmatprep.subr.mxu0 0.0
    %1878 = vmatpush1.msra.mxu0 0.0
    %1879 = vmatprep.subr.mxu0 0.0
    %1880 = vmatpush1.msra.mxu0 0.0
    %1881 = vmatprep.subr.mxu0 0.0
    %1882 = vmatpush1.msra.mxu0 0.0
    %1883 = vmatprep.subr.mxu0 0.0
    %1884 = vmatpush1.msra.mxu0 0.0
    %1885 = vmatprep.subr.mxu0 0.0
    %1886 = vmatpush1.msra.mxu0 0.0
    %1887 = vmatprep.subr.mxu0 0.0
    %1888 = vmatpush1.msra.mxu0 0.0
    %1889 = vmatprep.subr.mxu0 0.0
    %1890 = vmatpush1.msra.mxu0 0.0
    %1891 = vmatprep.subr.mxu0 0.0
    %1892 = vmatpush1.msra.mxu0 0.0
    %1893 = vmatprep.subr.mxu0 0.0
    %1894 = vmatpush1.msra.mxu0 0.0
    %1895 = vmatprep.subr.mxu0 0.0
    %1896 = vmatpush1.msra.mxu0 0.0
    %1897 = vmatprep.subr.mxu0 0.0
    %1898 = vmatpush1.msra.mxu0 0.0
    %1899 = vmatprep.subr.mxu0 0.0
    %1900 = vmatpush1.msra.mxu0 0.0
    %1901 = vmatprep.subr.mxu0 0.0
    %1902 = vmatpush1.msra.mxu0 0.0
    %1903 = vmatprep.subr.mxu0 0.0
    %1904 = vmatpush1.msra.mxu0 0.0
    %1905 = vmatprep.subr.mxu0 0.0
    %1906 = vmatpush1.msra.mxu0 0.0
    %1907 = vmatprep.subr.mxu0 0.0
    %1908 = vmatpush1.msra.mxu0 0.0
    %1909 = vmatprep.subr.mxu0 0.0
    %1910 = vmatpush1.msra.mxu0 0.0
    %1911 = vmatprep.subr.mxu0 0.0
    %1912 = vmatpush1.msra.mxu0 0.0
    %1913 = vmatprep.subr.mxu0 0.0
    %1914 = vmatpush1.msra.mxu0 0.0
    %1915 = vmatprep.subr.mxu0 0.0
    %1916 = vmatpush1.msra.mxu0 0.0
    %1917 = vmatprep.subr.mxu0 0.0
    %1918 = vmatpush1.msra.mxu0 0.0
    %1919 = vmatprep.subr.mxu0 0.0
    %1920 = vmatpush1.msra.mxu0 0.0
    %1921 = vmatprep.subr.mxu0 0.0
    %1922 = vmatpush1.msra.mxu0 0.0
    %1923 = vmatprep.subr.mxu0 0.0
    %1924 = vmatpush1.msra.mxu0 0.0
    %1925 = vmatprep.subr.mxu0 0.0
    %1926 = vmatpush1.msra.mxu0 0.0
    %1927 = vmatprep.subr.mxu0 0.0
    %1928 = vmatpush1.msra.mxu0 0.0
    %1929 = vmatprep.mubr.f32.mxu0 0.0
    %1930 = vmatmul.mubr.f32.gmra.mrb[0].mxu0 %v1863
    %v1931 = vpop.f32.mrb[0].mxu0
    %v1932 = vadd.f32 0.0, %v1931
    %v1933 = vpop.f32.mrb[0].mxu0
    %1934 = vdwg.mxu0
    %v1935 = vadd.f32 %v1862, %v1932
    %v1936 = vld [vmem:[#allocation4] sm:$0xff]
    %1937 = vrot.lane.b32.xlu0 %v1850, 32
    %v1938 = vpop.permute.xlu0 %1937
    %v1939 = vsel %vm373, %v1938, 0
    %1941 = vmatprep.subr.mxu0 0.0
    %1942 = vmatpush1.msra.mxu0 %v368
    %1943 = vmatprep.subr.mxu0 0.0
    %1944 = vmatpush1.msra.mxu0 %v369
    %1945 = vmatprep.subr.mxu0 0.0
    %1946 = vmatpush1.msra.mxu0 %v370
    %1947 = vmatprep.subr.mxu0 0.0
    %1948 = vmatpush1.msra.mxu0 %v371
    %1949 = vmatprep.subr.mxu0 0.0
    %1950 = vmatpush1.msra.mxu0 0.0
    %1951 = vmatprep.subr.mxu0 0.0
    %1952 = vmatpush1.msra.mxu0 0.0
    %1953 = vmatprep.subr.mxu0 0.0
    %1954 = vmatpush1.msra.mxu0 0.0
    %1955 = vmatprep.subr.mxu0 0.0
    %1956 = vmatpush1.msra.mxu0 0.0
    %1957 = vmatprep.subr.mxu0 0.0
    %1958 = vmatpush1.msra.mxu0 0.0
    %1959 = vmatprep.subr.mxu0 0.0
    %1960 = vmatpush1.msra.mxu0 0.0
    %1961 = vmatprep.subr.mxu0 0.0
    %1962 = vmatpush1.msra.mxu0 0.0
    %1963 = vmatprep.subr.mxu0 0.0
    %1964 = vmatpush1.msra.mxu0 0.0
    %1965 = vmatprep.subr.mxu0 0.0
    %1966 = vmatpush1.msra.mxu0 0.0
    %1967 = vmatprep.subr.mxu0 0.0
    %1968 = vmatpush1.msra.mxu0 0.0
    %1969 = vmatprep.subr.mxu0 0.0
    %1970 = vmatpush1.msra.mxu0 0.0
    %1971 = vmatprep.subr.mxu0 0.0
    %1972 = vmatpush1.msra.mxu0 0.0
    %1973 = vmatprep.subr.mxu0 0.0
    %1974 = vmatpush1.msra.mxu0 0.0
    %1975 = vmatprep.subr.mxu0 0.0
    %1976 = vmatpush1.msra.mxu0 0.0
    %1977 = vmatprep.subr.mxu0 0.0
    %1978 = vmatpush1.msra.mxu0 0.0
    %1979 = vmatprep.subr.mxu0 0.0
    %1980 = vmatpush1.msra.mxu0 0.0
    %1981 = vmatprep.subr.mxu0 0.0
    %1982 = vmatpush1.msra.mxu0 0.0
    %1983 = vmatprep.subr.mxu0 0.0
    %1984 = vmatpush1.msra.mxu0 0.0
    %1985 = vmatprep.subr.mxu0 0.0
    %1986 = vmatpush1.msra.mxu0 0.0
    %1987 = vmatprep.subr.mxu0 0.0
    %1988 = vmatpush1.msra.mxu0 0.0
    %1989 = vmatprep.subr.mxu0 0.0
    %1990 = vmatpush1.msra.mxu0 0.0
    %1991 = vmatprep.subr.mxu0 0.0
    %1992 = vmatpush1.msra.mxu0 0.0
    %1993 = vmatprep.subr.mxu0 0.0
    %1994 = vmatpush1.msra.mxu0 0.0
    %1995 = vmatprep.subr.mxu0 0.0
    %1996 = vmatpush1.msra.mxu0 0.0
    %1997 = vmatprep.subr.mxu0 0.0
    %1998 = vmatpush1.msra.mxu0 0.0
    %1999 = vmatprep.subr.mxu0 0.0
    %2000 = vmatpush1.msra.mxu0 0.0
    %2001 = vmatprep.subr.mxu0 0.0
    %2002 = vmatpush1.msra.mxu0 0.0
    %2003 = vmatprep.subr.mxu0 0.0
    %2004 = vmatpush1.msra.mxu0 0.0
    %2005 = vmatprep.mubr.f32.mxu0 0.0
    %2006 = vmatmul.mubr.f32.gmra.mrb[0].mxu0 %v1939
    %v2007 = vpop.f32.mrb[0].mxu0
    %v2008 = vadd.f32 0.0, %v2007
    %v2009 = vpop.f32.mrb[0].mxu0
    %2010 = vdwg.mxu0
    %v2011 = vadd.f32 %v1936, %v2008
    %v2012 = vxor.u32 %v1935, 2147483648
    %v2013 = vmul.f32 %v2012, 1.442695
    %v2014 = vpow.pop %v2013
    %v2015 = vadd.f32 %v2014, 1.0
    %v2016 = vrcp.pop %v2015
    %v2017 = vmul.f32 1.0, %v2016
    %v2018 = vtanh.pop %v1935
    %v2019 = vsel %vm83, %v2018, %v2017
    %v2020 = vmul.f32 %v2019, %v1819
    %2022 = vrot.lane.b32.xlu0 %v2019, 64
    %v2023 = vpop.permute.xlu0 %2022
    %v2025 = vmul.f32 %v2019, %v2023
    %2027 = vrot.lane.b32.xlu0 %v2025, 32
    %v2028 = vpop.permute.xlu0 %2027
    %v2030 = vadd.f32 %v2020, %v2028
    %v2031 = vtanh.pop %v2030
    %2033 = vrot.lane.b32.xlu0 %v2031, 64
    %v2034 = vpop.permute.xlu0 %2033
    %v2036 = vmul.f32 %v2019, %v2034
    %v2037 = vxor.u32 %v2011, 2147483648
    %v2038 = vmul.f32 %v2037, 1.442695
    %v2039 = vpow.pop %v2038
    %v2040 = vadd.f32 %v2039, 1.0
    %v2041 = vrcp.pop %v2040
    %v2042 = vmul.f32 1.0, %v2041
    %v2043 = vtanh.pop %v2011
    %v2044 = vsel %vm83, %v2043, %v2042
    %v2045 = vmul.f32 %v2044, %v1844
    %2047 = vrot.lane.b32.xlu0 %v2044, 64
    %v2048 = vpop.permute.xlu0 %2047
    %v2050 = vmul.f32 %v2044, %v2048
    %2052 = vrot.lane.b32.xlu0 %v2050, 32
    %v2053 = vpop.permute.xlu0 %2052
    %v2055 = vadd.f32 %v2045, %v2053
    %v2056 = vtanh.pop %v2055
    %2058 = vrot.lane.b32.xlu0 %v2056, 64
    %v2059 = vpop.permute.xlu0 %2058
    %v2061 = vmul.f32 %v2044, %v2059
    %2063 = vrot.lane.b32.xlu0 %v2036, 32
    %v2064 = vpop.permute.xlu0 %2063
    %2066 = vst.msk [vmem:[%s580] sm:$0xff] %vm373, %v2064
    %2068 = vrot.lane.b32.xlu0 %v2061, 64
    %v2069 = vpop.permute.xlu0 %2068
    %2071 = vst.msk [vmem:[#allocation2] sm:$0xff] %vm581, %v2069
    %v2072 = vld [vmem:[#allocation2] sm:$0xff]
    %v2073 = vld [vmem:[#allocation2 + $0x8] sm:$0xff]
    %v2074 = vld [vmem:[#allocation2 + $0x10] sm:$0xff]
    %v2075 = vld [vmem:[#allocation2 + $0x18] sm:$0xff]
    %v2076 = vld [vmem:[#allocation2 + $0x20] sm:$0xff]
    %v2077 = vld [vmem:[#allocation2 + $0x28] sm:$0xff]
    %v2078 = vld [vmem:[#allocation2 + $0x30] sm:$0xff]
    %v2079 = vld [vmem:[#allocation2 + $0x38] sm:$0xff]
    %v2080 = vld [vmem:[%s4] sm:$0xff]
    %v2081 = vld [vmem:[%s4 + $0x8] sm:$0xff]
    %v2082 = vld [vmem:[%s4 + $0x10] sm:$0xff]
    %v2083 = vld [vmem:[%s4 + $0x18] sm:$0xff]
    %v2084 = vld [vmem:[%s4 + $0x20] sm:$0xff]
    %v2085 = vld [vmem:[%s4 + $0x28] sm:$0xff]
    %v2086 = vld [vmem:[%s4 + $0x30] sm:$0xff]
    %v2087 = vld [vmem:[%s4 + $0x38] sm:$0xff]
    %v2088 = vld [vmem:[%s6] sm:$0x1]
    %v2090 = vlaneseq
    %v2091 = vshrl.u32 %v2090, 7
    %v2092 = vsub.s32 0, %v2091
    %v2093 = vrot.slane %v2088, %v2092
    %vm2095 = vcmask 523264
    %v2097 = vsel %vm2095, %v2072, 0
    %v2100 = vsel %vm2095, %v2073, 0
    %v2103 = vsel %vm2095, %v2074, 0
    %v2106 = vsel %vm2095, %v2075, 0
    %v2109 = vsel %vm2095, %v2076, 0
    %v2112 = vsel %vm2095, %v2077, 0
    %v2115 = vsel %vm2095, %v2078, 0
    %v2118 = vsel %vm2095, %v2079, 0
    %2120 = vmatprep.subr.mxu0 0.0
    %2121 = vmatpush1.msra.mxu0 %v2080
    %2122 = vmatprep.subr.mxu0 0.0
    %2123 = vmatpush1.msra.mxu0 %v2081
    %2124 = vmatprep.subr.mxu0 0.0
    %2125 = vmatpush1.msra.mxu0 %v2082
    %2126 = vmatprep.subr.mxu0 0.0
    %2127 = vmatpush1.msra.mxu0 %v2083
    %2128 = vmatprep.subr.mxu0 0.0
    %2129 = vmatpush1.msra.mxu0 %v2084
    %2130 = vmatprep.subr.mxu0 0.0
    %2131 = vmatpush1.msra.mxu0 %v2085
    %2132 = vmatprep.subr.mxu0 0.0
    %2133 = vmatpush1.msra.mxu0 %v2086
    %2134 = vmatprep.subr.mxu0 0.0
    %2135 = vmatpush1.msra.mxu0 %v2087
    %2136 = vmatprep.subr.mxu0 0.0
    %2137 = vmatpush1.msra.mxu0 0.0
    %2138 = vmatprep.subr.mxu0 0.0
    %2139 = vmatpush1.msra.mxu0 0.0
    %2140 = vmatprep.subr.mxu0 0.0
    %2141 = vmatpush1.msra.mxu0 0.0
    %2142 = vmatprep.subr.mxu0 0.0
    %2143 = vmatpush1.msra.mxu0 0.0
    %2144 = vmatprep.subr.mxu0 0.0
    %2145 = vmatpush1.msra.mxu0 0.0
    %2146 = vmatprep.subr.mxu0 0.0
    %2147 = vmatpush1.msra.mxu0 0.0
    %2148 = vmatprep.subr.mxu0 0.0
    %2149 = vmatpush1.msra.mxu0 0.0
    %2150 = vmatprep.subr.mxu0 0.0
    %2151 = vmatpush1.msra.mxu0 0.0
    %2152 = vmatprep.subr.mxu0 0.0
    %2153 = vmatpush1.msra.mxu0 0.0
    %2154 = vmatprep.subr.mxu0 0.0
    %2155 = vmatpush1.msra.mxu0 0.0
    %2156 = vmatprep.subr.mxu0 0.0
    %2157 = vmatpush1.msra.mxu0 0.0
    %2158 = vmatprep.subr.mxu0 0.0
    %2159 = vmatpush1.msra.mxu0 0.0
    %2160 = vmatprep.subr.mxu0 0.0
    %2161 = vmatpush1.msra.mxu0 0.0
    %2162 = vmatprep.subr.mxu0 0.0
    %2163 = vmatpush1.msra.mxu0 0.0
    %2164 = vmatprep.subr.mxu0 0.0
    %2165 = vmatpush1.msra.mxu0 0.0
    %2166 = vmatprep.subr.mxu0 0.0
    %2167 = vmatpush1.msra.mxu0 0.0
    %2168 = vmatprep.subr.mxu0 0.0
    %2169 = vmatpush1.msra.mxu0 0.0
    %2170 = vmatprep.subr.mxu0 0.0
    %2171 = vmatpush1.msra.mxu0 0.0
    %2172 = vmatprep.subr.mxu0 0.0
    %2173 = vmatpush1.msra.mxu0 0.0
    %2174 = vmatprep.subr.mxu0 0.0
    %2175 = vmatpush1.msra.mxu0 0.0
    %2176 = vmatprep.subr.mxu0 0.0
    %2177 = vmatpush1.msra.mxu0 0.0
    %2178 = vmatprep.subr.mxu0 0.0
    %2179 = vmatpush1.msra.mxu0 0.0
    %2180 = vmatprep.subr.mxu0 0.0
    %2181 = vmatpush1.msra.mxu0 0.0
    %2182 = vmatprep.subr.mxu0 0.0
    %2183 = vmatpush1.msra.mxu0 0.0
    %2184 = vmatprep.mubr.f32.mxu0 0.0
    %2185 = vmatmul.mubr.f32.gmra.mrb[0].mxu0 %v2097
    %v2186 = vpop.f32.mrb[0].mxu0
    %v2187 = vadd.f32 %v2093, %v2186
    %v2188 = vpop.f32.mrb[0].mxu0
    %2189 = vmatprep.mubr.f32.mxu0 0.0
    %2190 = vmatmul.mubr.f32.gmra.mrb[0].mxu0 %v2100
    %v2191 = vpop.f32.mrb[0].mxu0
    %v2192 = vadd.f32 %v2093, %v2191
    %v2193 = vpop.f32.mrb[0].mxu0
    %2194 = vmatprep.mubr.f32.mxu0 0.0
    %2195 = vmatmul.mubr.f32.gmra.mrb[0].mxu0 %v2103
    %v2196 = vpop.f32.mrb[0].mxu0
    %v2197 = vadd.f32 %v2093, %v2196
    %v2198 = vpop.f32.mrb[0].mxu0
    %2199 = vmatprep.mubr.f32.mxu0 0.0
    %2200 = vmatmul.mubr.f32.gmra.mrb[0].mxu0 %v2106
    %v2201 = vpop.f32.mrb[0].mxu0
    %v2202 = vadd.f32 %v2093, %v2201
    %v2203 = vpop.f32.mrb[0].mxu0
    %2204 = vmatprep.mubr.f32.mxu0 0.0
    %2205 = vmatmul.mubr.f32.gmra.mrb[0].mxu0 %v2109
    %v2206 = vpop.f32.mrb[0].mxu0
    %v2207 = vadd.f32 %v2093, %v2206
    %v2208 = vpop.f32.mrb[0].mxu0
    %2209 = vmatprep.mubr.f32.mxu0 0.0
    %2210 = vmatmul.mubr.f32.gmra.mrb[0].mxu0 %v2112
    %v2211 = vpop.f32.mrb[0].mxu0
    %v2212 = vadd.f32 %v2093, %v2211
    %v2213 = vpop.f32.mrb[0].mxu0
    %2214 = vmatprep.mubr.f32.mxu0 0.0
    %2215 = vmatmul.mubr.f32.gmra.mrb[0].mxu0 %v2115
    %v2216 = vpop.f32.mrb[0].mxu0
    %v2217 = vadd.f32 %v2093, %v2216
    %v2218 = vpop.f32.mrb[0].mxu0
    %2219 = vmatprep.mubr.f32.mxu0 0.0
    %2220 = vmatmul.mubr.f32.gmra.mrb[0].mxu0 %v2118
    %v2221 = vpop.f32.mrb[0].mxu0
    %v2222 = vadd.f32 %v2093, %v2221
    %v2223 = vpop.f32.mrb[0].mxu0
    %2224 = vdwg.mxu0
    %2225 = vst [vmem:[#allocation3] sm:$0xff] %v2187
    %2226 = vst [vmem:[#allocation3 + $0x8] sm:$0xff] %v2192
    %2227 = vst [vmem:[#allocation3 + $0x10] sm:$0xff] %v2197
    %2228 = vst [vmem:[#allocation3 + $0x18] sm:$0xff] %v2202
    %2229 = vst [vmem:[#allocation3 + $0x20] sm:$0xff] %v2207
    %2230 = vst [vmem:[#allocation3 + $0x28] sm:$0xff] %v2212
    %2231 = vst [vmem:[#allocation3 + $0x30] sm:$0xff] %v2217
    %2232 = vst [vmem:[#allocation3 + $0x38] sm:$0xff] %v2222
    %s2233 = scalar_lea.vmem %s4, 64
    %v2234 = vld [vmem:[%s2233] sm:$0xff]
    %v2235 = vld [vmem:[%s2233 + $0x8] sm:$0xff]
    %v2236 = vld [vmem:[%s2233 + $0x10] sm:$0xff]
    %v2237 = vld [vmem:[%s2233 + $0x18] sm:$0xff]
    %v2238 = vld [vmem:[%s2233 + $0x20] sm:$0xff]
    %v2239 = vld [vmem:[%s2233 + $0x28] sm:$0xff]
    %v2240 = vld [vmem:[%s2233 + $0x30] sm:$0xff]
    %v2241 = vld [vmem:[%s2233 + $0x38] sm:$0xff]
    %s2242 = scalar_lea.vmem %s6, 1
    %v2243 = vld [vmem:[%s2242] sm:$0x1]
    %v2245 = vlaneseq
    %v2246 = vshrl.u32 %v2245, 7
    %v2247 = vsub.s32 0, %v2246
    %v2248 = vrot.slane %v2243, %v2247
    %2250 = vmatprep.subr.mxu0 0.0
    %2251 = vmatpush1.msra.mxu0 %v2234
    %2252 = vmatprep.subr.mxu0 0.0
    %2253 = vmatpush1.msra.mxu0 %v2235
    %2254 = vmatprep.subr.mxu0 0.0
    %2255 = vmatpush1.msra.mxu0 %v2236
    %2256 = vmatprep.subr.mxu0 0.0
    %2257 = vmatpush1.msra.mxu0 %v2237
    %2258 = vmatprep.subr.mxu0 0.0
    %2259 = vmatpush1.msra.mxu0 %v2238
    %2260 = vmatprep.subr.mxu0 0.0
    %2261 = vmatpush1.msra.mxu0 %v2239
    %2262 = vmatprep.subr.mxu0 0.0
    %2263 = vmatpush1.msra.mxu0 %v2240
    %2264 = vmatprep.subr.mxu0 0.0
    %2265 = vmatpush1.msra.mxu0 %v2241
    %2266 = vmatprep.subr.mxu0 0.0
    %2267 = vmatpush1.msra.mxu0 0.0
    %2268 = vmatprep.subr.mxu0 0.0
    %2269 = vmatpush1.msra.mxu0 0.0
    %2270 = vmatprep.subr.mxu0 0.0
    %2271 = vmatpush1.msra.mxu0 0.0
    %2272 = vmatprep.subr.mxu0 0.0
    %2273 = vmatpush1.msra.mxu0 0.0
    %2274 = vmatprep.subr.mxu0 0.0
    %2275 = vmatpush1.msra.mxu0 0.0
    %2276 = vmatprep.subr.mxu0 0.0
    %2277 = vmatpush1.msra.mxu0 0.0
    %2278 = vmatprep.subr.mxu0 0.0
    %2279 = vmatpush1.msra.mxu0 0.0
    %2280 = vmatprep.subr.mxu0 0.0
    %2281 = vmatpush1.msra.mxu0 0.0
    %2282 = vmatprep.subr.mxu0 0.0
    %2283 = vmatpush1.msra.mxu0 0.0
    %2284 = vmatprep.subr.mxu0 0.0
    %2285 = vmatpush1.msra.mxu0 0.0
    %2286 = vmatprep.subr.mxu0 0.0
    %2287 = vmatpush1.msra.mxu0 0.0
    %2288 = vmatprep.subr.mxu0 0.0
    %2289 = vmatpush1.msra.mxu0 0.0
    %2290 = vmatprep.subr.mxu0 0.0
    %2291 = vmatpush1.msra.mxu0 0.0
    %2292 = vmatprep.subr.mxu0 0.0
    %2293 = vmatpush1.msra.mxu0 0.0
    %2294 = vmatprep.subr.mxu0 0.0
    %2295 = vmatpush1.msra.mxu0 0.0
    %2296 = vmatprep.subr.mxu0 0.0
    %2297 = vmatpush1.msra.mxu0 0.0
    %2298 = vmatprep.subr.mxu0 0.0
    %2299 = vmatpush1.msra.mxu0 0.0
    %2300 = vmatprep.subr.mxu0 0.0
    %2301 = vmatpush1.msra.mxu0 0.0
    %2302 = vmatprep.subr.mxu0 0.0
    %2303 = vmatpush1.msra.mxu0 0.0
    %2304 = vmatprep.subr.mxu0 0.0
    %2305 = vmatpush1.msra.mxu0 0.0
    %2306 = vmatprep.subr.mxu0 0.0
    %2307 = vmatpush1.msra.mxu0 0.0
    %2308 = vmatprep.subr.mxu0 0.0
    %2309 = vmatpush1.msra.mxu0 0.0
    %2310 = vmatprep.subr.mxu0 0.0
    %2311 = vmatpush1.msra.mxu0 0.0
    %2312 = vmatprep.subr.mxu0 0.0
    %2313 = vmatpush1.msra.mxu0 0.0
    %2314 = vmatprep.mubr.f32.mxu0 0.0
    %2315 = vmatmul.mubr.f32.gmra.mrb[0].mxu0 %v2097
    %v2316 = vpop.f32.mrb[0].mxu0
    %v2317 = vadd.f32 %v2248, %v2316
    %v2318 = vpop.f32.mrb[0].mxu0
    %2319 = vmatprep.mubr.f32.mxu0 0.0
    %2320 = vmatmul.mubr.f32.gmra.mrb[0].mxu0 %v2100
    %v2321 = vpop.f32.mrb[0].mxu0
    %v2322 = vadd.f32 %v2248, %v2321
    %v2323 = vpop.f32.mrb[0].mxu0
    %2324 = vmatprep.mubr.f32.mxu0 0.0
    %2325 = vmatmul.mubr.f32.gmra.mrb[0].mxu0 %v2103
    %v2326 = vpop.f32.mrb[0].mxu0
    %v2327 = vadd.f32 %v2248, %v2326
    %v2328 = vpop.f32.mrb[0].mxu0
    %2329 = vmatprep.mubr.f32.mxu0 0.0
    %2330 = vmatmul.mubr.f32.gmra.mrb[0].mxu0 %v2106
    %v2331 = vpop.f32.mrb[0].mxu0
    %v2332 = vadd.f32 %v2248, %v2331
    %v2333 = vpop.f32.mrb[0].mxu0
    %2334 = vmatprep.mubr.f32.mxu0 0.0
    %2335 = vmatmul.mubr.f32.gmra.mrb[0].mxu0 %v2109
    %v2336 = vpop.f32.mrb[0].mxu0
    %v2337 = vadd.f32 %v2248, %v2336
    %v2338 = vpop.f32.mrb[0].mxu0
    %2339 = vmatprep.mubr.f32.mxu0 0.0
    %2340 = vmatmul.mubr.f32.gmra.mrb[0].mxu0 %v2112
    %v2341 = vpop.f32.mrb[0].mxu0
    %v2342 = vadd.f32 %v2248, %v2341
    %v2343 = vpop.f32.mrb[0].mxu0
    %2344 = vmatprep.mubr.f32.mxu0 0.0
    %2345 = vmatmul.mubr.f32.gmra.mrb[0].mxu0 %v2115
    %v2346 = vpop.f32.mrb[0].mxu0
    %v2347 = vadd.f32 %v2248, %v2346
    %v2348 = vpop.f32.mrb[0].mxu0
    %2349 = vmatprep.mubr.f32.mxu0 0.0
    %2350 = vmatmul.mubr.f32.gmra.mrb[0].mxu0 %v2118
    %v2351 = vpop.f32.mrb[0].mxu0
    %v2352 = vadd.f32 %v2248, %v2351
    %v2353 = vpop.f32.mrb[0].mxu0
    %2354 = vdwg.mxu0
    %2355 = vst [vmem:[#allocation4] sm:$0xff] %v2317
    %2356 = vst [vmem:[#allocation4 + $0x8] sm:$0xff] %v2322
    %2357 = vst [vmem:[#allocation4 + $0x10] sm:$0xff] %v2327
    %2358 = vst [vmem:[#allocation4 + $0x18] sm:$0xff] %v2332
    %2359 = vst [vmem:[#allocation4 + $0x20] sm:$0xff] %v2337
    %2360 = vst [vmem:[#allocation4 + $0x28] sm:$0xff] %v2342
    %2361 = vst [vmem:[#allocation4 + $0x30] sm:$0xff] %v2347
    %2362 = vst [vmem:[#allocation4 + $0x38] sm:$0xff] %v2352
    %v2363 = vld [vmem:[#allocation7] sm:$0xff]
    %v2364 = vld [vmem:[#allocation7 + $0x8] sm:$0xff]
    %v2365 = vld [vmem:[#allocation7 + $0x10] sm:$0xff]
    %v2366 = vld [vmem:[#allocation7 + $0x18] sm:$0xff]
    %s2367 = scalar_lea.vmem [#allocation7], 32
    %v2368 = vld [vmem:[%s2367] sm:$0xff]
    %v2369 = vld [vmem:[%s2367 + $0x8] sm:$0xff]
    %v2370 = vld [vmem:[%s2367 + $0x10] sm:$0xff]
    %v2371 = vld [vmem:[%s2367 + $0x18] sm:$0xff]
    %v2372 = vld [vmem:[#allocation3] sm:$0xff]
    %2373 = vmatprep.subr.mxu0 0.0
    %2374 = vmatpush1.msra.mxu0 %v2363
    %2375 = vmatprep.subr.mxu0 0.0
    %2376 = vmatpush1.msra.mxu0 %v2364
    %2377 = vmatprep.subr.mxu0 0.0
    %2378 = vmatpush1.msra.mxu0 %v2365
    %2379 = vmatprep.subr.mxu0 0.0
    %2380 = vmatpush1.msra.mxu0 %v2366
    %2381 = vmatprep.subr.mxu0 0.0
    %2382 = vmatpush1.msra.mxu0 0.0
    %2383 = vmatprep.subr.mxu0 0.0
    %2384 = vmatpush1.msra.mxu0 0.0
    %2385 = vmatprep.subr.mxu0 0.0
    %2386 = vmatpush1.msra.mxu0 0.0
    %2387 = vmatprep.subr.mxu0 0.0
    %2388 = vmatpush1.msra.mxu0 0.0
    %2389 = vmatprep.subr.mxu0 0.0
    %2390 = vmatpush1.msra.mxu0 0.0
    %2391 = vmatprep.subr.mxu0 0.0
    %2392 = vmatpush1.msra.mxu0 0.0
    %2393 = vmatprep.subr.mxu0 0.0
    %2394 = vmatpush1.msra.mxu0 0.0
    %2395 = vmatprep.subr.mxu0 0.0
    %2396 = vmatpush1.msra.mxu0 0.0
    %2397 = vmatprep.subr.mxu0 0.0
    %2398 = vmatpush1.msra.mxu0 0.0
    %2399 = vmatprep.subr.mxu0 0.0
    %2400 = vmatpush1.msra.mxu0 0.0
    %2401 = vmatprep.subr.mxu0 0.0
    %2402 = vmatpush1.msra.mxu0 0.0
    %2403 = vmatprep.subr.mxu0 0.0
    %2404 = vmatpush1.msra.mxu0 0.0
    %2405 = vmatprep.subr.mxu0 0.0
    %2406 = vmatpush1.msra.mxu0 0.0
    %2407 = vmatprep.subr.mxu0 0.0
    %2408 = vmatpush1.msra.mxu0 0.0
    %2409 = vmatprep.subr.mxu0 0.0
    %2410 = vmatpush1.msra.mxu0 0.0
    %2411 = vmatprep.subr.mxu0 0.0
    %2412 = vmatpush1.msra.mxu0 0.0
    %2413 = vmatprep.subr.mxu0 0.0
    %2414 = vmatpush1.msra.mxu0 0.0
    %2415 = vmatprep.subr.mxu0 0.0
    %2416 = vmatpush1.msra.mxu0 0.0
    %2417 = vmatprep.subr.mxu0 0.0
    %2418 = vmatpush1.msra.mxu0 0.0
    %2419 = vmatprep.subr.mxu0 0.0
    %2420 = vmatpush1.msra.mxu0 0.0
    %2421 = vmatprep.subr.mxu0 0.0
    %2422 = vmatpush1.msra.mxu0 0.0
    %2423 = vmatprep.subr.mxu0 0.0
    %2424 = vmatpush1.msra.mxu0 0.0
    %2425 = vmatprep.subr.mxu0 0.0
    %2426 = vmatpush1.msra.mxu0 0.0
    %2427 = vmatprep.subr.mxu0 0.0
    %2428 = vmatpush1.msra.mxu0 0.0
    %2429 = vmatprep.subr.mxu0 0.0
    %2430 = vmatpush1.msra.mxu0 0.0
    %2431 = vmatprep.subr.mxu0 0.0
    %2432 = vmatpush1.msra.mxu0 0.0
    %2433 = vmatprep.subr.mxu0 0.0
    %2434 = vmatpush1.msra.mxu0 0.0
    %2435 = vmatprep.subr.mxu0 0.0
    %2436 = vmatpush1.msra.mxu0 0.0
    %2437 = vmatprep.mubr.f32.mxu0 0.0
    %2438 = vmatmul.mubr.f32.gmra.mrb[0].mxu0 %v375
    %v2439 = vpop.f32.mrb[0].mxu0
    %v2440 = vadd.f32 0.0, %v2439
    %v2441 = vpop.f32.mrb[0].mxu0
    %2442 = vdwg.mxu0
    %v2443 = vadd.f32 %v2372, %v2440
    %v2444 = vld [vmem:[%s448] sm:$0xff]
    %2445 = vmatprep.subr.mxu0 0.0
    %2446 = vmatpush1.msra.mxu0 %v2368
    %2447 = vmatprep.subr.mxu0 0.0
    %2448 = vmatpush1.msra.mxu0 %v2369
    %2449 = vmatprep.subr.mxu0 0.0
    %2450 = vmatpush1.msra.mxu0 %v2370
    %2451 = vmatprep.subr.mxu0 0.0
    %2452 = vmatpush1.msra.mxu0 %v2371
    %2453 = vmatprep.subr.mxu0 0.0
    %2454 = vmatpush1.msra.mxu0 0.0
    %2455 = vmatprep.subr.mxu0 0.0
    %2456 = vmatpush1.msra.mxu0 0.0
    %2457 = vmatprep.subr.mxu0 0.0
    %2458 = vmatpush1.msra.mxu0 0.0
    %2459 = vmatprep.subr.mxu0 0.0
    %2460 = vmatpush1.msra.mxu0 0.0
    %2461 = vmatprep.subr.mxu0 0.0
    %2462 = vmatpush1.msra.mxu0 0.0
    %2463 = vmatprep.subr.mxu0 0.0
    %2464 = vmatpush1.msra.mxu0 0.0
    %2465 = vmatprep.subr.mxu0 0.0
    %2466 = vmatpush1.msra.mxu0 0.0
    %2467 = vmatprep.subr.mxu0 0.0
    %2468 = vmatpush1.msra.mxu0 0.0
    %2469 = vmatprep.subr.mxu0 0.0
    %2470 = vmatpush1.msra.mxu0 0.0
    %2471 = vmatprep.subr.mxu0 0.0
    %2472 = vmatpush1.msra.mxu0 0.0
    %2473 = vmatprep.subr.mxu0 0.0
    %2474 = vmatpush1.msra.mxu0 0.0
    %2475 = vmatprep.subr.mxu0 0.0
    %2476 = vmatpush1.msra.mxu0 0.0
    %2477 = vmatprep.subr.mxu0 0.0
    %2478 = vmatpush1.msra.mxu0 0.0
    %2479 = vmatprep.subr.mxu0 0.0
    %2480 = vmatpush1.msra.mxu0 0.0
    %2481 = vmatprep.subr.mxu0 0.0
    %2482 = vmatpush1.msra.mxu0 0.0
    %2483 = vmatprep.subr.mxu0 0.0
    %2484 = vmatpush1.msra.mxu0 0.0
    %2485 = vmatprep.subr.mxu0 0.0
    %2486 = vmatpush1.msra.mxu0 0.0
    %2487 = vmatprep.subr.mxu0 0.0
    %2488 = vmatpush1.msra.mxu0 0.0
    %2489 = vmatprep.subr.mxu0 0.0
    %2490 = vmatpush1.msra.mxu0 0.0
    %2491 = vmatprep.subr.mxu0 0.0
    %2492 = vmatpush1.msra.mxu0 0.0
    %2493 = vmatprep.subr.mxu0 0.0
    %2494 = vmatpush1.msra.mxu0 0.0
    %2495 = vmatprep.subr.mxu0 0.0
    %2496 = vmatpush1.msra.mxu0 0.0
    %2497 = vmatprep.subr.mxu0 0.0
    %2498 = vmatpush1.msra.mxu0 0.0
    %2499 = vmatprep.subr.mxu0 0.0
    %2500 = vmatpush1.msra.mxu0 0.0
    %2501 = vmatprep.subr.mxu0 0.0
    %2502 = vmatpush1.msra.mxu0 0.0
    %2503 = vmatprep.subr.mxu0 0.0
    %2504 = vmatpush1.msra.mxu0 0.0
    %2505 = vmatprep.subr.mxu0 0.0
    %2506 = vmatpush1.msra.mxu0 0.0
    %2507 = vmatprep.subr.mxu0 0.0
    %2508 = vmatpush1.msra.mxu0 0.0
    %2509 = vmatprep.mubr.f32.mxu0 0.0
    %2510 = vmatmul.mubr.f32.gmra.mrb[0].mxu0 %v375
    %v2511 = vpop.f32.mrb[0].mxu0
    %v2512 = vadd.f32 0.0, %v2511
    %v2513 = vpop.f32.mrb[0].mxu0
    %2514 = vdwg.mxu0
    %v2515 = vadd.f32 %v2444, %v2512
    %v2516 = vxor.u32 %v2443, 2147483648
    %v2517 = vmul.f32 %v2516, 1.442695
    %v2518 = vpow.pop %v2517
    %v2519 = vadd.f32 %v2518, 1.0
    %v2520 = vrcp.pop %v2519
    %v2521 = vmul.f32 1.0, %v2520
    %v2522 = vtanh.pop %v2443
    %v2523 = vsel %vm83, %v2522, %v2521
    %v2524 = vmul.f32 %v2523, 0.0
    %2526 = vrot.lane.b32.xlu0 %v2523, 64
    %v2527 = vpop.permute.xlu0 %2526
    %v2529 = vmul.f32 %v2523, %v2527
    %2531 = vrot.lane.b32.xlu0 %v2529, 32
    %v2532 = vpop.permute.xlu0 %2531
    %v2534 = vadd.f32 %v2524, %v2532
    %v2535 = vtanh.pop %v2534
    %2537 = vrot.lane.b32.xlu0 %v2535, 64
    %v2538 = vpop.permute.xlu0 %2537
    %v2540 = vmul.f32 %v2523, %v2538
    %v2541 = vxor.u32 %v2515, 2147483648
    %v2542 = vmul.f32 %v2541, 1.442695
    %v2543 = vpow.pop %v2542
    %v2544 = vadd.f32 %v2543, 1.0
    %v2545 = vrcp.pop %v2544
    %v2546 = vmul.f32 1.0, %v2545
    %v2547 = vtanh.pop %v2515
    %v2548 = vsel %vm83, %v2547, %v2546
    %v2549 = vmul.f32 %v2548, 0.0
    %2551 = vrot.lane.b32.xlu0 %v2548, 64
    %v2552 = vpop.permute.xlu0 %2551
    %v2554 = vmul.f32 %v2548, %v2552
    %2556 = vrot.lane.b32.xlu0 %v2554, 32
    %v2557 = vpop.permute.xlu0 %2556
    %v2559 = vadd.f32 %v2549, %v2557
    %v2560 = vtanh.pop %v2559
    %2562 = vrot.lane.b32.xlu0 %v2560, 64
    %v2563 = vpop.permute.xlu0 %2562
    %v2565 = vmul.f32 %v2548, %v2563
    %v2566 = vld [vmem:[%s583] sm:$0xff]
    %2568 = vrot.lane.b32.xlu0 %v2540, 32
    %v2569 = vpop.permute.xlu0 %2568
    %v2570 = vsel %vm373, %v2569, 0
    %2572 = vmatprep.subr.mxu0 0.0
    %2573 = vmatpush1.msra.mxu0 %v2363
    %2574 = vmatprep.subr.mxu0 0.0
    %2575 = vmatpush1.msra.mxu0 %v2364
    %2576 = vmatprep.subr.mxu0 0.0
    %2577 = vmatpush1.msra.mxu0 %v2365
    %2578 = vmatprep.subr.mxu0 0.0
    %2579 = vmatpush1.msra.mxu0 %v2366
    %2580 = vmatprep.subr.mxu0 0.0
    %2581 = vmatpush1.msra.mxu0 0.0
    %2582 = vmatprep.subr.mxu0 0.0
    %2583 = vmatpush1.msra.mxu0 0.0
    %2584 = vmatprep.subr.mxu0 0.0
    %2585 = vmatpush1.msra.mxu0 0.0
    %2586 = vmatprep.subr.mxu0 0.0
    %2587 = vmatpush1.msra.mxu0 0.0
    %2588 = vmatprep.subr.mxu0 0.0
    %2589 = vmatpush1.msra.mxu0 0.0
    %2590 = vmatprep.subr.mxu0 0.0
    %2591 = vmatpush1.msra.mxu0 0.0
    %2592 = vmatprep.subr.mxu0 0.0
    %2593 = vmatpush1.msra.mxu0 0.0
    %2594 = vmatprep.subr.mxu0 0.0
    %2595 = vmatpush1.msra.mxu0 0.0
    %2596 = vmatprep.subr.mxu0 0.0
    %2597 = vmatpush1.msra.mxu0 0.0
    %2598 = vmatprep.subr.mxu0 0.0
    %2599 = vmatpush1.msra.mxu0 0.0
    %2600 = vmatprep.subr.mxu0 0.0
    %2601 = vmatpush1.msra.mxu0 0.0
    %2602 = vmatprep.subr.mxu0 0.0
    %2603 = vmatpush1.msra.mxu0 0.0
    %2604 = vmatprep.subr.mxu0 0.0
    %2605 = vmatpush1.msra.mxu0 0.0
    %2606 = vmatprep.subr.mxu0 0.0
    %2607 = vmatpush1.msra.mxu0 0.0
    %2608 = vmatprep.subr.mxu0 0.0
    %2609 = vmatpush1.msra.mxu0 0.0
    %2610 = vmatprep.subr.mxu0 0.0
    %2611 = vmatpush1.msra.mxu0 0.0
    %2612 = vmatprep.subr.mxu0 0.0
    %2613 = vmatpush1.msra.mxu0 0.0
    %2614 = vmatprep.subr.mxu0 0.0
    %2615 = vmatpush1.msra.mxu0 0.0
    %2616 = vmatprep.subr.mxu0 0.0
    %2617 = vmatpush1.msra.mxu0 0.0
    %2618 = vmatprep.subr.mxu0 0.0
    %2619 = vmatpush1.msra.mxu0 0.0
    %2620 = vmatprep.subr.mxu0 0.0
    %2621 = vmatpush1.msra.mxu0 0.0
    %2622 = vmatprep.subr.mxu0 0.0
    %2623 = vmatpush1.msra.mxu0 0.0
    %2624 = vmatprep.subr.mxu0 0.0
    %2625 = vmatpush1.msra.mxu0 0.0
    %2626 = vmatprep.subr.mxu0 0.0
    %2627 = vmatpush1.msra.mxu0 0.0
    %2628 = vmatprep.subr.mxu0 0.0
    %2629 = vmatpush1.msra.mxu0 0.0
    %2630 = vmatprep.subr.mxu0 0.0
    %2631 = vmatpush1.msra.mxu0 0.0
    %2632 = vmatprep.subr.mxu0 0.0
    %2633 = vmatpush1.msra.mxu0 0.0
    %2634 = vmatprep.subr.mxu0 0.0
    %2635 = vmatpush1.msra.mxu0 0.0
    %2636 = vmatprep.mubr.f32.mxu0 0.0
    %2637 = vmatmul.mubr.f32.gmra.mrb[0].mxu0 %v2570
    %v2638 = vpop.f32.mrb[0].mxu0
    %v2639 = vadd.f32 0.0, %v2638
    %v2640 = vpop.f32.mrb[0].mxu0
    %2641 = vdwg.mxu0
    %v2642 = vadd.f32 %v2566, %v2639
    %v2643 = vxor.u32 %v2642, 2147483648
    %v2644 = vmul.f32 %v2643, 1.442695
    %v2645 = vpow.pop %v2644
    %v2646 = vadd.f32 %v2645, 1.0
    %v2647 = vrcp.pop %v2646
    %v2648 = vmul.f32 1.0, %v2647
    %v2649 = vtanh.pop %v2642
    %v2650 = vsel %vm83, %v2649, %v2648
    %v2651 = vmul.f32 %v2650, %v2534
    %2653 = vrot.lane.b32.xlu0 %v2650, 64
    %v2654 = vpop.permute.xlu0 %2653
    %v2656 = vmul.f32 %v2650, %v2654
    %2658 = vrot.lane.b32.xlu0 %v2656, 32
    %v2659 = vpop.permute.xlu0 %2658
    %v2661 = vadd.f32 %v2651, %v2659
    %v2662 = vtanh.pop %v2661
    %2664 = vrot.lane.b32.xlu0 %v2662, 64
    %v2665 = vpop.permute.xlu0 %2664
    %v2667 = vmul.f32 %v2650, %v2665
    %v2668 = vld [vmem:[%s797] sm:$0xff]
    %2670 = vrot.lane.b32.xlu0 %v2667, 32
    %v2671 = vpop.permute.xlu0 %2670
    %v2672 = vsel %vm373, %v2671, 0
    %2674 = vmatprep.subr.mxu0 0.0
    %2675 = vmatpush1.msra.mxu0 %v2363
    %2676 = vmatprep.subr.mxu0 0.0
    %2677 = vmatpush1.msra.mxu0 %v2364
    %2678 = vmatprep.subr.mxu0 0.0
    %2679 = vmatpush1.msra.mxu0 %v2365
    %2680 = vmatprep.subr.mxu0 0.0
    %2681 = vmatpush1.msra.mxu0 %v2366
    %2682 = vmatprep.subr.mxu0 0.0
    %2683 = vmatpush1.msra.mxu0 0.0
    %2684 = vmatprep.subr.mxu0 0.0
    %2685 = vmatpush1.msra.mxu0 0.0
    %2686 = vmatprep.subr.mxu0 0.0
    %2687 = vmatpush1.msra.mxu0 0.0
    %2688 = vmatprep.subr.mxu0 0.0
    %2689 = vmatpush1.msra.mxu0 0.0
    %2690 = vmatprep.subr.mxu0 0.0
    %2691 = vmatpush1.msra.mxu0 0.0
    %2692 = vmatprep.subr.mxu0 0.0
    %2693 = vmatpush1.msra.mxu0 0.0
    %2694 = vmatprep.subr.mxu0 0.0
    %2695 = vmatpush1.msra.mxu0 0.0
    %2696 = vmatprep.subr.mxu0 0.0
    %2697 = vmatpush1.msra.mxu0 0.0
    %2698 = vmatprep.subr.mxu0 0.0
    %2699 = vmatpush1.msra.mxu0 0.0
    %2700 = vmatprep.subr.mxu0 0.0
    %2701 = vmatpush1.msra.mxu0 0.0
    %2702 = vmatprep.subr.mxu0 0.0
    %2703 = vmatpush1.msra.mxu0 0.0
    %2704 = vmatprep.subr.mxu0 0.0
    %2705 = vmatpush1.msra.mxu0 0.0
    %2706 = vmatprep.subr.mxu0 0.0
    %2707 = vmatpush1.msra.mxu0 0.0
    %2708 = vmatprep.subr.mxu0 0.0
    %2709 = vmatpush1.msra.mxu0 0.0
    %2710 = vmatprep.subr.mxu0 0.0
    %2711 = vmatpush1.msra.mxu0 0.0
    %2712 = vmatprep.subr.mxu0 0.0
    %2713 = vmatpush1.msra.mxu0 0.0
    %2714 = vmatprep.subr.mxu0 0.0
    %2715 = vmatpush1.msra.mxu0 0.0
    %2716 = vmatprep.subr.mxu0 0.0
    %2717 = vmatpush1.msra.mxu0 0.0
    %2718 = vmatprep.subr.mxu0 0.0
    %2719 = vmatpush1.msra.mxu0 0.0
    %2720 = vmatprep.subr.mxu0 0.0
    %2721 = vmatpush1.msra.mxu0 0.0
    %2722 = vmatprep.subr.mxu0 0.0
    %2723 = vmatpush1.msra.mxu0 0.0
    %2724 = vmatprep.subr.mxu0 0.0
    %2725 = vmatpush1.msra.mxu0 0.0
    %2726 = vmatprep.subr.mxu0 0.0
    %2727 = vmatpush1.msra.mxu0 0.0
    %2728 = vmatprep.subr.mxu0 0.0
    %2729 = vmatpush1.msra.mxu0 0.0
    %2730 = vmatprep.subr.mxu0 0.0
    %2731 = vmatpush1.msra.mxu0 0.0
    %2732 = vmatprep.subr.mxu0 0.0
    %2733 = vmatpush1.msra.mxu0 0.0
    %2734 = vmatprep.subr.mxu0 0.0
    %2735 = vmatpush1.msra.mxu0 0.0
    %2736 = vmatprep.subr.mxu0 0.0
    %2737 = vmatpush1.msra.mxu0 0.0
    %2738 = vmatprep.mubr.f32.mxu0 0.0
    %2739 = vmatmul.mubr.f32.gmra.mrb[0].mxu0 %v2672
    %v2740 = vpop.f32.mrb[0].mxu0
    %v2741 = vadd.f32 0.0, %v2740
    %v2742 = vpop.f32.mrb[0].mxu0
    %2743 = vdwg.mxu0
    %v2744 = vadd.f32 %v2668, %v2741
    %v2745 = vxor.u32 %v2744, 2147483648
    %v2746 = vmul.f32 %v2745, 1.442695
    %v2747 = vpow.pop %v2746
    %v2748 = vadd.f32 %v2747, 1.0
    %v2749 = vrcp.pop %v2748
    %v2750 = vmul.f32 1.0, %v2749
    %v2751 = vtanh.pop %v2744
    %v2752 = vsel %vm83, %v2751, %v2750
    %v2753 = vmul.f32 %v2752, %v2661
    %2755 = vrot.lane.b32.xlu0 %v2752, 64
    %v2756 = vpop.permute.xlu0 %2755
    %v2758 = vmul.f32 %v2752, %v2756
    %2760 = vrot.lane.b32.xlu0 %v2758, 32
    %v2761 = vpop.permute.xlu0 %2760
    %v2763 = vadd.f32 %v2753, %v2761
    %v2764 = vtanh.pop %v2763
    %2766 = vrot.lane.b32.xlu0 %v2764, 64
    %v2767 = vpop.permute.xlu0 %2766
    %v2769 = vmul.f32 %v2752, %v2767
    %v2770 = vld [vmem:[%s1011] sm:$0xff]
    %2772 = vrot.lane.b32.xlu0 %v2769, 32
    %v2773 = vpop.permute.xlu0 %2772
    %v2774 = vsel %vm373, %v2773, 0
    %2776 = vmatprep.subr.mxu0 0.0
    %2777 = vmatpush1.msra.mxu0 %v2363
    %2778 = vmatprep.subr.mxu0 0.0
    %2779 = vmatpush1.msra.mxu0 %v2364
    %2780 = vmatprep.subr.mxu0 0.0
    %2781 = vmatpush1.msra.mxu0 %v2365
    %2782 = vmatprep.subr.mxu0 0.0
    %2783 = vmatpush1.msra.mxu0 %v2366
    %2784 = vmatprep.subr.mxu0 0.0
    %2785 = vmatpush1.msra.mxu0 0.0
    %2786 = vmatprep.subr.mxu0 0.0
    %2787 = vmatpush1.msra.mxu0 0.0
    %2788 = vmatprep.subr.mxu0 0.0
    %2789 = vmatpush1.msra.mxu0 0.0
    %2790 = vmatprep.subr.mxu0 0.0
    %2791 = vmatpush1.msra.mxu0 0.0
    %2792 = vmatprep.subr.mxu0 0.0
    %2793 = vmatpush1.msra.mxu0 0.0
    %2794 = vmatprep.subr.mxu0 0.0
    %2795 = vmatpush1.msra.mxu0 0.0
    %2796 = vmatprep.subr.mxu0 0.0
    %2797 = vmatpush1.msra.mxu0 0.0
    %2798 = vmatprep.subr.mxu0 0.0
    %2799 = vmatpush1.msra.mxu0 0.0
    %2800 = vmatprep.subr.mxu0 0.0
    %2801 = vmatpush1.msra.mxu0 0.0
    %2802 = vmatprep.subr.mxu0 0.0
    %2803 = vmatpush1.msra.mxu0 0.0
    %2804 = vmatprep.subr.mxu0 0.0
    %2805 = vmatpush1.msra.mxu0 0.0
    %2806 = vmatprep.subr.mxu0 0.0
    %2807 = vmatpush1.msra.mxu0 0.0
    %2808 = vmatprep.subr.mxu0 0.0
    %2809 = vmatpush1.msra.mxu0 0.0
    %2810 = vmatprep.subr.mxu0 0.0
    %2811 = vmatpush1.msra.mxu0 0.0
    %2812 = vmatprep.subr.mxu0 0.0
    %2813 = vmatpush1.msra.mxu0 0.0
    %2814 = vmatprep.subr.mxu0 0.0
    %2815 = vmatpush1.msra.mxu0 0.0
    %2816 = vmatprep.subr.mxu0 0.0
    %2817 = vmatpush1.msra.mxu0 0.0
    %2818 = vmatprep.subr.mxu0 0.0
    %2819 = vmatpush1.msra.mxu0 0.0
    %2820 = vmatprep.subr.mxu0 0.0
    %2821 = vmatpush1.msra.mxu0 0.0
    %2822 = vmatprep.subr.mxu0 0.0
    %2823 = vmatpush1.msra.mxu0 0.0
    %2824 = vmatprep.subr.mxu0 0.0
    %2825 = vmatpush1.msra.mxu0 0.0
    %2826 = vmatprep.subr.mxu0 0.0
    %2827 = vmatpush1.msra.mxu0 0.0
    %2828 = vmatprep.subr.mxu0 0.0
    %2829 = vmatpush1.msra.mxu0 0.0
    %2830 = vmatprep.subr.mxu0 0.0
    %2831 = vmatpush1.msra.mxu0 0.0
    %2832 = vmatprep.subr.mxu0 0.0
    %2833 = vmatpush1.msra.mxu0 0.0
    %2834 = vmatprep.subr.mxu0 0.0
    %2835 = vmatpush1.msra.mxu0 0.0
    %2836 = vmatprep.subr.mxu0 0.0
    %2837 = vmatpush1.msra.mxu0 0.0
    %2838 = vmatprep.subr.mxu0 0.0
    %2839 = vmatpush1.msra.mxu0 0.0
    %2840 = vmatprep.mubr.f32.mxu0 0.0
    %2841 = vmatmul.mubr.f32.gmra.mrb[0].mxu0 %v2774
    %v2842 = vpop.f32.mrb[0].mxu0
    %v2843 = vadd.f32 0.0, %v2842
    %v2844 = vpop.f32.mrb[0].mxu0
    %2845 = vdwg.mxu0
    %v2846 = vadd.f32 %v2770, %v2843
    %v2847 = vxor.u32 %v2846, 2147483648
    %v2848 = vmul.f32 %v2847, 1.442695
    %v2849 = vpow.pop %v2848
    %v2850 = vadd.f32 %v2849, 1.0
    %v2851 = vrcp.pop %v2850
    %v2852 = vmul.f32 1.0, %v2851
    %v2853 = vtanh.pop %v2846
    %v2854 = vsel %vm83, %v2853, %v2852
    %v2855 = vmul.f32 %v2854, %v2763
    %2857 = vrot.lane.b32.xlu0 %v2854, 64
    %v2858 = vpop.permute.xlu0 %2857
    %v2860 = vmul.f32 %v2854, %v2858
    %2862 = vrot.lane.b32.xlu0 %v2860, 32
    %v2863 = vpop.permute.xlu0 %2862
    %v2865 = vadd.f32 %v2855, %v2863
    %v2866 = vtanh.pop %v2865
    %2868 = vrot.lane.b32.xlu0 %v2866, 64
    %v2869 = vpop.permute.xlu0 %2868
    %v2871 = vmul.f32 %v2854, %v2869
    %v2872 = vld [vmem:[%s1225] sm:$0xff]
    %2874 = vrot.lane.b32.xlu0 %v2871, 32
    %v2875 = vpop.permute.xlu0 %2874
    %v2876 = vsel %vm373, %v2875, 0
    %2878 = vmatprep.subr.mxu0 0.0
    %2879 = vmatpush1.msra.mxu0 %v2363
    %2880 = vmatprep.subr.mxu0 0.0
    %2881 = vmatpush1.msra.mxu0 %v2364
    %2882 = vmatprep.subr.mxu0 0.0
    %2883 = vmatpush1.msra.mxu0 %v2365
    %2884 = vmatprep.subr.mxu0 0.0
    %2885 = vmatpush1.msra.mxu0 %v2366
    %2886 = vmatprep.subr.mxu0 0.0
    %2887 = vmatpush1.msra.mxu0 0.0
    %2888 = vmatprep.subr.mxu0 0.0
    %2889 = vmatpush1.msra.mxu0 0.0
    %2890 = vmatprep.subr.mxu0 0.0
    %2891 = vmatpush1.msra.mxu0 0.0
    %2892 = vmatprep.subr.mxu0 0.0
    %2893 = vmatpush1.msra.mxu0 0.0
    %2894 = vmatprep.subr.mxu0 0.0
    %2895 = vmatpush1.msra.mxu0 0.0
    %2896 = vmatprep.subr.mxu0 0.0
    %2897 = vmatpush1.msra.mxu0 0.0
    %2898 = vmatprep.subr.mxu0 0.0
    %2899 = vmatpush1.msra.mxu0 0.0
    %2900 = vmatprep.subr.mxu0 0.0
    %2901 = vmatpush1.msra.mxu0 0.0
    %2902 = vmatprep.subr.mxu0 0.0
    %2903 = vmatpush1.msra.mxu0 0.0
    %2904 = vmatprep.subr.mxu0 0.0
    %2905 = vmatpush1.msra.mxu0 0.0
    %2906 = vmatprep.subr.mxu0 0.0
    %2907 = vmatpush1.msra.mxu0 0.0
    %2908 = vmatprep.subr.mxu0 0.0
    %2909 = vmatpush1.msra.mxu0 0.0
    %2910 = vmatprep.subr.mxu0 0.0
    %2911 = vmatpush1.msra.mxu0 0.0
    %2912 = vmatprep.subr.mxu0 0.0
    %2913 = vmatpush1.msra.mxu0 0.0
    %2914 = vmatprep.subr.mxu0 0.0
    %2915 = vmatpush1.msra.mxu0 0.0
    %2916 = vmatprep.subr.mxu0 0.0
    %2917 = vmatpush1.msra.mxu0 0.0
    %2918 = vmatprep.subr.mxu0 0.0
    %2919 = vmatpush1.msra.mxu0 0.0
    %2920 = vmatprep.subr.mxu0 0.0
    %2921 = vmatpush1.msra.mxu0 0.0
    %2922 = vmatprep.subr.mxu0 0.0
    %2923 = vmatpush1.msra.mxu0 0.0
    %2924 = vmatprep.subr.mxu0 0.0
    %2925 = vmatpush1.msra.mxu0 0.0
    %2926 = vmatprep.subr.mxu0 0.0
    %2927 = vmatpush1.msra.mxu0 0.0
    %2928 = vmatprep.subr.mxu0 0.0
    %2929 = vmatpush1.msra.mxu0 0.0
    %2930 = vmatprep.subr.mxu0 0.0
    %2931 = vmatpush1.msra.mxu0 0.0
    %2932 = vmatprep.subr.mxu0 0.0
    %2933 = vmatpush1.msra.mxu0 0.0
    %2934 = vmatprep.subr.mxu0 0.0
    %2935 = vmatpush1.msra.mxu0 0.0
    %2936 = vmatprep.subr.mxu0 0.0
    %2937 = vmatpush1.msra.mxu0 0.0
    %2938 = vmatprep.subr.mxu0 0.0
    %2939 = vmatpush1.msra.mxu0 0.0
    %2940 = vmatprep.subr.mxu0 0.0
    %2941 = vmatpush1.msra.mxu0 0.0
    %2942 = vmatprep.mubr.f32.mxu0 0.0
    %2943 = vmatmul.mubr.f32.gmra.mrb[0].mxu0 %v2876
    %v2944 = vpop.f32.mrb[0].mxu0
    %v2945 = vadd.f32 0.0, %v2944
    %v2946 = vpop.f32.mrb[0].mxu0
    %2947 = vdwg.mxu0
    %v2948 = vadd.f32 %v2872, %v2945
    %v2949 = vxor.u32 %v2948, 2147483648
    %v2950 = vmul.f32 %v2949, 1.442695
    %v2951 = vpow.pop %v2950
    %v2952 = vadd.f32 %v2951, 1.0
    %v2953 = vrcp.pop %v2952
    %v2954 = vmul.f32 1.0, %v2953
    %v2955 = vtanh.pop %v2948
    %v2956 = vsel %vm83, %v2955, %v2954
    %v2957 = vmul.f32 %v2956, %v2865
    %2959 = vrot.lane.b32.xlu0 %v2956, 64
    %v2960 = vpop.permute.xlu0 %2959
    %v2962 = vmul.f32 %v2956, %v2960
    %2964 = vrot.lane.b32.xlu0 %v2962, 32
    %v2965 = vpop.permute.xlu0 %2964
    %v2967 = vadd.f32 %v2957, %v2965
    %v2968 = vtanh.pop %v2967
    %2970 = vrot.lane.b32.xlu0 %v2968, 64
    %v2971 = vpop.permute.xlu0 %2970
    %v2973 = vmul.f32 %v2956, %v2971
    %v2974 = vld [vmem:[%s1437] sm:$0xff]
    %2976 = vrot.lane.b32.xlu0 %v2973, 32
    %v2977 = vpop.permute.xlu0 %2976
    %v2978 = vsel %vm373, %v2977, 0
    %2980 = vmatprep.subr.mxu0 0.0
    %2981 = vmatpush1.msra.mxu0 %v2363
    %2982 = vmatprep.subr.mxu0 0.0
    %2983 = vmatpush1.msra.mxu0 %v2364
    %2984 = vmatprep.subr.mxu0 0.0
    %2985 = vmatpush1.msra.mxu0 %v2365
    %2986 = vmatprep.subr.mxu0 0.0
    %2987 = vmatpush1.msra.mxu0 %v2366
    %2988 = vmatprep.subr.mxu0 0.0
    %2989 = vmatpush1.msra.mxu0 0.0
    %2990 = vmatprep.subr.mxu0 0.0
    %2991 = vmatpush1.msra.mxu0 0.0
    %2992 = vmatprep.subr.mxu0 0.0
    %2993 = vmatpush1.msra.mxu0 0.0
    %2994 = vmatprep.subr.mxu0 0.0
    %2995 = vmatpush1.msra.mxu0 0.0
    %2996 = vmatprep.subr.mxu0 0.0
    %2997 = vmatpush1.msra.mxu0 0.0
    %2998 = vmatprep.subr.mxu0 0.0
    %2999 = vmatpush1.msra.mxu0 0.0
    %3000 = vmatprep.subr.mxu0 0.0
    %3001 = vmatpush1.msra.mxu0 0.0
    %3002 = vmatprep.subr.mxu0 0.0
    %3003 = vmatpush1.msra.mxu0 0.0
    %3004 = vmatprep.subr.mxu0 0.0
    %3005 = vmatpush1.msra.mxu0 0.0
    %3006 = vmatprep.subr.mxu0 0.0
    %3007 = vmatpush1.msra.mxu0 0.0
    %3008 = vmatprep.subr.mxu0 0.0
    %3009 = vmatpush1.msra.mxu0 0.0
    %3010 = vmatprep.subr.mxu0 0.0
    %3011 = vmatpush1.msra.mxu0 0.0
    %3012 = vmatprep.subr.mxu0 0.0
    %3013 = vmatpush1.msra.mxu0 0.0
    %3014 = vmatprep.subr.mxu0 0.0
    %3015 = vmatpush1.msra.mxu0 0.0
    %3016 = vmatprep.subr.mxu0 0.0
    %3017 = vmatpush1.msra.mxu0 0.0
    %3018 = vmatprep.subr.mxu0 0.0
    %3019 = vmatpush1.msra.mxu0 0.0
    %3020 = vmatprep.subr.mxu0 0.0
    %3021 = vmatpush1.msra.mxu0 0.0
    %3022 = vmatprep.subr.mxu0 0.0
    %3023 = vmatpush1.msra.mxu0 0.0
    %3024 = vmatprep.subr.mxu0 0.0
    %3025 = vmatpush1.msra.mxu0 0.0
    %3026 = vmatprep.subr.mxu0 0.0
    %3027 = vmatpush1.msra.mxu0 0.0
    %3028 = vmatprep.subr.mxu0 0.0
    %3029 = vmatpush1.msra.mxu0 0.0
    %3030 = vmatprep.subr.mxu0 0.0
    %3031 = vmatpush1.msra.mxu0 0.0
    %3032 = vmatprep.subr.mxu0 0.0
    %3033 = vmatpush1.msra.mxu0 0.0
    %3034 = vmatprep.subr.mxu0 0.0
    %3035 = vmatpush1.msra.mxu0 0.0
    %3036 = vmatprep.subr.mxu0 0.0
    %3037 = vmatpush1.msra.mxu0 0.0
    %3038 = vmatprep.subr.mxu0 0.0
    %3039 = vmatpush1.msra.mxu0 0.0
    %3040 = vmatprep.subr.mxu0 0.0
    %3041 = vmatpush1.msra.mxu0 0.0
    %3042 = vmatprep.subr.mxu0 0.0
    %3043 = vmatpush1.msra.mxu0 0.0
    %3044 = vmatprep.mubr.f32.mxu0 0.0
    %3045 = vmatmul.mubr.f32.gmra.mrb[0].mxu0 %v2978
    %v3046 = vpop.f32.mrb[0].mxu0
    %v3047 = vadd.f32 0.0, %v3046
    %v3048 = vpop.f32.mrb[0].mxu0
    %3049 = vdwg.mxu0
    %v3050 = vadd.f32 %v2974, %v3047
    %v3051 = vxor.u32 %v3050, 2147483648
    %v3052 = vmul.f32 %v3051, 1.442695
    %v3053 = vpow.pop %v3052
    %v3054 = vadd.f32 %v3053, 1.0
    %v3055 = vrcp.pop %v3054
    %v3056 = vmul.f32 1.0, %v3055
    %v3057 = vtanh.pop %v3050
    %v3058 = vsel %vm83, %v3057, %v3056
    %v3059 = vmul.f32 %v3058, %v2967
    %3061 = vrot.lane.b32.xlu0 %v3058, 64
    %v3062 = vpop.permute.xlu0 %3061
    %v3064 = vmul.f32 %v3058, %v3062
    %3066 = vrot.lane.b32.xlu0 %v3064, 32
    %v3067 = vpop.permute.xlu0 %3066
    %v3069 = vadd.f32 %v3059, %v3067
    %v3070 = vtanh.pop %v3069
    %3072 = vrot.lane.b32.xlu0 %v3070, 64
    %v3073 = vpop.permute.xlu0 %3072
    %v3075 = vmul.f32 %v3058, %v3073
    %v3076 = vld [vmem:[%s1649] sm:$0xff]
    %3078 = vrot.lane.b32.xlu0 %v3075, 32
    %v3079 = vpop.permute.xlu0 %3078
    %v3080 = vsel %vm373, %v3079, 0
    %3082 = vmatprep.subr.mxu0 0.0
    %3083 = vmatpush1.msra.mxu0 %v2363
    %3084 = vmatprep.subr.mxu0 0.0
    %3085 = vmatpush1.msra.mxu0 %v2364
    %3086 = vmatprep.subr.mxu0 0.0
    %3087 = vmatpush1.msra.mxu0 %v2365
    %3088 = vmatprep.subr.mxu0 0.0
    %3089 = vmatpush1.msra.mxu0 %v2366
    %3090 = vmatprep.subr.mxu0 0.0
    %3091 = vmatpush1.msra.mxu0 0.0
    %3092 = vmatprep.subr.mxu0 0.0
    %3093 = vmatpush1.msra.mxu0 0.0
    %3094 = vmatprep.subr.mxu0 0.0
    %3095 = vmatpush1.msra.mxu0 0.0
    %3096 = vmatprep.subr.mxu0 0.0
    %3097 = vmatpush1.msra.mxu0 0.0
    %3098 = vmatprep.subr.mxu0 0.0
    %3099 = vmatpush1.msra.mxu0 0.0
    %3100 = vmatprep.subr.mxu0 0.0
    %3101 = vmatpush1.msra.mxu0 0.0
    %3102 = vmatprep.subr.mxu0 0.0
    %3103 = vmatpush1.msra.mxu0 0.0
    %3104 = vmatprep.subr.mxu0 0.0
    %3105 = vmatpush1.msra.mxu0 0.0
    %3106 = vmatprep.subr.mxu0 0.0
    %3107 = vmatpush1.msra.mxu0 0.0
    %3108 = vmatprep.subr.mxu0 0.0
    %3109 = vmatpush1.msra.mxu0 0.0
    %3110 = vmatprep.subr.mxu0 0.0
    %3111 = vmatpush1.msra.mxu0 0.0
    %3112 = vmatprep.subr.mxu0 0.0
    %3113 = vmatpush1.msra.mxu0 0.0
    %3114 = vmatprep.subr.mxu0 0.0
    %3115 = vmatpush1.msra.mxu0 0.0
    %3116 = vmatprep.subr.mxu0 0.0
    %3117 = vmatpush1.msra.mxu0 0.0
    %3118 = vmatprep.subr.mxu0 0.0
    %3119 = vmatpush1.msra.mxu0 0.0
    %3120 = vmatprep.subr.mxu0 0.0
    %3121 = vmatpush1.msra.mxu0 0.0
    %3122 = vmatprep.subr.mxu0 0.0
    %3123 = vmatpush1.msra.mxu0 0.0
    %3124 = vmatprep.subr.mxu0 0.0
    %3125 = vmatpush1.msra.mxu0 0.0
    %3126 = vmatprep.subr.mxu0 0.0
    %3127 = vmatpush1.msra.mxu0 0.0
    %3128 = vmatprep.subr.mxu0 0.0
    %3129 = vmatpush1.msra.mxu0 0.0
    %3130 = vmatprep.subr.mxu0 0.0
    %3131 = vmatpush1.msra.mxu0 0.0
    %3132 = vmatprep.subr.mxu0 0.0
    %3133 = vmatpush1.msra.mxu0 0.0
    %3134 = vmatprep.subr.mxu0 0.0
    %3135 = vmatpush1.msra.mxu0 0.0
    %3136 = vmatprep.subr.mxu0 0.0
    %3137 = vmatpush1.msra.mxu0 0.0
    %3138 = vmatprep.subr.mxu0 0.0
    %3139 = vmatpush1.msra.mxu0 0.0
    %3140 = vmatprep.subr.mxu0 0.0
    %3141 = vmatpush1.msra.mxu0 0.0
    %3142 = vmatprep.subr.mxu0 0.0
    %3143 = vmatpush1.msra.mxu0 0.0
    %3144 = vmatprep.subr.mxu0 0.0
    %3145 = vmatpush1.msra.mxu0 0.0
    %3146 = vmatprep.mubr.f32.mxu0 0.0
    %3147 = vmatmul.mubr.f32.gmra.mrb[0].mxu0 %v3080
    %v3148 = vpop.f32.mrb[0].mxu0
    %v3149 = vadd.f32 0.0, %v3148
    %v3150 = vpop.f32.mrb[0].mxu0
    %3151 = vdwg.mxu0
    %v3152 = vadd.f32 %v3076, %v3149
    %v3153 = vxor.u32 %v3152, 2147483648
    %v3154 = vmul.f32 %v3153, 1.442695
    %v3155 = vpow.pop %v3154
    %v3156 = vadd.f32 %v3155, 1.0
    %v3157 = vrcp.pop %v3156
    %v3158 = vmul.f32 1.0, %v3157
    %v3159 = vtanh.pop %v3152
    %v3160 = vsel %vm83, %v3159, %v3158
    %v3161 = vmul.f32 %v3160, %v3069
    %3163 = vrot.lane.b32.xlu0 %v3160, 64
    %v3164 = vpop.permute.xlu0 %3163
    %v3166 = vmul.f32 %v3160, %v3164
    %3168 = vrot.lane.b32.xlu0 %v3166, 32
    %v3169 = vpop.permute.xlu0 %3168
    %v3171 = vadd.f32 %v3161, %v3169
    %v3172 = vtanh.pop %v3171
    %3174 = vrot.lane.b32.xlu0 %v3172, 64
    %v3175 = vpop.permute.xlu0 %3174
    %v3177 = vmul.f32 %v3160, %v3175
    %v3178 = vld [vmem:[%s1861] sm:$0xff]
    %3180 = vrot.lane.b32.xlu0 %v3177, 32
    %v3181 = vpop.permute.xlu0 %3180
    %v3182 = vsel %vm373, %v3181, 0
    %3184 = vmatprep.subr.mxu0 0.0
    %3185 = vmatpush1.msra.mxu0 %v2363
    %3186 = vmatprep.subr.mxu0 0.0
    %3187 = vmatpush1.msra.mxu0 %v2364
    %3188 = vmatprep.subr.mxu0 0.0
    %3189 = vmatpush1.msra.mxu0 %v2365
    %3190 = vmatprep.subr.mxu0 0.0
    %3191 = vmatpush1.msra.mxu0 %v2366
    %3192 = vmatprep.subr.mxu0 0.0
    %3193 = vmatpush1.msra.mxu0 0.0
    %3194 = vmatprep.subr.mxu0 0.0
    %3195 = vmatpush1.msra.mxu0 0.0
    %3196 = vmatprep.subr.mxu0 0.0
    %3197 = vmatpush1.msra.mxu0 0.0
    %3198 = vmatprep.subr.mxu0 0.0
    %3199 = vmatpush1.msra.mxu0 0.0
    %3200 = vmatprep.subr.mxu0 0.0
    %3201 = vmatpush1.msra.mxu0 0.0
    %3202 = vmatprep.subr.mxu0 0.0
    %3203 = vmatpush1.msra.mxu0 0.0
    %3204 = vmatprep.subr.mxu0 0.0
    %3205 = vmatpush1.msra.mxu0 0.0
    %3206 = vmatprep.subr.mxu0 0.0
    %3207 = vmatpush1.msra.mxu0 0.0
    %3208 = vmatprep.subr.mxu0 0.0
    %3209 = vmatpush1.msra.mxu0 0.0
    %3210 = vmatprep.subr.mxu0 0.0
    %3211 = vmatpush1.msra.mxu0 0.0
    %3212 = vmatprep.subr.mxu0 0.0
    %3213 = vmatpush1.msra.mxu0 0.0
    %3214 = vmatprep.subr.mxu0 0.0
    %3215 = vmatpush1.msra.mxu0 0.0
    %3216 = vmatprep.subr.mxu0 0.0
    %3217 = vmatpush1.msra.mxu0 0.0
    %3218 = vmatprep.subr.mxu0 0.0
    %3219 = vmatpush1.msra.mxu0 0.0
    %3220 = vmatprep.subr.mxu0 0.0
    %3221 = vmatpush1.msra.mxu0 0.0
    %3222 = vmatprep.subr.mxu0 0.0
    %3223 = vmatpush1.msra.mxu0 0.0
    %3224 = vmatprep.subr.mxu0 0.0
    %3225 = vmatpush1.msra.mxu0 0.0
    %3226 = vmatprep.subr.mxu0 0.0
    %3227 = vmatpush1.msra.mxu0 0.0
    %3228 = vmatprep.subr.mxu0 0.0
    %3229 = vmatpush1.msra.mxu0 0.0
    %3230 = vmatprep.subr.mxu0 0.0
    %3231 = vmatpush1.msra.mxu0 0.0
    %3232 = vmatprep.subr.mxu0 0.0
    %3233 = vmatpush1.msra.mxu0 0.0
    %3234 = vmatprep.subr.mxu0 0.0
    %3235 = vmatpush1.msra.mxu0 0.0
    %3236 = vmatprep.subr.mxu0 0.0
    %3237 = vmatpush1.msra.mxu0 0.0
    %3238 = vmatprep.subr.mxu0 0.0
    %3239 = vmatpush1.msra.mxu0 0.0
    %3240 = vmatprep.subr.mxu0 0.0
    %3241 = vmatpush1.msra.mxu0 0.0
    %3242 = vmatprep.subr.mxu0 0.0
    %3243 = vmatpush1.msra.mxu0 0.0
    %3244 = vmatprep.subr.mxu0 0.0
    %3245 = vmatpush1.msra.mxu0 0.0
    %3246 = vmatprep.subr.mxu0 0.0
    %3247 = vmatpush1.msra.mxu0 0.0
    %3248 = vmatprep.mubr.f32.mxu0 0.0
    %3249 = vmatmul.mubr.f32.gmra.mrb[0].mxu0 %v3182
    %v3250 = vpop.f32.mrb[0].mxu0
    %v3251 = vadd.f32 0.0, %v3250
    %v3252 = vpop.f32.mrb[0].mxu0
    %3253 = vdwg.mxu0
    %v3254 = vadd.f32 %v3178, %v3251
    %v3255 = vxor.u32 %v3254, 2147483648
    %v3256 = vmul.f32 %v3255, 1.442695
    %v3257 = vpow.pop %v3256
    %v3258 = vadd.f32 %v3257, 1.0
    %v3259 = vrcp.pop %v3258
    %v3260 = vmul.f32 1.0, %v3259
    %v3261 = vtanh.pop %v3254
    %v3262 = vsel %vm83, %v3261, %v3260
    %v3263 = vmul.f32 %v3262, %v3171
    %3265 = vrot.lane.b32.xlu0 %v3262, 64
    %v3266 = vpop.permute.xlu0 %3265
    %v3268 = vmul.f32 %v3262, %v3266
    %3270 = vrot.lane.b32.xlu0 %v3268, 32
    %v3271 = vpop.permute.xlu0 %3270
    %v3273 = vadd.f32 %v3263, %v3271
    %v3274 = vtanh.pop %v3273
    %3276 = vrot.lane.b32.xlu0 %v3274, 64
    %v3277 = vpop.permute.xlu0 %3276
    %v3279 = vmul.f32 %v3262, %v3277
    %v3280 = vld [vmem:[#allocation9] sm:$0xff]
    %v3281 = vld [vmem:[#allocation9 + $0x8] sm:$0xff]
    %v3282 = vld [vmem:[#allocation9 + $0x10] sm:$0xff]
    %v3283 = vld [vmem:[#allocation9 + $0x18] sm:$0xff]
    %s3284 = scalar_lea.vmem [#allocation9], 32
    %v3285 = vld [vmem:[%s3284] sm:$0xff]
    %v3286 = vld [vmem:[%s3284 + $0x8] sm:$0xff]
    %v3287 = vld [vmem:[%s3284 + $0x10] sm:$0xff]
    %v3288 = vld [vmem:[%s3284 + $0x18] sm:$0xff]
    %3290 = vrot.lane.b32.xlu0 %v2565, 32
    %v3291 = vpop.permute.xlu0 %3290
    %v3292 = vsel %vm373, %v3291, 0
    %3294 = vmatprep.subr.mxu0 0.0
    %3295 = vmatpush1.msra.mxu0 %v3285
    %3296 = vmatprep.subr.mxu0 0.0
    %3297 = vmatpush1.msra.mxu0 %v3286
    %3298 = vmatprep.subr.mxu0 0.0
    %3299 = vmatpush1.msra.mxu0 %v3287
    %3300 = vmatprep.subr.mxu0 0.0
    %3301 = vmatpush1.msra.mxu0 %v3288
    %3302 = vmatprep.subr.mxu0 0.0
    %3303 = vmatpush1.msra.mxu0 0.0
    %3304 = vmatprep.subr.mxu0 0.0
    %3305 = vmatpush1.msra.mxu0 0.0
    %3306 = vmatprep.subr.mxu0 0.0
    %3307 = vmatpush1.msra.mxu0 0.0
    %3308 = vmatprep.subr.mxu0 0.0
    %3309 = vmatpush1.msra.mxu0 0.0
    %3310 = vmatprep.subr.mxu0 0.0
    %3311 = vmatpush1.msra.mxu0 0.0
    %3312 = vmatprep.subr.mxu0 0.0
    %3313 = vmatpush1.msra.mxu0 0.0
    %3314 = vmatprep.subr.mxu0 0.0
    %3315 = vmatpush1.msra.mxu0 0.0
    %3316 = vmatprep.subr.mxu0 0.0
    %3317 = vmatpush1.msra.mxu0 0.0
    %3318 = vmatprep.subr.mxu0 0.0
    %3319 = vmatpush1.msra.mxu0 0.0
    %3320 = vmatprep.subr.mxu0 0.0
    %3321 = vmatpush1.msra.mxu0 0.0
    %3322 = vmatprep.subr.mxu0 0.0
    %3323 = vmatpush1.msra.mxu0 0.0
    %3324 = vmatprep.subr.mxu0 0.0
    %3325 = vmatpush1.msra.mxu0 0.0
    %3326 = vmatprep.subr.mxu0 0.0
    %3327 = vmatpush1.msra.mxu0 0.0
    %3328 = vmatprep.subr.mxu0 0.0
    %3329 = vmatpush1.msra.mxu0 0.0
    %3330 = vmatprep.subr.mxu0 0.0
    %3331 = vmatpush1.msra.mxu0 0.0
    %3332 = vmatprep.subr.mxu0 0.0
    %3333 = vmatpush1.msra.mxu0 0.0
    %3334 = vmatprep.subr.mxu0 0.0
    %3335 = vmatpush1.msra.mxu0 0.0
    %3336 = vmatprep.subr.mxu0 0.0
    %3337 = vmatpush1.msra.mxu0 0.0
    %3338 = vmatprep.subr.mxu0 0.0
    %3339 = vmatpush1.msra.mxu0 0.0
    %3340 = vmatprep.subr.mxu0 0.0
    %3341 = vmatpush1.msra.mxu0 0.0
    %3342 = vmatprep.subr.mxu0 0.0
    %3343 = vmatpush1.msra.mxu0 0.0
    %3344 = vmatprep.subr.mxu0 0.0
    %3345 = vmatpush1.msra.mxu0 0.0
    %3346 = vmatprep.subr.mxu0 0.0
    %3347 = vmatpush1.msra.mxu0 0.0
    %3348 = vmatprep.subr.mxu0 0.0
    %3349 = vmatpush1.msra.mxu0 0.0
    %3350 = vmatprep.subr.mxu0 0.0
    %3351 = vmatpush1.msra.mxu0 0.0
    %3352 = vmatprep.subr.mxu0 0.0
    %3353 = vmatpush1.msra.mxu0 0.0
    %3354 = vmatprep.subr.mxu0 0.0
    %3355 = vmatpush1.msra.mxu0 0.0
    %3356 = vmatprep.subr.mxu0 0.0
    %3357 = vmatpush1.msra.mxu0 0.0
    %3358 = vmatprep.mubr.f32.mxu0 0.0
    %3359 = vmatmul.mubr.f32.gmra.mrb[0].mxu0 %v3292
    %v3360 = vpop.f32.mrb[0].mxu0
    %v3361 = vadd.f32 0.0, %v3360
    %v3362 = vpop.f32.mrb[0].mxu0
    %3363 = vdwg.mxu0
    %3365 = vrot.lane.b32.xlu0 %v3279, 32
    %v3366 = vpop.permute.xlu0 %3365
    %v3367 = vsel %vm373, %v3366, 0
    %3369 = vmatprep.subr.mxu0 0.0
    %3370 = vmatpush1.msra.mxu0 %v3280
    %3371 = vmatprep.subr.mxu0 0.0
    %3372 = vmatpush1.msra.mxu0 %v3281
    %3373 = vmatprep.subr.mxu0 0.0
    %3374 = vmatpush1.msra.mxu0 %v3282
    %3375 = vmatprep.subr.mxu0 0.0
    %3376 = vmatpush1.msra.mxu0 %v3283
    %3377 = vmatprep.subr.mxu0 0.0
    %3378 = vmatpush1.msra.mxu0 0.0
    %3379 = vmatprep.subr.mxu0 0.0
    %3380 = vmatpush1.msra.mxu0 0.0
    %3381 = vmatprep.subr.mxu0 0.0
    %3382 = vmatpush1.msra.mxu0 0.0
    %3383 = vmatprep.subr.mxu0 0.0
    %3384 = vmatpush1.msra.mxu0 0.0
    %3385 = vmatprep.subr.mxu0 0.0
    %3386 = vmatpush1.msra.mxu0 0.0
    %3387 = vmatprep.subr.mxu0 0.0
    %3388 = vmatpush1.msra.mxu0 0.0
    %3389 = vmatprep.subr.mxu0 0.0
    %3390 = vmatpush1.msra.mxu0 0.0
    %3391 = vmatprep.subr.mxu0 0.0
    %3392 = vmatpush1.msra.mxu0 0.0
    %3393 = vmatprep.subr.mxu0 0.0
    %3394 = vmatpush1.msra.mxu0 0.0
    %3395 = vmatprep.subr.mxu0 0.0
    %3396 = vmatpush1.msra.mxu0 0.0
    %3397 = vmatprep.subr.mxu0 0.0
    %3398 = vmatpush1.msra.mxu0 0.0
    %3399 = vmatprep.subr.mxu0 0.0
    %3400 = vmatpush1.msra.mxu0 0.0
    %3401 = vmatprep.subr.mxu0 0.0
    %3402 = vmatpush1.msra.mxu0 0.0
    %3403 = vmatprep.subr.mxu0 0.0
    %3404 = vmatpush1.msra.mxu0 0.0
    %3405 = vmatprep.subr.mxu0 0.0
    %3406 = vmatpush1.msra.mxu0 0.0
    %3407 = vmatprep.subr.mxu0 0.0
    %3408 = vmatpush1.msra.mxu0 0.0
    %3409 = vmatprep.subr.mxu0 0.0
    %3410 = vmatpush1.msra.mxu0 0.0
    %3411 = vmatprep.subr.mxu0 0.0
    %3412 = vmatpush1.msra.mxu0 0.0
    %3413 = vmatprep.subr.mxu0 0.0
    %3414 = vmatpush1.msra.mxu0 0.0
    %3415 = vmatprep.subr.mxu0 0.0
    %3416 = vmatpush1.msra.mxu0 0.0
    %3417 = vmatprep.subr.mxu0 0.0
    %3418 = vmatpush1.msra.mxu0 0.0
    %3419 = vmatprep.subr.mxu0 0.0
    %3420 = vmatpush1.msra.mxu0 0.0
    %3421 = vmatprep.subr.mxu0 0.0
    %3422 = vmatpush1.msra.mxu0 0.0
    %3423 = vmatprep.subr.mxu0 0.0
    %3424 = vmatpush1.msra.mxu0 0.0
    %3425 = vmatprep.subr.mxu0 0.0
    %3426 = vmatpush1.msra.mxu0 0.0
    %3427 = vmatprep.subr.mxu0 0.0
    %3428 = vmatpush1.msra.mxu0 0.0
    %3429 = vmatprep.subr.mxu0 0.0
    %3430 = vmatpush1.msra.mxu0 0.0
    %3431 = vmatprep.subr.mxu0 0.0
    %3432 = vmatpush1.msra.mxu0 0.0
    %3433 = vmatprep.mubr.f32.mxu0 0.0
    %3434 = vmatmul.mubr.f32.gmra.mrb[0].mxu0 %v3367
    %v3435 = vpop.f32.mrb[0].mxu0
    %v3436 = vadd.f32 %v3361, %v3435
    %v3437 = vpop.f32.mrb[0].mxu0
    %3438 = vdwg.mxu0
    %v3439 = vld [vmem:[%s8] sm:$0x1]
    %v3441 = vlaneseq
    %v3442 = vshrl.u32 %v3441, 7
    %v3443 = vsub.s32 0, %v3442
    %v3444 = vrot.slane %v3439, %v3443
    %v3446 = vadd.f32 %v3436, %v3444
    %v3447 = vmax.f32 %v3446, 0.0
    %v3448 = vld [vmem:[%s9] sm:$0xff]
    %v3449 = vld [vmem:[%s9 + $0x8] sm:$0xff]
    %v3450 = vld [vmem:[%s9 + $0x10] sm:$0xff]
    %v3451 = vld [vmem:[%s9 + $0x18] sm:$0xff]
    %v3452 = vld [vmem:[%s9 + $0x20] sm:$0xff]
    %v3453 = vld [vmem:[%s9 + $0x28] sm:$0xff]
    %v3454 = vld [vmem:[%s9 + $0x30] sm:$0xff]
    %v3455 = vld [vmem:[%s9 + $0x38] sm:$0xff]
    %v3456 = vld [vmem:[%s10] sm:$0x1]
    %v3458 = vlaneseq
    %v3459 = vshrl.u32 %v3458, 7
    %v3460 = vsub.s32 0, %v3459
    %v3461 = vrot.slane %v3456, %v3460
    %v3464 = vsel %vm2095, %v3447, 0
    %3466 = vmatprep.subr.mxu0 0.0
    %3467 = vmatpush1.msra.mxu0 %v3448
    %3468 = vmatprep.subr.mxu0 0.0
    %3469 = vmatpush1.msra.mxu0 %v3449
    %3470 = vmatprep.subr.mxu0 0.0
    %3471 = vmatpush1.msra.mxu0 %v3450
    %3472 = vmatprep.subr.mxu0 0.0
    %3473 = vmatpush1.msra.mxu0 %v3451
    %3474 = vmatprep.subr.mxu0 0.0
    %3475 = vmatpush1.msra.mxu0 %v3452
    %3476 = vmatprep.subr.mxu0 0.0
    %3477 = vmatpush1.msra.mxu0 %v3453
    %3478 = vmatprep.subr.mxu0 0.0
    %3479 = vmatpush1.msra.mxu0 %v3454
    %3480 = vmatprep.subr.mxu0 0.0
    %3481 = vmatpush1.msra.mxu0 %v3455
    %3482 = vmatprep.subr.mxu0 0.0
    %3483 = vmatpush1.msra.mxu0 0.0
    %3484 = vmatprep.subr.mxu0 0.0
    %3485 = vmatpush1.msra.mxu0 0.0
    %3486 = vmatprep.subr.mxu0 0.0
    %3487 = vmatpush1.msra.mxu0 0.0
    %3488 = vmatprep.subr.mxu0 0.0
    %3489 = vmatpush1.msra.mxu0 0.0
    %3490 = vmatprep.subr.mxu0 0.0
    %3491 = vmatpush1.msra.mxu0 0.0
    %3492 = vmatprep.subr.mxu0 0.0
    %3493 = vmatpush1.msra.mxu0 0.0
    %3494 = vmatprep.subr.mxu0 0.0
    %3495 = vmatpush1.msra.mxu0 0.0
    %3496 = vmatprep.subr.mxu0 0.0
    %3497 = vmatpush1.msra.mxu0 0.0
    %3498 = vmatprep.subr.mxu0 0.0
    %3499 = vmatpush1.msra.mxu0 0.0
    %3500 = vmatprep.subr.mxu0 0.0
    %3501 = vmatpush1.msra.mxu0 0.0
    %3502 = vmatprep.subr.mxu0 0.0
    %3503 = vmatpush1.msra.mxu0 0.0
    %3504 = vmatprep.subr.mxu0 0.0
    %3505 = vmatpush1.msra.mxu0 0.0
    %3506 = vmatprep.subr.mxu0 0.0
    %3507 = vmatpush1.msra.mxu0 0.0
    %3508 = vmatprep.subr.mxu0 0.0
    %3509 = vmatpush1.msra.mxu0 0.0
    %3510 = vmatprep.subr.mxu0 0.0
    %3511 = vmatpush1.msra.mxu0 0.0
    %3512 = vmatprep.subr.mxu0 0.0
    %3513 = vmatpush1.msra.mxu0 0.0
    %3514 = vmatprep.subr.mxu0 0.0
    %3515 = vmatpush1.msra.mxu0 0.0
    %3516 = vmatprep.subr.mxu0 0.0
    %3517 = vmatpush1.msra.mxu0 0.0
    %3518 = vmatprep.subr.mxu0 0.0
    %3519 = vmatpush1.msra.mxu0 0.0
    %3520 = vmatprep.subr.mxu0 0.0
    %3521 = vmatpush1.msra.mxu0 0.0
    %3522 = vmatprep.subr.mxu0 0.0
    %3523 = vmatpush1.msra.mxu0 0.0
    %3524 = vmatprep.subr.mxu0 0.0
    %3525 = vmatpush1.msra.mxu0 0.0
    %3526 = vmatprep.subr.mxu0 0.0
    %3527 = vmatpush1.msra.mxu0 0.0
    %3528 = vmatprep.subr.mxu0 0.0
    %3529 = vmatpush1.msra.mxu0 0.0
    %3530 = vmatprep.mubr.f32.mxu0 0.0
    %3531 = vmatmul.mubr.f32.gmra.mrb[0].mxu0 %v3464
    %v3532 = vpop.f32.mrb[0].mxu0
    %v3533 = vadd.f32 %v3461, %v3532
    %v3534 = vpop.f32.mrb[0].mxu0
    %3535 = vdwg.mxu0
    %vm3536 = vcmask 31744
    %3537 = vst.msk [vmem:[%s11] sm:$0xff] %vm3536, %v3533
    // Predicated region
    $region58: #{bilstm_predictor.1} parent=1 // pred_check
      _
    $region59: #{bilstm_predictor.1} parent=1 // pred_check_branch
      %3539 = sbr.rel (0) target = $region61
    $region60: #{bilstm_predictor.1} parent=1 // pred_region
      _
    $region61: #{bilstm_predictor.1} parent=1 // pred_fallthru
      _
    // Predicated region
    $region62: #{bilstm_predictor.1} parent=1 // pred_check
      _
    $region63: #{bilstm_predictor.1} parent=1 // pred_check_branch
      %3541 = sbr.rel (0) target = $region65
    $region64: #{bilstm_predictor.1} parent=1 // pred_region
      _
    $region65: #{bilstm_predictor.1} parent=1 // pred_fallthru
      _
    %3542 = vsyncpa [#allocation6], 1
    %3543 = vsyncpa [#allocation8], 1

</llo_original>
